<compile_context>
chip_gen: v5e
topology: v5e:2x2
jax: 0.10.0
libtpu: 0.0.40
codegen_flags: <defaults>
</compile_context>

<pallas_src>
import functools

import jax
import jax.numpy as jnp
from jax import lax
from jax.experimental import pallas as pl
from jax.experimental.pallas import tpu as pltpu

F32 = jnp.float32
BF16 = jnp.bfloat16
NEG_BIG = 1e30   # plain Python float -> not a captured jnp constant


# ----------------------------------------------------------------------------
# In-kernel helpers (MXU matmuls in bf16 w/ f32 accumulation, VPU/EUP in f32)
# ----------------------------------------------------------------------------
def _bdot(a, b):
    """MXU matmul, bf16 operands, f32 accumulation."""
    return jnp.dot(a.astype(BF16), b.astype(BF16), preferred_element_type=F32)


def _bdot_t(a, b):
    """a^T @ b (contract dim 0 of both operands) -- transpose-free scatter."""
    return lax.dot_general(a.astype(BF16), b.astype(BF16),
                           (((0,), (0,)), ((), ())),
                           preferred_element_type=F32)


def _ln_relu(x, g, b):
    mu = jnp.mean(x, axis=-1, keepdims=True)
    var = jnp.mean((x - mu) ** 2, axis=-1, keepdims=True)
    return jnp.maximum((x - mu) * lax.rsqrt(var + 1e-5) * g + b, 0.0)


def _mlp(x, w1, b1, g, be, w2, b2):
    """Linear -> LayerNorm -> ReLU -> Linear (MLP(norm=True, act='relu'))."""
    h = _bdot(x, w1) + b1
    return _bdot(_ln_relu(h, g, be), w2) + b2


def _kv_first_layer(h, rf, ef, ohd, ohs, w1r, w1e, w1hi, w1hj, b1):
    """Packed kv-MLP first layer without materializing kv_input.

    kv_input @ W1 == ef @ W1_e + rf @ W1_r + oh_dst @ (h @ W1_hi)
                   + oh_src @ (h @ W1_hj)   (associativity of the gather).
    Last output column is the folded ew_net Linear (nonzero only on r_feat
    rows), so r_feat is only read once.
    """
    pre_i = _bdot(h, w1hi)                               # (N, 2*mh+1)
    pre_j = _bdot(h, w1hj)                               # (N, 2*mh+1)
    return (_bdot(rf, w1r) + _bdot(ef, w1e)
            + _bdot(ohd, pre_i) + _bdot(ohs, pre_j) + b1)   # (E, 2*mh+1)


def _kv_mlp_from_pre(pre, g, be, w2k, b2k, w2v, b2v):
    """LayerNorm+ReLU per half, then two separate second-layer matmuls
    (no zero-padded block-diagonal, no activation concatenate)."""
    mh = g.shape[-1] // 2
    a_k = _ln_relu(pre[:, :mh], g[:, :mh], be[:, :mh])
    a_v = _ln_relu(pre[:, mh:2 * mh], g[:, mh:], be[:, mh:])
    e_w = jax.nn.sigmoid(pre[:, 2 * mh:2 * mh + 1])      # folded ew_net column
    k = _bdot(a_k, w2k) + b2k
    v = _bdot(a_v, w2v) + b2v
    return k, v, e_w


def _segment_softmax(logits, ohd):
    """scatter_softmax over edges grouped by destination node.

    Per-(dst, head) max (additive bias hoisted once) for numerical safety,
    gathers/scatter-sums through the bf16 one-hot(dst) on the MXU, EUP
    reciprocal taken on the (N, H) denominator before the gather.
    """
    n_heads = logits.shape[-1]
    bias = (ohd.astype(F32) - 1.0) * NEG_BIG              # (E, N): 0 on dst, -1e30 off
    rows = [jnp.max(logits[:, hh:hh + 1] + bias, axis=0, keepdims=True)
            for hh in range(n_heads)]                     # static unroll, H x (1, N)
    m_dst_t = jnp.concatenate(rows, axis=0)               # (H, N) per-dst max
    m_e = lax.dot_general(ohd.astype(BF16), m_dst_t.astype(BF16),
                          (((1,), (1,)), ((), ())),
                          preferred_element_type=F32)     # (E, H) gather of max
    p = jnp.exp(logits - m_e)                             # (E, H)
    denom = _bdot_t(ohd, p)                               # (N, H) scatter-sum
    # Clamp so zero-in-degree nodes (denom == 0) never produce inf -> NaN when
    # gathered through the one-hot.
    inv = pl.reciprocal(jnp.maximum(denom, 1e-6), approx=True)   # (N, H)
    return p * _bdot(ohd, inv)                            # alpha (E, H)


# ----------------------------------------------------------------------------
# Fused per-layer Pallas kernels
# ----------------------------------------------------------------------------
def _x2h_fused_kernel(rf_ref, ef_ref, h_ref, ohd_ref, ohs_ref,
                      hmap_s_ref, hmap_t_ref,
                      w1r_ref, w1e_ref, w1hi_ref, w1hj_ref, b1_ref,
                      gkv_ref, bekv_ref,
                      w2k_ref, b2k_ref, w2v_ref, b2v_ref,
                      wq1_ref, bq1_ref, gq_ref, beq_ref, wq2_ref, bq2_ref,
                      wo1a_ref, wo1h_ref, bo1_ref, go_ref, beo_ref,
                      wo2_ref, bo2_ref,
                      o_ref):
    h = h_ref[...]                                        # (N, C) f32
    ohd = ohd_ref[...]                                    # (E, N) bf16 one-hot(dst)

    pre = _kv_first_layer(h, rf_ref[...], ef_ref[...], ohd, ohs_ref[...],
                          w1r_ref[...], w1e_ref[...], w1hi_ref[...],
                          w1hj_ref[...], b1_ref[...])
    k, v, e_w = _kv_mlp_from_pre(pre, gkv_ref[...], bekv_ref[...],
                                 w2k_ref[...], b2k_ref[...],
                                 w2v_ref[...], b2v_ref[...])   # (E,C),(E,C),(E,1)
    q = _mlp(h, wq1_ref[...], bq1_ref[...], gq_ref[...], beq_ref[...],
             wq2_ref[...], bq2_ref[...])                  # (N, C)

    q_dst = _bdot(ohd, q)                                 # (E, C) gather q[dst]
    logits = _bdot(q_dst * k, hmap_s_ref[...])            # (E, H), 1/sqrt(d) folded
    alpha = _segment_softmax(logits, ohd)                 # (E, H)
    weighted = _bdot(alpha, hmap_t_ref[...]) * v * e_w    # (E, C)
    out_attn = _bdot_t(ohd, weighted)                     # (N, C) scatter-sum

    # Node-output MLP on concat([out_attn, h]) without materializing the concat.
    pre_o = _bdot(out_attn, wo1a_ref[...]) + _bdot(h, wo1h_ref[...]) + bo1_ref[...]
    out = _bdot(_ln_relu(pre_o, go_ref[...], beo_ref[...]), wo2_ref[...]) + bo2_ref[...]
    o_ref[...] = out + h                                  # residual


def _h2x_fused_kernel(rf_ref, ef_ref, h_ref, relx_ref, x_ref, mask_ref,
                      ohd_ref, ohs_ref, hmap_s_ref,
                      w1r_ref, w1e_ref, w1hi_ref, w1hj_ref, b1_ref,
                      gkv_ref, bekv_ref,
                      w2k_ref, b2k_ref, w2v_ref, b2v_ref,
                      wq1_ref, bq1_ref, gq_ref, beq_ref, wq2_ref, bq2_ref,
                      o_ref):
    h = h_ref[...]
    ohd = ohd_ref[...]

    pre = _kv_first_layer(h, rf_ref[...], ef_ref[...], ohd, ohs_ref[...],
                          w1r_ref[...], w1e_ref[...], w1hi_ref[...],
                          w1hj_ref[...], b1_ref[...])
    k, v, e_w = _kv_mlp_from_pre(pre, gkv_ref[...], bekv_ref[...],
                                 w2k_ref[...], b2k_ref[...],
                                 w2v_ref[...], b2v_ref[...])   # (E,C),(E,H),(E,1)
    q = _mlp(h, wq1_ref[...], bq1_ref[...], gq_ref[...], beq_ref[...],
             wq2_ref[...], bq2_ref[...])                  # (N, C)

    q_dst = _bdot(ohd, q)                                 # (E, C)
    logits = _bdot(q_dst * k, hmap_s_ref[...])            # (E, H)
    alpha = _segment_softmax(logits, ohd)                 # (E, H)
    # mean_h(scatter_sum(alpha*v*ew*rel_x)) == scatter_sum(mean_h(alpha*v)*ew*rel_x)
    coef = jnp.mean(alpha * v, axis=-1, keepdims=True) * e_w   # (E, 1)
    delta = _bdot_t(ohd, coef * relx_ref[...])            # (N, 3)
    # Fused position update: x + delta * mask_ligand.
    o_ref[...] = x_ref[...] + delta * mask_ref[...]


# ----------------------------------------------------------------------------
# pallas_call wrappers
# ----------------------------------------------------------------------------
_CPARAMS = pltpu.CompilerParams(
    dimension_semantics=("arbitrary",),
    vmem_limit_bytes=48 * 1024 * 1024,   # below v7x's 64 MiB physical VMEM
)


def _full_specs(args):
    return [pl.BlockSpec(a.shape, lambda i, nd=a.ndim: (0,) * nd) for a in args]


def _run_fused(kernel, args, out_shape):
    out_nd = len(out_shape.shape)
    return pl.pallas_call(
        kernel,
        grid=(1,),
        in_specs=_full_specs(args),
        out_specs=pl.BlockSpec(out_shape.shape, lambda i, nd=out_nd: (0,) * nd),
        out_shape=out_shape,
        compiler_params=_CPARAMS,
    )(*args)


# ----------------------------------------------------------------------------
# Parameter packing (wrapper side: bf16 pre-cast, ew-net fold, row splits)
# ----------------------------------------------------------------------------
def _prep_kv_params(pk, pv, ew_w, ew_b, ef_dim, rf_dim, hidden):
    """Pack k/v MLP first layers (+ folded ew_net column) and split by input
    block so the kernel can reconstruct kv_input @ W1 without the concat."""
    dkv = pk["w1"].shape[0]
    w1 = jnp.concatenate([pk["w1"], pv["w1"]], axis=1)            # (Dkv, 2*mh)
    ew_col = jnp.zeros((dkv, 1), F32).at[ef_dim:ef_dim + rf_dim, :].set(ew_w)
    w1 = jnp.concatenate([w1, ew_col], axis=1).astype(BF16)       # (Dkv, 2*mh+1)
    b1 = jnp.concatenate([pk["b1"], pv["b1"], ew_b], axis=1)      # (1, 2*mh+1) f32
    g = jnp.concatenate([pk["ln_g"], pv["ln_g"]], axis=1)         # (1, 2*mh)  f32
    be = jnp.concatenate([pk["ln_b"], pv["ln_b"]], axis=1)        # (1, 2*mh)  f32
    # kv_input row layout: [edge_feat(ef), r_feat(rf), h[dst](C), h[src](C)]
    w1_e = w1[:ef_dim]
    w1_r = w1[ef_dim:ef_dim + rf_dim]
    w1_hi = w1[ef_dim + rf_dim:ef_dim + rf_dim + hidden]
    w1_hj = w1[ef_dim + rf_dim + hidden:]
    return (w1_r, w1_e, w1_hi, w1_hj, b1, g, be,
            pk["w2"].astype(BF16), pk["b2"], pv["w2"].astype(BF16), pv["b2"])


def x2h_layer_apply(p, h, r_feat, edge_feat, ohd, ohs, hmap_s, hmap_t, ef_dim):
    n_nodes, hidden = h.shape
    rf_dim = r_feat.shape[1]
    kvp = _prep_kv_params(p["hk"], p["hv"], p["ew_w"], p["ew_b"],
                          ef_dim, rf_dim, hidden)
    q, o = p["hq"], p["node_out"]
    wo1 = o["w1"]
    args = (r_feat.astype(BF16), edge_feat.astype(BF16), h, ohd, ohs,
            hmap_s, hmap_t,
            *kvp,
            q["w1"].astype(BF16), q["b1"], q["ln_g"], q["ln_b"],
            q["w2"].astype(BF16), q["b2"],
            wo1[:hidden].astype(BF16), wo1[hidden:].astype(BF16), o["b1"],
            o["ln_g"], o["ln_b"], o["w2"].astype(BF16), o["b2"])
    out_shape = jax.ShapeDtypeStruct((n_nodes, hidden), F32)
    return _run_fused(_x2h_fused_kernel, args, out_shape)


def h2x_layer_apply(p, h, rel_x, r_feat, edge_feat, x, mask2d, ohd, ohs,
                    hmap_s, ef_dim):
    n_nodes, hidden = h.shape
    rf_dim = r_feat.shape[1]
    kvp = _prep_kv_params(p["xk"], p["xv"], p["ew_w"], p["ew_b"],
                          ef_dim, rf_dim, hidden)
    q = p["xq"]
    args = (r_feat.astype(BF16), edge_feat.astype(BF16), h, rel_x, x, mask2d,
            ohd, ohs, hmap_s,
            *kvp,
            q["w1"].astype(BF16), q["b1"], q["ln_g"], q["ln_b"],
            q["w2"].astype(BF16), q["b2"])
    out_shape = jax.ShapeDtypeStruct((n_nodes, 3), F32)
    return _run_fused(_h2x_fused_kernel, args, out_shape)


# ----------------------------------------------------------------------------
# Plain-JAX glue (feature prep, parameter init, forward pass)
# ----------------------------------------------------------------------------
def gaussian_smearing(dist, offsets, coeff):
    return jnp.exp(coeff * (dist - offsets[None, :]) ** 2)        # (E, num_gaussians)


def outer_product(a, b):
    e = a.shape[0]
    return (a[:, :, None] * b[:, None, :]).reshape(e, -1)


def init_mlp_params(key, din, dh, dout, scale=0.1):
    k1, k2 = jax.random.split(key)
    return {
        "w1": scale * jax.random.normal(k1, (din, dh), F32),
        "b1": jnp.zeros((1, dh), F32),
        "ln_g": jnp.ones((1, dh), F32),
        "ln_b": jnp.zeros((1, dh), F32),
        "w2": scale * jax.random.normal(k2, (dh, dout), F32),
        "b2": jnp.zeros((1, dout), F32),
    }


def init_params(key, hidden, n_heads, edge_feat_dim, num_r_gaussian,
                num_x2h, num_h2x):
    r_feat_dim = 4 * num_r_gaussian
    kv_dim = 2 * hidden + edge_feat_dim + r_feat_dim
    params = {"x2h": [], "h2x": []}
    keys = jax.random.split(key, num_x2h + num_h2x + 1)
    for i in range(num_x2h):
        ks = jax.random.split(keys[i], 5)
        params["x2h"].append({
            "hk": init_mlp_params(ks[0], kv_dim, hidden, hidden),
            "hv": init_mlp_params(ks[1], kv_dim, hidden, hidden),
            "hq": init_mlp_params(ks[2], hidden, hidden, hidden),
            "node_out": init_mlp_params(ks[3], 2 * hidden, hidden, hidden),
            "ew_w": 0.1 * jax.random.normal(ks[4], (r_feat_dim, 1), F32),
            "ew_b": jnp.zeros((1, 1), F32),
        })
    for i in range(num_h2x):
        ks = jax.random.split(keys[num_x2h + i], 4)
        params["h2x"].append({
            "xk": init_mlp_params(ks[0], kv_dim, hidden, hidden),
            "xv": init_mlp_params(ks[1], kv_dim, hidden, n_heads),
            "xq": init_mlp_params(ks[2], hidden, hidden, hidden),
            "ew_w": 0.1 * jax.random.normal(ks[3], (r_feat_dim, 1), F32),
            "ew_b": jnp.zeros((1, 1), F32),
        })
    return params


def attention_layer_forward(params, cfg, h, x, edge_attr, edge_index,
                            mask_ligand, fix_x=False):
    src, dst = edge_index[0], edge_index[1]
    n_nodes, hidden = h.shape
    n_heads = cfg["n_heads"]
    head_dim = hidden // n_heads
    ef_dim = cfg["edge_feat_dim"]
    assert ef_dim > 0, "TODO(synk): edge_feat_dim == 0 path not wired up"
    edge_feat = edge_attr

    # One-hots (bf16, exact 0/1) for MXU gather/scatter; head maps with
    # 1/sqrt(head_dim) folded into the logits map.
    ohd = jax.nn.one_hot(dst, n_nodes, dtype=BF16)                 # (E, N)
    ohs = jax.nn.one_hot(src, n_nodes, dtype=BF16)                 # (E, N)
    eye_rep = jnp.repeat(jnp.eye(n_heads, dtype=F32), head_dim, axis=0)  # (C, H)
    hmap_s = (eye_rep * (1.0 / (head_dim ** 0.5))).astype(BF16)    # (C, H) scaled
    hmap_t = eye_rep.T.astype(BF16)                                # (H, C)
    mask2d = mask_ligand[:, None].astype(F32)                      # (N, 1)

    rel_x = x[dst] - x[src]
    dist = jnp.sqrt(jnp.sum(rel_x ** 2, axis=-1, keepdims=True))
    # dist is constant across the x2h loop -> hoist r_feat out of it.
    dist_feat = gaussian_smearing(dist, cfg["gs_offsets"], cfg["gs_coeff"])
    r_feat = outer_product(edge_attr, dist_feat)

    h_in = h
    for i in range(cfg["num_x2h"]):
        h_in = x2h_layer_apply(params["x2h"][i], h_in, r_feat, edge_feat,
                               ohd, ohs, hmap_s, hmap_t, ef_dim)
    x2h_out = h_in
    new_h = h if cfg["sync_twoup"] else x2h_out

    for i in range(cfg["num_h2x"]):
        x_new = h2x_layer_apply(params["h2x"][i], new_h, rel_x, r_feat, edge_feat,
                                x, mask2d, ohd, ohs, hmap_s, ef_dim)
        if not fix_x:
            x = x_new
        rel_x = x[dst] - x[src]
        dist = jnp.sqrt(jnp.sum(rel_x ** 2, axis=-1, keepdims=True))
        if i + 1 < cfg["num_h2x"]:   # only recompute r_feat if another layer runs
            dist_feat = gaussian_smearing(dist, cfg["gs_offsets"], cfg["gs_coeff"])
            r_feat = outer_product(edge_attr, dist_feat)

    return x2h_out, x


if __name__ == "__main__":
    key = jax.random.PRNGKey(0)

    # Small, module-consistent shapes.
    hidden_dim = 32
    n_heads = 4
    num_r_gaussian = 8
    edge_feat_dim = 4            # r_feat_dim = 4 * num_r_gaussian
    num_x2h, num_h2x = 1, 1
    r_min, r_max = 0.0, 10.0
    N, E = 16, 48

    k_param, k_h, k_x, k_ea, k_src, k_dst = jax.random.split(key, 6)

    offsets = jnp.linspace(r_min, r_max, num_r_gaussian)
    coeff = -0.5 / (offsets[1] - offsets[0]) ** 2
    cfg = {
        "hidden_dim": hidden_dim,
        "n_heads": n_heads,
        "edge_feat_dim": edge_feat_dim,
        "num_x2h": num_x2h,
        "num_h2x": num_h2x,
        "sync_twoup": False,
        "gs_offsets": offsets,
        "gs_coeff": coeff,
    }

    params = init_params(k_param, hidden_dim, n_heads, edge_feat_dim,
                         num_r_gaussian, num_x2h, num_h2x)

    h = 0.1 * jax.random.normal(k_h, (N, hidden_dim), F32)
    x = jax.random.normal(k_x, (N, 3), F32)
    edge_attr = jax.nn.one_hot(
        jax.random.randint(k_ea, (E,), 0, edge_feat_dim), edge_feat_dim, dtype=F32)
    src = jax.random.randint(k_src, (E,), 0, N)
    dst = jax.random.randint(k_dst, (E,), 0, N)
    edge_index = jnp.stack([src, dst], axis=0)
    mask_ligand = (jnp.arange(N) < N // 2).astype(F32)

    forward = jax.jit(
        lambda p, hh, xx, ea, ei, ml: attention_layer_forward(
            p, cfg, hh, xx, ea, ei, ml, fix_x=False))

    x2h_out, x_out = forward(params, h, x, edge_attr, edge_index, mask_ligand)
    jax.block_until_ready((x2h_out, x_out))

    assert x2h_out.shape == (N, hidden_dim) and x_out.shape == (N, 3)
    assert bool(jnp.all(jnp.isfinite(x2h_out))) and bool(jnp.all(jnp.isfinite(x_out)))
    print("KERNEL_OK")
</pallas_src>

<mosaic_0001>
module attributes {stable_mosaic.version = 11 : i64} {
  func.func @_h2x_fused_kernel(%arg0: i32, %arg1: memref<48x32xbf16, #tpu.memory_space<vmem>>, %arg2: memref<48x4xbf16, #tpu.memory_space<vmem>>, %arg3: memref<16x32xf32, #tpu.memory_space<vmem>>, %arg4: memref<48x3xf32, #tpu.memory_space<vmem>>, %arg5: memref<16x3xf32, #tpu.memory_space<vmem>>, %arg6: memref<16x1xf32, #tpu.memory_space<vmem>>, %arg7: memref<48x16xbf16, #tpu.memory_space<vmem>>, %arg8: memref<48x16xbf16, #tpu.memory_space<vmem>>, %arg9: memref<32x4xbf16, #tpu.memory_space<vmem>>, %arg10: memref<32x65xbf16, #tpu.memory_space<vmem>>, %arg11: memref<4x65xbf16, #tpu.memory_space<vmem>>, %arg12: memref<32x65xbf16, #tpu.memory_space<vmem>>, %arg13: memref<32x65xbf16, #tpu.memory_space<vmem>>, %arg14: memref<1x65xf32, #tpu.memory_space<vmem>>, %arg15: memref<1x64xf32, #tpu.memory_space<vmem>>, %arg16: memref<1x64xf32, #tpu.memory_space<vmem>>, %arg17: memref<32x32xbf16, #tpu.memory_space<vmem>>, %arg18: memref<1x32xf32, #tpu.memory_space<vmem>>, %arg19: memref<32x4xbf16, #tpu.memory_space<vmem>>, %arg20: memref<1x4xf32, #tpu.memory_space<vmem>>, %arg21: memref<32x32xbf16, #tpu.memory_space<vmem>>, %arg22: memref<1x32xf32, #tpu.memory_space<vmem>>, %arg23: memref<1x32xf32, #tpu.memory_space<vmem>>, %arg24: memref<1x32xf32, #tpu.memory_space<vmem>>, %arg25: memref<32x32xbf16, #tpu.memory_space<vmem>>, %arg26: memref<1x32xf32, #tpu.memory_space<vmem>>, %arg27: memref<16x3xf32, #tpu.memory_space<vmem>>) attributes {dimension_semantics = [#tpu.dimension_semantics<arbitrary>], iteration_bounds = array<i64: 1>, scalar_prefetch = 0 : i64, scratch_operands = 0 : i64, tpu.core_type = #tpu.core_type<tc>, window_params = [{pipeline_mode = #tpu.pipeline_mode<synchronous>, transform_indices = @transform_0, window_bounds = array<i64: 48, 32>}, {pipeline_mode = #tpu.pipeline_mode<synchronous>, transform_indices = @transform_1, window_bounds = array<i64: 48, 4>}, {pipeline_mode = #tpu.pipeline_mode<synchronous>, transform_indices = @transform_2, window_bounds = array<i64: 16, 32>}, {pipeline_mode = #tpu.pipeline_mode<synchronous>, transform_indices = @transform_3, window_bounds = array<i64: 48, 3>}, {pipeline_mode = #tpu.pipeline_mode<synchronous>, transform_indices = @transform_4, window_bounds = array<i64: 16, 3>}, {pipeline_mode = #tpu.pipeline_mode<synchronous>, transform_indices = @transform_5, window_bounds = array<i64: 16, 1>}, {pipeline_mode = #tpu.pipeline_mode<synchronous>, transform_indices = @transform_6, window_bounds = array<i64: 48, 16>}, {pipeline_mode = #tpu.pipeline_mode<synchronous>, transform_indices = @transform_7, window_bounds = array<i64: 48, 16>}, {pipeline_mode = #tpu.pipeline_mode<synchronous>, transform_indices = @transform_8, window_bounds = array<i64: 32, 4>}, {pipeline_mode = #tpu.pipeline_mode<synchronous>, transform_indices = @transform_9, window_bounds = array<i64: 32, 65>}, {pipeline_mode = #tpu.pipeline_mode<synchronous>, transform_indices = @transform_10, window_bounds = array<i64: 4, 65>}, {pipeline_mode = #tpu.pipeline_mode<synchronous>, transform_indices = @transform_11, window_bounds = array<i64: 32, 65>}, {pipeline_mode = #tpu.pipeline_mode<synchronous>, transform_indices = @transform_12, window_bounds = array<i64: 32, 65>}, {pipeline_mode = #tpu.pipeline_mode<synchronous>, transform_indices = @transform_13, window_bounds = array<i64: 1, 65>}, {pipeline_mode = #tpu.pipeline_mode<synchronous>, transform_indices = @transform_14, window_bounds = array<i64: 1, 64>}, {pipeline_mode = #tpu.pipeline_mode<synchronous>, transform_indices = @transform_15, window_bounds = array<i64: 1, 64>}, {pipeline_mode = #tpu.pipeline_mode<synchronous>, transform_indices = @transform_16, window_bounds = array<i64: 32, 32>}, {pipeline_mode = #tpu.pipeline_mode<synchronous>, transform_indices = @transform_17, window_bounds = array<i64: 1, 32>}, {pipeline_mode = #tpu.pipeline_mode<synchronous>, transform_indices = @transform_18, window_bounds = array<i64: 32, 4>}, {pipeline_mode = #tpu.pipeline_mode<synchronous>, transform_indices = @transform_19, window_bounds = array<i64: 1, 4>}, {pipeline_mode = #tpu.pipeline_mode<synchronous>, transform_indices = @transform_20, window_bounds = array<i64: 32, 32>}, {pipeline_mode = #tpu.pipeline_mode<synchronous>, transform_indices = @transform_21, window_bounds = array<i64: 1, 32>}, {pipeline_mode = #tpu.pipeline_mode<synchronous>, transform_indices = @transform_22, window_bounds = array<i64: 1, 32>}, {pipeline_mode = #tpu.pipeline_mode<synchronous>, transform_indices = @transform_23, window_bounds = array<i64: 1, 32>}, {pipeline_mode = #tpu.pipeline_mode<synchronous>, transform_indices = @transform_24, window_bounds = array<i64: 32, 32>}, {pipeline_mode = #tpu.pipeline_mode<synchronous>, transform_indices = @transform_25, window_bounds = array<i64: 1, 32>}, {pipeline_mode = #tpu.pipeline_mode<synchronous>, transform_indices = @transform_26, window_bounds = array<i64: 16, 3>}]} {
    %c0 = arith.constant 0 : index
    %c0_0 = arith.constant 0 : index
    %0 = vector.load %arg3[%c0, %c0_0] : memref<16x32xf32, #tpu.memory_space<vmem>>, vector<16x32xf32>
    %c0_1 = arith.constant 0 : index
    %c0_2 = arith.constant 0 : index
    %1 = vector.load %arg7[%c0_1, %c0_2] : memref<48x16xbf16, #tpu.memory_space<vmem>>, vector<48x16xbf16>
    %c0_3 = arith.constant 0 : index
    %c0_4 = arith.constant 0 : index
    %2 = vector.load %arg1[%c0_3, %c0_4] : memref<48x32xbf16, #tpu.memory_space<vmem>>, vector<48x32xbf16>
    %c0_5 = arith.constant 0 : index
    %c0_6 = arith.constant 0 : index
    %3 = vector.load %arg2[%c0_5, %c0_6] : memref<48x4xbf16, #tpu.memory_space<vmem>>, vector<48x4xbf16>
    %c0_7 = arith.constant 0 : index
    %c0_8 = arith.constant 0 : index
    %4 = vector.load %arg8[%c0_7, %c0_8] : memref<48x16xbf16, #tpu.memory_space<vmem>>, vector<48x16xbf16>
    %c0_9 = arith.constant 0 : index
    %c0_10 = arith.constant 0 : index
    %5 = vector.load %arg10[%c0_9, %c0_10] : memref<32x65xbf16, #tpu.memory_space<vmem>>, vector<32x65xbf16>
    %c0_11 = arith.constant 0 : index
    %c0_12 = arith.constant 0 : index
    %6 = vector.load %arg11[%c0_11, %c0_12] : memref<4x65xbf16, #tpu.memory_space<vmem>>, vector<4x65xbf16>
    %c0_13 = arith.constant 0 : index
    %c0_14 = arith.constant 0 : index
    %7 = vector.load %arg12[%c0_13, %c0_14] : memref<32x65xbf16, #tpu.memory_space<vmem>>, vector<32x65xbf16>
    %c0_15 = arith.constant 0 : index
    %c0_16 = arith.constant 0 : index
    %8 = vector.load %arg13[%c0_15, %c0_16] : memref<32x65xbf16, #tpu.memory_space<vmem>>, vector<32x65xbf16>
    %c0_17 = arith.constant 0 : index
    %c0_18 = arith.constant 0 : index
    %9 = vector.load %arg14[%c0_17, %c0_18] : memref<1x65xf32, #tpu.memory_space<vmem>>, vector<1x65xf32>
    %10 = arith.truncf %0 : vector<16x32xf32> to vector<16x32xbf16>
    %cst = arith.constant dense<0.000000e+00> : vector<16x65xf32>
    %11 = tpu.matmul %10, %7, %cst {dimension_numbers = #tpu.dot_dimension_numbers<[1], [0], [0], [1], [0, 0, 1, 1], [], []>} : vector<16x32xbf16>, vector<32x65xbf16>, vector<16x65xf32> -> vector<16x65xf32>
    %12 = arith.truncf %0 : vector<16x32xf32> to vector<16x32xbf16>
    %cst_19 = arith.constant dense<0.000000e+00> : vector<16x65xf32>
    %13 = tpu.matmul %12, %8, %cst_19 {dimension_numbers = #tpu.dot_dimension_numbers<[1], [0], [0], [1], [0, 0, 1, 1], [], []>} : vector<16x32xbf16>, vector<32x65xbf16>, vector<16x65xf32> -> vector<16x65xf32>
    %cst_20 = arith.constant dense<0.000000e+00> : vector<48x65xf32>
    %14 = tpu.matmul %2, %5, %cst_20 {dimension_numbers = #tpu.dot_dimension_numbers<[1], [0], [0], [1], [0, 0, 1, 1], [], []>} : vector<48x32xbf16>, vector<32x65xbf16>, vector<48x65xf32> -> vector<48x65xf32>
    %cst_21 = arith.constant dense<0.000000e+00> : vector<48x65xf32>
    %15 = tpu.matmul %3, %6, %cst_21 {dimension_numbers = #tpu.dot_dimension_numbers<[1], [0], [0], [1], [0, 0, 1, 1], [], []>} : vector<48x4xbf16>, vector<4x65xbf16>, vector<48x65xf32> -> vector<48x65xf32>
    %16 = arith.addf %14, %15 : vector<48x65xf32>
    %17 = arith.truncf %11 : vector<16x65xf32> to vector<16x65xbf16>
    %cst_22 = arith.constant dense<0.000000e+00> : vector<48x65xf32>
    %18 = tpu.matmul %1, %17, %cst_22 {dimension_numbers = #tpu.dot_dimension_numbers<[1], [0], [0], [1], [0, 0, 1, 1], [], []>} : vector<48x16xbf16>, vector<16x65xbf16>, vector<48x65xf32> -> vector<48x65xf32>
    %19 = arith.addf %16, %18 : vector<48x65xf32>
    %20 = arith.truncf %13 : vector<16x65xf32> to vector<16x65xbf16>
    %cst_23 = arith.constant dense<0.000000e+00> : vector<48x65xf32>
    %21 = tpu.matmul %4, %20, %cst_23 {dimension_numbers = #tpu.dot_dimension_numbers<[1], [0], [0], [1], [0, 0, 1, 1], [], []>} : vector<48x16xbf16>, vector<16x65xbf16>, vector<48x65xf32> -> vector<48x65xf32>
    %22 = arith.addf %19, %21 : vector<48x65xf32>
    %23 = vector.broadcast %9 : vector<1x65xf32> to vector<48x65xf32>
    %24 = arith.addf %22, %23 : vector<48x65xf32>
    %c0_24 = arith.constant 0 : index
    %c0_25 = arith.constant 0 : index
    %25 = vector.load %arg15[%c0_24, %c0_25] : memref<1x64xf32, #tpu.memory_space<vmem>>, vector<1x64xf32>
    %c0_26 = arith.constant 0 : index
    %c0_27 = arith.constant 0 : index
    %26 = vector.load %arg16[%c0_26, %c0_27] : memref<1x64xf32, #tpu.memory_space<vmem>>, vector<1x64xf32>
    %c0_28 = arith.constant 0 : index
    %c0_29 = arith.constant 0 : index
    %27 = vector.load %arg17[%c0_28, %c0_29] : memref<32x32xbf16, #tpu.memory_space<vmem>>, vector<32x32xbf16>
    %c0_30 = arith.constant 0 : index
    %c0_31 = arith.constant 0 : index
    %28 = vector.load %arg18[%c0_30, %c0_31] : memref<1x32xf32, #tpu.memory_space<vmem>>, vector<1x32xf32>
    %c0_32 = arith.constant 0 : index
    %c0_33 = arith.constant 0 : index
    %29 = vector.load %arg19[%c0_32, %c0_33] : memref<32x4xbf16, #tpu.memory_space<vmem>>, vector<32x4xbf16>
    %c0_34 = arith.constant 0 : index
    %c0_35 = arith.constant 0 : index
    %30 = vector.load %arg20[%c0_34, %c0_35] : memref<1x4xf32, #tpu.memory_space<vmem>>, vector<1x4xf32>
    %31 = vector.extract_strided_slice %24 {offsets = [0, 0], sizes = [48, 32], strides = [1, 1]} : vector<48x65xf32> to vector<48x32xf32>
    %32 = vector.extract_strided_slice %25 {offsets = [0, 0], sizes = [1, 32], strides = [1, 1]} : vector<1x64xf32> to vector<1x32xf32>
    %33 = vector.extract_strided_slice %26 {offsets = [0, 0], sizes = [1, 32], strides = [1, 1]} : vector<1x64xf32> to vector<1x32xf32>
    %cst_36 = arith.constant dense<0.000000e+00> : vector<48xf32>
    %34 = vector.multi_reduction <add>, %31, %cst_36 [1] : vector<48x32xf32> to vector<48xf32>
    %35 = vector.shape_cast %34 : vector<48xf32> to vector<48x1xf32>
    %cst_37 = arith.constant 3.200000e+01 : f32
    %36 = vector.broadcast %cst_37 : f32 to vector<48x1xf32>
    %37 = arith.divf %35, %36 : vector<48x1xf32>
    %38 = vector.broadcast %37 : vector<48x1xf32> to vector<48x32xf32>
    %39 = arith.subf %31, %38 : vector<48x32xf32>
    %40 = arith.mulf %39, %39 : vector<48x32xf32>
    %cst_38 = arith.constant dense<0.000000e+00> : vector<48xf32>
    %41 = vector.multi_reduction <add>, %40, %cst_38 [1] : vector<48x32xf32> to vector<48xf32>
    %42 = vector.shape_cast %41 : vector<48xf32> to vector<48x1xf32>
    %cst_39 = arith.constant 3.200000e+01 : f32
    %43 = vector.broadcast %cst_39 : f32 to vector<48x1xf32>
    %44 = arith.divf %42, %43 : vector<48x1xf32>
    %45 = vector.broadcast %37 : vector<48x1xf32> to vector<48x32xf32>
    %46 = arith.subf %31, %45 : vector<48x32xf32>
    %cst_40 = arith.constant 9.99999974E-6 : f32
    %47 = vector.broadcast %cst_40 : f32 to vector<48x1xf32>
    %48 = arith.addf %44, %47 : vector<48x1xf32>
    %49 = math.rsqrt %48 : vector<48x1xf32>
    %50 = vector.broadcast %49 : vector<48x1xf32> to vector<48x32xf32>
    %51 = arith.mulf %46, %50 : vector<48x32xf32>
    %52 = vector.broadcast %32 : vector<1x32xf32> to vector<48x32xf32>
    %53 = arith.mulf %51, %52 : vector<48x32xf32>
    %54 = vector.broadcast %33 : vector<1x32xf32> to vector<48x32xf32>
    %55 = arith.addf %53, %54 : vector<48x32xf32>
    %cst_41 = arith.constant 0.000000e+00 : f32
    %56 = vector.broadcast %cst_41 : f32 to vector<48x32xf32>
    %57 = arith.maximumf %55, %56 : vector<48x32xf32>
    %58 = vector.extract_strided_slice %24 {offsets = [0, 32], sizes = [48, 32], strides = [1, 1]} : vector<48x65xf32> to vector<48x32xf32>
    %59 = vector.extract_strided_slice %25 {offsets = [0, 32], sizes = [1, 32], strides = [1, 1]} : vector<1x64xf32> to vector<1x32xf32>
    %60 = vector.extract_strided_slice %26 {offsets = [0, 32], sizes = [1, 32], strides = [1, 1]} : vector<1x64xf32> to vector<1x32xf32>
    %cst_42 = arith.constant dense<0.000000e+00> : vector<48xf32>
    %61 = vector.multi_reduction <add>, %58, %cst_42 [1] : vector<48x32xf32> to vector<48xf32>
    %62 = vector.shape_cast %61 : vector<48xf32> to vector<48x1xf32>
    %cst_43 = arith.constant 3.200000e+01 : f32
    %63 = vector.broadcast %cst_43 : f32 to vector<48x1xf32>
    %64 = arith.divf %62, %63 : vector<48x1xf32>
    %65 = vector.broadcast %64 : vector<48x1xf32> to vector<48x32xf32>
    %66 = arith.subf %58, %65 : vector<48x32xf32>
    %67 = arith.mulf %66, %66 : vector<48x32xf32>
    %cst_44 = arith.constant dense<0.000000e+00> : vector<48xf32>
    %68 = vector.multi_reduction <add>, %67, %cst_44 [1] : vector<48x32xf32> to vector<48xf32>
    %69 = vector.shape_cast %68 : vector<48xf32> to vector<48x1xf32>
    %cst_45 = arith.constant 3.200000e+01 : f32
    %70 = vector.broadcast %cst_45 : f32 to vector<48x1xf32>
    %71 = arith.divf %69, %70 : vector<48x1xf32>
    %72 = vector.broadcast %64 : vector<48x1xf32> to vector<48x32xf32>
    %73 = arith.subf %58, %72 : vector<48x32xf32>
    %cst_46 = arith.constant 9.99999974E-6 : f32
    %74 = vector.broadcast %cst_46 : f32 to vector<48x1xf32>
    %75 = arith.addf %71, %74 : vector<48x1xf32>
    %76 = math.rsqrt %75 : vector<48x1xf32>
    %77 = vector.broadcast %76 : vector<48x1xf32> to vector<48x32xf32>
    %78 = arith.mulf %73, %77 : vector<48x32xf32>
    %79 = vector.broadcast %59 : vector<1x32xf32> to vector<48x32xf32>
    %80 = arith.mulf %78, %79 : vector<48x32xf32>
    %81 = vector.broadcast %60 : vector<1x32xf32> to vector<48x32xf32>
    %82 = arith.addf %80, %81 : vector<48x32xf32>
    %cst_47 = arith.constant 0.000000e+00 : f32
    %83 = vector.broadcast %cst_47 : f32 to vector<48x32xf32>
    %84 = arith.maximumf %82, %83 : vector<48x32xf32>
    %85 = vector.extract_strided_slice %24 {offsets = [0, 64], sizes = [48, 1], strides = [1, 1]} : vector<48x65xf32> to vector<48x1xf32>
    %86 = arith.negf %85 : vector<48x1xf32>
    %87 = math.exp %86 : vector<48x1xf32>
    %cst_48 = arith.constant 1.000000e+00 : f32
    %88 = vector.broadcast %cst_48 : f32 to vector<48x1xf32>
    %89 = arith.addf %88, %87 : vector<48x1xf32>
    %90 = arith.divf %88, %89 : vector<48x1xf32>
    %91 = arith.truncf %57 : vector<48x32xf32> to vector<48x32xbf16>
    %cst_49 = arith.constant dense<0.000000e+00> : vector<48x32xf32>
    %92 = tpu.matmul %91, %27, %cst_49 {dimension_numbers = #tpu.dot_dimension_numbers<[1], [0], [0], [1], [0, 0, 1, 1], [], []>} : vector<48x32xbf16>, vector<32x32xbf16>, vector<48x32xf32> -> vector<48x32xf32>
    %93 = vector.broadcast %28 : vector<1x32xf32> to vector<48x32xf32>
    %94 = arith.addf %92, %93 : vector<48x32xf32>
    %95 = arith.truncf %84 : vector<48x32xf32> to vector<48x32xbf16>
    %cst_50 = arith.constant dense<0.000000e+00> : vector<48x4xf32>
    %96 = tpu.matmul %95, %29, %cst_50 {dimension_numbers = #tpu.dot_dimension_numbers<[1], [0], [0], [1], [0, 0, 1, 1], [], []>} : vector<48x32xbf16>, vector<32x4xbf16>, vector<48x4xf32> -> vector<48x4xf32>
    %97 = vector.broadcast %30 : vector<1x4xf32> to vector<48x4xf32>
    %98 = arith.addf %96, %97 : vector<48x4xf32>
    %c0_51 = arith.constant 0 : index
    %c0_52 = arith.constant 0 : index
    %99 = vector.load %arg21[%c0_51, %c0_52] : memref<32x32xbf16, #tpu.memory_space<vmem>>, vector<32x32xbf16>
    %c0_53 = arith.constant 0 : index
    %c0_54 = arith.constant 0 : index
    %100 = vector.load %arg22[%c0_53, %c0_54] : memref<1x32xf32, #tpu.memory_space<vmem>>, vector<1x32xf32>
    %c0_55 = arith.constant 0 : index
    %c0_56 = arith.constant 0 : index
    %101 = vector.load %arg23[%c0_55, %c0_56] : memref<1x32xf32, #tpu.memory_space<vmem>>, vector<1x32xf32>
    %c0_57 = arith.constant 0 : index
    %c0_58 = arith.constant 0 : index
    %102 = vector.load %arg24[%c0_57, %c0_58] : memref<1x32xf32, #tpu.memory_space<vmem>>, vector<1x32xf32>
    %c0_59 = arith.constant 0 : index
    %c0_60 = arith.constant 0 : index
    %103 = vector.load %arg25[%c0_59, %c0_60] : memref<32x32xbf16, #tpu.memory_space<vmem>>, vector<32x32xbf16>
    %c0_61 = arith.constant 0 : index
    %c0_62 = arith.constant 0 : index
    %104 = vector.load %arg26[%c0_61, %c0_62] : memref<1x32xf32, #tpu.memory_space<vmem>>, vector<1x32xf32>
    %105 = arith.truncf %0 : vector<16x32xf32> to vector<16x32xbf16>
    %cst_63 = arith.constant dense<0.000000e+00> : vector<16x32xf32>
    %106 = tpu.matmul %105, %99, %cst_63 {dimension_numbers = #tpu.dot_dimension_numbers<[1], [0], [0], [1], [0, 0, 1, 1], [], []>} : vector<16x32xbf16>, vector<32x32xbf16>, vector<16x32xf32> -> vector<16x32xf32>
    %107 = vector.broadcast %100 : vector<1x32xf32> to vector<16x32xf32>
    %108 = arith.addf %106, %107 : vector<16x32xf32>
    %cst_64 = arith.constant dense<0.000000e+00> : vector<16xf32>
    %109 = vector.multi_reduction <add>, %108, %cst_64 [1] : vector<16x32xf32> to vector<16xf32>
    %110 = vector.shape_cast %109 : vector<16xf32> to vector<16x1xf32>
    %cst_65 = arith.constant 3.200000e+01 : f32
    %111 = vector.broadcast %cst_65 : f32 to vector<16x1xf32>
    %112 = arith.divf %110, %111 : vector<16x1xf32>
    %113 = vector.broadcast %112 : vector<16x1xf32> to vector<16x32xf32>
    %114 = arith.subf %108, %113 : vector<16x32xf32>
    %115 = arith.mulf %114, %114 : vector<16x32xf32>
    %cst_66 = arith.constant dense<0.000000e+00> : vector<16xf32>
    %116 = vector.multi_reduction <add>, %115, %cst_66 [1] : vector<16x32xf32> to vector<16xf32>
    %117 = vector.shape_cast %116 : vector<16xf32> to vector<16x1xf32>
    %cst_67 = arith.constant 3.200000e+01 : f32
    %118 = vector.broadcast %cst_67 : f32 to vector<16x1xf32>
    %119 = arith.divf %117, %118 : vector<16x1xf32>
    %120 = vector.broadcast %112 : vector<16x1xf32> to vector<16x32xf32>
    %121 = arith.subf %108, %120 : vector<16x32xf32>
    %cst_68 = arith.constant 9.99999974E-6 : f32
    %122 = vector.broadcast %cst_68 : f32 to vector<16x1xf32>
    %123 = arith.addf %119, %122 : vector<16x1xf32>
    %124 = math.rsqrt %123 : vector<16x1xf32>
    %125 = vector.broadcast %124 : vector<16x1xf32> to vector<16x32xf32>
    %126 = arith.mulf %121, %125 : vector<16x32xf32>
    %127 = vector.broadcast %101 : vector<1x32xf32> to vector<16x32xf32>
    %128 = arith.mulf %126, %127 : vector<16x32xf32>
    %129 = vector.broadcast %102 : vector<1x32xf32> to vector<16x32xf32>
    %130 = arith.addf %128, %129 : vector<16x32xf32>
    %cst_69 = arith.constant 0.000000e+00 : f32
    %131 = vector.broadcast %cst_69 : f32 to vector<16x32xf32>
    %132 = arith.maximumf %130, %131 : vector<16x32xf32>
    %133 = arith.truncf %132 : vector<16x32xf32> to vector<16x32xbf16>
    %cst_70 = arith.constant dense<0.000000e+00> : vector<16x32xf32>
    %134 = tpu.matmul %133, %103, %cst_70 {dimension_numbers = #tpu.dot_dimension_numbers<[1], [0], [0], [1], [0, 0, 1, 1], [], []>} : vector<16x32xbf16>, vector<32x32xbf16>, vector<16x32xf32> -> vector<16x32xf32>
    %135 = vector.broadcast %104 : vector<1x32xf32> to vector<16x32xf32>
    %136 = arith.addf %134, %135 : vector<16x32xf32>
    %137 = arith.truncf %136 : vector<16x32xf32> to vector<16x32xbf16>
    %cst_71 = arith.constant dense<0.000000e+00> : vector<48x32xf32>
    %138 = tpu.matmul %1, %137, %cst_71 {dimension_numbers = #tpu.dot_dimension_numbers<[1], [0], [0], [1], [0, 0, 1, 1], [], []>} : vector<48x16xbf16>, vector<16x32xbf16>, vector<48x32xf32> -> vector<48x32xf32>
    %139 = arith.mulf %138, %94 : vector<48x32xf32>
    %c0_72 = arith.constant 0 : index
    %c0_73 = arith.constant 0 : index
    %140 = vector.load %arg9[%c0_72, %c0_73] : memref<32x4xbf16, #tpu.memory_space<vmem>>, vector<32x4xbf16>
    %141 = arith.truncf %139 : vector<48x32xf32> to vector<48x32xbf16>
    %cst_74 = arith.constant dense<0.000000e+00> : vector<48x4xf32>
    %142 = tpu.matmul %141, %140, %cst_74 {dimension_numbers = #tpu.dot_dimension_numbers<[1], [0], [0], [1], [0, 0, 1, 1], [], []>} : vector<48x32xbf16>, vector<32x4xbf16>, vector<48x4xf32> -> vector<48x4xf32>
    %143 = arith.extf %1 : vector<48x16xbf16> to vector<48x16xf32>
    %cst_75 = arith.constant 1.000000e+00 : f32
    %144 = vector.broadcast %cst_75 : f32 to vector<48x16xf32>
    %145 = arith.subf %143, %144 : vector<48x16xf32>
    %cst_76 = arith.constant 1.000000e+30 : f32
    %146 = vector.broadcast %cst_76 : f32 to vector<48x16xf32>
    %147 = arith.mulf %145, %146 : vector<48x16xf32>
    %148 = vector.extract_strided_slice %142 {offsets = [0, 0], sizes = [48, 1], strides = [1, 1]} : vector<48x4xf32> to vector<48x1xf32>
    %149 = vector.broadcast %148 : vector<48x1xf32> to vector<48x16xf32>
    %150 = arith.addf %149, %147 : vector<48x16xf32>
    %cst_77 = arith.constant dense<0xFF800000> : vector<16xf32>
    %151 = vector.multi_reduction <maximumf>, %150, %cst_77 [0] : vector<48x16xf32> to vector<16xf32>
    %152 = vector.shape_cast %151 : vector<16xf32> to vector<1x16xf32>
    %153 = vector.extract_strided_slice %142 {offsets = [0, 1], sizes = [48, 1], strides = [1, 1]} : vector<48x4xf32> to vector<48x1xf32>
    %154 = vector.broadcast %153 : vector<48x1xf32> to vector<48x16xf32>
    %155 = arith.addf %154, %147 : vector<48x16xf32>
    %cst_78 = arith.constant dense<0xFF800000> : vector<16xf32>
    %156 = vector.multi_reduction <maximumf>, %155, %cst_78 [0] : vector<48x16xf32> to vector<16xf32>
    %157 = vector.shape_cast %156 : vector<16xf32> to vector<1x16xf32>
    %158 = vector.extract_strided_slice %142 {offsets = [0, 2], sizes = [48, 1], strides = [1, 1]} : vector<48x4xf32> to vector<48x1xf32>
    %159 = vector.broadcast %158 : vector<48x1xf32> to vector<48x16xf32>
    %160 = arith.addf %159, %147 : vector<48x16xf32>
    %cst_79 = arith.constant dense<0xFF800000> : vector<16xf32>
    %161 = vector.multi_reduction <maximumf>, %160, %cst_79 [0] : vector<48x16xf32> to vector<16xf32>
    %162 = vector.shape_cast %161 : vector<16xf32> to vector<1x16xf32>
    %163 = vector.extract_strided_slice %142 {offsets = [0, 3], sizes = [48, 1], strides = [1, 1]} : vector<48x4xf32> to vector<48x1xf32>
    %164 = vector.broadcast %163 : vector<48x1xf32> to vector<48x16xf32>
    %165 = arith.addf %164, %147 : vector<48x16xf32>
    %cst_80 = arith.constant dense<0xFF800000> : vector<16xf32>
    %166 = vector.multi_reduction <maximumf>, %165, %cst_80 [0] : vector<48x16xf32> to vector<16xf32>
    %167 = vector.shape_cast %166 : vector<16xf32> to vector<1x16xf32>
    %168 = tpu.concatenate %152, %157, %162, %167 in 0 : vector<1x16xf32>, vector<1x16xf32>, vector<1x16xf32>, vector<1x16xf32> -> vector<4x16xf32>
    %169 = arith.truncf %168 : vector<4x16xf32> to vector<4x16xbf16>
    %cst_81 = arith.constant dense<0.000000e+00> : vector<48x4xf32>
    %170 = tpu.matmul %1, %169, %cst_81 {dimension_numbers = #tpu.dot_dimension_numbers<[1], [1], [0], [0], [0, 0, 1, 0], [], []>} : vector<48x16xbf16>, vector<4x16xbf16>, vector<48x4xf32> -> vector<48x4xf32>
    %171 = arith.subf %142, %170 : vector<48x4xf32>
    %172 = math.exp %171 : vector<48x4xf32>
    %173 = arith.truncf %172 : vector<48x4xf32> to vector<48x4xbf16>
    %cst_82 = arith.constant dense<0.000000e+00> : vector<16x4xf32>
    %174 = tpu.matmul %1, %173, %cst_82 {dimension_numbers = #tpu.dot_dimension_numbers<[0], [0], [1], [1], [0, 1, 1, 1], [], []>} : vector<48x16xbf16>, vector<48x4xbf16>, vector<16x4xf32> -> vector<16x4xf32>
    %cst_83 = arith.constant 9.99999997E-7 : f32
    %175 = vector.broadcast %cst_83 : f32 to vector<16x4xf32>
    %176 = arith.maximumf %174, %175 : vector<16x4xf32>
    %177 = tpu.reciprocal %176 {approx = true} : vector<16x4xf32> -> vector<16x4xf32>
    %178 = arith.truncf %177 : vector<16x4xf32> to vector<16x4xbf16>
    %cst_84 = arith.constant dense<0.000000e+00> : vector<48x4xf32>
    %179 = tpu.matmul %1, %178, %cst_84 {dimension_numbers = #tpu.dot_dimension_numbers<[1], [0], [0], [1], [0, 0, 1, 1], [], []>} : vector<48x16xbf16>, vector<16x4xbf16>, vector<48x4xf32> -> vector<48x4xf32>
    %180 = arith.mulf %172, %179 : vector<48x4xf32>
    %181 = arith.mulf %180, %98 : vector<48x4xf32>
    %cst_85 = arith.constant dense<0.000000e+00> : vector<48xf32>
    %182 = vector.multi_reduction <add>, %181, %cst_85 [1] : vector<48x4xf32> to vector<48xf32>
    %183 = vector.shape_cast %182 : vector<48xf32> to vector<48x1xf32>
    %cst_86 = arith.constant 4.000000e+00 : f32
    %184 = vector.broadcast %cst_86 : f32 to vector<48x1xf32>
    %185 = arith.divf %183, %184 : vector<48x1xf32>
    %186 = arith.mulf %185, %90 : vector<48x1xf32>
    %c0_87 = arith.constant 0 : index
    %c0_88 = arith.constant 0 : index
    %187 = vector.load %arg4[%c0_87, %c0_88] : memref<48x3xf32, #tpu.memory_space<vmem>>, vector<48x3xf32>
    %188 = vector.broadcast %186 : vector<48x1xf32> to vector<48x3xf32>
    %189 = arith.mulf %188, %187 : vector<48x3xf32>
    %190 = arith.truncf %189 : vector<48x3xf32> to vector<48x3xbf16>
    %cst_89 = arith.constant dense<0.000000e+00> : vector<16x3xf32>
    %191 = tpu.matmul %1, %190, %cst_89 {dimension_numbers = #tpu.dot_dimension_numbers<[0], [0], [1], [1], [0, 1, 1, 1], [], []>} : vector<48x16xbf16>, vector<48x3xbf16>, vector<16x3xf32> -> vector<16x3xf32>
    %c0_90 = arith.constant 0 : index
    %c0_91 = arith.constant 0 : index
    %192 = vector.load %arg5[%c0_90, %c0_91] : memref<16x3xf32, #tpu.memory_space<vmem>>, vector<16x3xf32>
    %c0_92 = arith.constant 0 : index
    %c0_93 = arith.constant 0 : index
    %193 = vector.load %arg6[%c0_92, %c0_93] : memref<16x1xf32, #tpu.memory_space<vmem>>, vector<16x1xf32>
    %194 = vector.broadcast %193 : vector<16x1xf32> to vector<16x3xf32>
    %195 = arith.mulf %191, %194 : vector<16x3xf32>
    %196 = arith.addf %192, %195 : vector<16x3xf32>
    %c0_94 = arith.constant 0 : index
    %c0_95 = arith.constant 0 : index
    %197 = vector.load %arg27[%c0_94, %c0_95] : memref<16x3xf32, #tpu.memory_space<vmem>>, vector<16x3xf32>
    tpu.vector_store %arg27[%c0_94, %c0_95], %196 {strides = array<i32>} : memref<16x3xf32, #tpu.memory_space<vmem>>, vector<16x3xf32>,
    return
  }
  func.func @transform_0(%arg0: i32) -> (i32, i32) {
    %c0_i32 = arith.constant 0 : i32
    %c0_i32_0 = arith.constant 0 : i32
    %c0_i32_1 = arith.constant 0 : i32
    return %c0_i32, %c0_i32_0 : i32, i32
  }
  func.func @transform_1(%arg0: i32) -> (i32, i32) {
    %c0_i32 = arith.constant 0 : i32
    %c0_i32_0 = arith.constant 0 : i32
    %c0_i32_1 = arith.constant 0 : i32
    return %c0_i32, %c0_i32_0 : i32, i32
  }
  func.func @transform_2(%arg0: i32) -> (i32, i32) {
    %c0_i32 = arith.constant 0 : i32
    %c0_i32_0 = arith.constant 0 : i32
    %c0_i32_1 = arith.constant 0 : i32
    return %c0_i32, %c0_i32_0 : i32, i32
  }
  func.func @transform_3(%arg0: i32) -> (i32, i32) {
    %c0_i32 = arith.constant 0 : i32
    %c0_i32_0 = arith.constant 0 : i32
    %c0_i32_1 = arith.constant 0 : i32
    return %c0_i32, %c0_i32_0 : i32, i32
  }
  func.func @transform_4(%arg0: i32) -> (i32, i32) {
    %c0_i32 = arith.constant 0 : i32
    %c0_i32_0 = arith.constant 0 : i32
    %c0_i32_1 = arith.constant 0 : i32
    return %c0_i32, %c0_i32_0 : i32, i32
  }
  func.func @transform_5(%arg0: i32) -> (i32, i32) {
    %c0_i32 = arith.constant 0 : i32
    %c0_i32_0 = arith.constant 0 : i32
    %c0_i32_1 = arith.constant 0 : i32
    return %c0_i32, %c0_i32_0 : i32, i32
  }
  func.func @transform_6(%arg0: i32) -> (i32, i32) {
    %c0_i32 = arith.constant 0 : i32
    %c0_i32_0 = arith.constant 0 : i32
    %c0_i32_1 = arith.constant 0 : i32
    return %c0_i32, %c0_i32_0 : i32, i32
  }
  func.func @transform_7(%arg0: i32) -> (i32, i32) {
    %c0_i32 = arith.constant 0 : i32
    %c0_i32_0 = arith.constant 0 : i32
    %c0_i32_1 = arith.constant 0 : i32
    return %c0_i32, %c0_i32_0 : i32, i32
  }
  func.func @transform_8(%arg0: i32) -> (i32, i32) {
    %c0_i32 = arith.constant 0 : i32
    %c0_i32_0 = arith.constant 0 : i32
    %c0_i32_1 = arith.constant 0 : i32
    return %c0_i32, %c0_i32_0 : i32, i32
  }
  func.func @transform_9(%arg0: i32) -> (i32, i32) {
    %c0_i32 = arith.constant 0 : i32
    %c0_i32_0 = arith.constant 0 : i32
    %c0_i32_1 = arith.constant 0 : i32
    return %c0_i32, %c0_i32_0 : i32, i32
  }
  func.func @transform_10(%arg0: i32) -> (i32, i32) {
    %c0_i32 = arith.constant 0 : i32
    %c0_i32_0 = arith.constant 0 : i32
    %c0_i32_1 = arith.constant 0 : i32
    return %c0_i32, %c0_i32_0 : i32, i32
  }
  func.func @transform_11(%arg0: i32) -> (i32, i32) {
    %c0_i32 = arith.constant 0 : i32
    %c0_i32_0 = arith.constant 0 : i32
    %c0_i32_1 = arith.constant 0 : i32
    return %c0_i32, %c0_i32_0 : i32, i32
  }
  func.func @transform_12(%arg0: i32) -> (i32, i32) {
    %c0_i32 = arith.constant 0 : i32
    %c0_i32_0 = arith.constant 0 : i32
    %c0_i32_1 = arith.constant 0 : i32
    return %c0_i32, %c0_i32_0 : i32, i32
  }
  func.func @transform_13(%arg0: i32) -> (i32, i32) {
    %c0_i32 = arith.constant 0 : i32
    %c0_i32_0 = arith.constant 0 : i32
    %c0_i32_1 = arith.constant 0 : i32
    return %c0_i32, %c0_i32_0 : i32, i32
  }
  func.func @transform_14(%arg0: i32) -> (i32, i32) {
    %c0_i32 = arith.constant 0 : i32
    %c0_i32_0 = arith.constant 0 : i32
    %c0_i32_1 = arith.constant 0 : i32
    return %c0_i32, %c0_i32_0 : i32, i32
  }
  func.func @transform_15(%arg0: i32) -> (i32, i32) {
    %c0_i32 = arith.constant 0 : i32
    %c0_i32_0 = arith.constant 0 : i32
    %c0_i32_1 = arith.constant 0 : i32
    return %c0_i32, %c0_i32_0 : i32, i32
  }
  func.func @transform_16(%arg0: i32) -> (i32, i32) {
    %c0_i32 = arith.constant 0 : i32
    %c0_i32_0 = arith.constant 0 : i32
    %c0_i32_1 = arith.constant 0 : i32
    return %c0_i32, %c0_i32_0 : i32, i32
  }
  func.func @transform_17(%arg0: i32) -> (i32, i32) {
    %c0_i32 = arith.constant 0 : i32
    %c0_i32_0 = arith.constant 0 : i32
    %c0_i32_1 = arith.constant 0 : i32
    return %c0_i32, %c0_i32_0 : i32, i32
  }
  func.func @transform_18(%arg0: i32) -> (i32, i32) {
    %c0_i32 = arith.constant 0 : i32
    %c0_i32_0 = arith.constant 0 : i32
    %c0_i32_1 = arith.constant 0 : i32
    return %c0_i32, %c0_i32_0 : i32, i32
  }
  func.func @transform_19(%arg0: i32) -> (i32, i32) {
    %c0_i32 = arith.constant 0 : i32
    %c0_i32_0 = arith.constant 0 : i32
    %c0_i32_1 = arith.constant 0 : i32
    return %c0_i32, %c0_i32_0 : i32, i32
  }
  func.func @transform_20(%arg0: i32) -> (i32, i32) {
    %c0_i32 = arith.constant 0 : i32
    %c0_i32_0 = arith.constant 0 : i32
    %c0_i32_1 = arith.constant 0 : i32
    return %c0_i32, %c0_i32_0 : i32, i32
  }
  func.func @transform_21(%arg0: i32) -> (i32, i32) {
    %c0_i32 = arith.constant 0 : i32
    %c0_i32_0 = arith.constant 0 : i32
    %c0_i32_1 = arith.constant 0 : i32
    return %c0_i32, %c0_i32_0 : i32, i32
  }
  func.func @transform_22(%arg0: i32) -> (i32, i32) {
    %c0_i32 = arith.constant 0 : i32
    %c0_i32_0 = arith.constant 0 : i32
    %c0_i32_1 = arith.constant 0 : i32
    return %c0_i32, %c0_i32_0 : i32, i32
  }
  func.func @transform_23(%arg0: i32) -> (i32, i32) {
    %c0_i32 = arith.constant 0 : i32
    %c0_i32_0 = arith.constant 0 : i32
    %c0_i32_1 = arith.constant 0 : i32
    return %c0_i32, %c0_i32_0 : i32, i32
  }
  func.func @transform_24(%arg0: i32) -> (i32, i32) {
    %c0_i32 = arith.constant 0 : i32
    %c0_i32_0 = arith.constant 0 : i32
    %c0_i32_1 = arith.constant 0 : i32
    return %c0_i32, %c0_i32_0 : i32, i32
  }
  func.func @transform_25(%arg0: i32) -> (i32, i32) {
    %c0_i32 = arith.constant 0 : i32
    %c0_i32_0 = arith.constant 0 : i32
    %c0_i32_1 = arith.constant 0 : i32
    return %c0_i32, %c0_i32_0 : i32, i32
  }
  func.func @transform_26(%arg0: i32) -> (i32, i32) {
    %c0_i32 = arith.constant 0 : i32
    %c0_i32_0 = arith.constant 0 : i32
    %c0_i32_1 = arith.constant 0 : i32
    return %c0_i32, %c0_i32_0 : i32, i32
  }
}

module attributes {stable_mosaic.version = 11 : i64} {
  func.func @_x2h_fused_kernel(%arg0: i32, %arg1: memref<48x32xbf16, #tpu.memory_space<vmem>>, %arg2: memref<48x4xbf16, #tpu.memory_space<vmem>>, %arg3: memref<16x32xf32, #tpu.memory_space<vmem>>, %arg4: memref<48x16xbf16, #tpu.memory_space<vmem>>, %arg5: memref<48x16xbf16, #tpu.memory_space<vmem>>, %arg6: memref<32x4xbf16, #tpu.memory_space<vmem>>, %arg7: memref<4x32xbf16, #tpu.memory_space<vmem>>, %arg8: memref<32x65xbf16, #tpu.memory_space<vmem>>, %arg9: memref<4x65xbf16, #tpu.memory_space<vmem>>, %arg10: memref<32x65xbf16, #tpu.memory_space<vmem>>, %arg11: memref<32x65xbf16, #tpu.memory_space<vmem>>, %arg12: memref<1x65xf32, #tpu.memory_space<vmem>>, %arg13: memref<1x64xf32, #tpu.memory_space<vmem>>, %arg14: memref<1x64xf32, #tpu.memory_space<vmem>>, %arg15: memref<32x32xbf16, #tpu.memory_space<vmem>>, %arg16: memref<1x32xf32, #tpu.memory_space<vmem>>, %arg17: memref<32x32xbf16, #tpu.memory_space<vmem>>, %arg18: memref<1x32xf32, #tpu.memory_space<vmem>>, %arg19: memref<32x32xbf16, #tpu.memory_space<vmem>>, %arg20: memref<1x32xf32, #tpu.memory_space<vmem>>, %arg21: memref<1x32xf32, #tpu.memory_space<vmem>>, %arg22: memref<1x32xf32, #tpu.memory_space<vmem>>, %arg23: memref<32x32xbf16, #tpu.memory_space<vmem>>, %arg24: memref<1x32xf32, #tpu.memory_space<vmem>>, %arg25: memref<32x32xbf16, #tpu.memory_space<vmem>>, %arg26: memref<32x32xbf16, #tpu.memory_space<vmem>>, %arg27: memref<1x32xf32, #tpu.memory_space<vmem>>, %arg28: memref<1x32xf32, #tpu.memory_space<vmem>>, %arg29: memref<1x32xf32, #tpu.memory_space<vmem>>, %arg30: memref<32x32xbf16, #tpu.memory_space<vmem>>, %arg31: memref<1x32xf32, #tpu.memory_space<vmem>>, %arg32: memref<16x32xf32, #tpu.memory_space<vmem>>) attributes {dimension_semantics = [#tpu.dimension_semantics<arbitrary>], iteration_bounds = array<i64: 1>, scalar_prefetch = 0 : i64, scratch_operands = 0 : i64, tpu.core_type = #tpu.core_type<tc>, window_params = [{pipeline_mode = #tpu.pipeline_mode<synchronous>, transform_indices = @transform_0, window_bounds = array<i64: 48, 32>}, {pipeline_mode = #tpu.pipeline_mode<synchronous>, transform_indices = @transform_1, window_bounds = array<i64: 48, 4>}, {pipeline_mode = #tpu.pipeline_mode<synchronous>, transform_indices = @transform_2, window_bounds = array<i64: 16, 32>}, {pipeline_mode = #tpu.pipeline_mode<synchronous>, transform_indices = @transform_3, window_bounds = array<i64: 48, 16>}, {pipeline_mode = #tpu.pipeline_mode<synchronous>, transform_indices = @transform_4, window_bounds = array<i64: 48, 16>}, {pipeline_mode = #tpu.pipeline_mode<synchronous>, transform_indices = @transform_5, window_bounds = array<i64: 32, 4>}, {pipeline_mode = #tpu.pipeline_mode<synchronous>, transform_indices = @transform_6, window_bounds = array<i64: 4, 32>}, {pipeline_mode = #tpu.pipeline_mode<synchronous>, transform_indices = @transform_7, window_bounds = array<i64: 32, 65>}, {pipeline_mode = #tpu.pipeline_mode<synchronous>, transform_indices = @transform_8, window_bounds = array<i64: 4, 65>}, {pipeline_mode = #tpu.pipeline_mode<synchronous>, transform_indices = @transform_9, window_bounds = array<i64: 32, 65>}, {pipeline_mode = #tpu.pipeline_mode<synchronous>, transform_indices = @transform_10, window_bounds = array<i64: 32, 65>}, {pipeline_mode = #tpu.pipeline_mode<synchronous>, transform_indices = @transform_11, window_bounds = array<i64: 1, 65>}, {pipeline_mode = #tpu.pipeline_mode<synchronous>, transform_indices = @transform_12, window_bounds = array<i64: 1, 64>}, {pipeline_mode = #tpu.pipeline_mode<synchronous>, transform_indices = @transform_13, window_bounds = array<i64: 1, 64>}, {pipeline_mode = #tpu.pipeline_mode<synchronous>, transform_indices = @transform_14, window_bounds = array<i64: 32, 32>}, {pipeline_mode = #tpu.pipeline_mode<synchronous>, transform_indices = @transform_15, window_bounds = array<i64: 1, 32>}, {pipeline_mode = #tpu.pipeline_mode<synchronous>, transform_indices = @transform_16, window_bounds = array<i64: 32, 32>}, {pipeline_mode = #tpu.pipeline_mode<synchronous>, transform_indices = @transform_17, window_bounds = array<i64: 1, 32>}, {pipeline_mode = #tpu.pipeline_mode<synchronous>, transform_indices = @transform_18, window_bounds = array<i64: 32, 32>}, {pipeline_mode = #tpu.pipeline_mode<synchronous>, transform_indices = @transform_19, window_bounds = array<i64: 1, 32>}, {pipeline_mode = #tpu.pipeline_mode<synchronous>, transform_indices = @transform_20, window_bounds = array<i64: 1, 32>}, {pipeline_mode = #tpu.pipeline_mode<synchronous>, transform_indices = @transform_21, window_bounds = array<i64: 1, 32>}, {pipeline_mode = #tpu.pipeline_mode<synchronous>, transform_indices = @transform_22, window_bounds = array<i64: 32, 32>}, {pipeline_mode = #tpu.pipeline_mode<synchronous>, transform_indices = @transform_23, window_bounds = array<i64: 1, 32>}, {pipeline_mode = #tpu.pipeline_mode<synchronous>, transform_indices = @transform_24, window_bounds = array<i64: 32, 32>}, {pipeline_mode = #tpu.pipeline_mode<synchronous>, transform_indices = @transform_25, window_bounds = array<i64: 32, 32>}, {pipeline_mode = #tpu.pipeline_mode<synchronous>, transform_indices = @transform_26, window_bounds = array<i64: 1, 32>}, {pipeline_mode = #tpu.pipeline_mode<synchronous>, transform_indices = @transform_27, window_bounds = array<i64: 1, 32>}, {pipeline_mode = #tpu.pipeline_mode<synchronous>, transform_indices = @transform_28, window_bounds = array<i64: 1, 32>}, {pipeline_mode = #tpu.pipeline_mode<synchronous>, transform_indices = @transform_29, window_bounds = array<i64: 32, 32>}, {pipeline_mode = #tpu.pipeline_mode<synchronous>, transform_indices = @transform_30, window_bounds = array<i64: 1, 32>}, {pipeline_mode = #tpu.pipeline_mode<synchronous>, transform_indices = @transform_31, window_bounds = array<i64: 16, 32>}]} {
    %c0 = arith.constant 0 : index
    %c0_0 = arith.constant 0 : index
    %0 = vector.load %arg3[%c0, %c0_0] : memref<16x32xf32, #tpu.memory_space<vmem>>, vector<16x32xf32>
    %c0_1 = arith.constant 0 : index
    %c0_2 = arith.constant 0 : index
    %1 = vector.load %arg4[%c0_1, %c0_2] : memref<48x16xbf16, #tpu.memory_space<vmem>>, vector<48x16xbf16>
    %c0_3 = arith.constant 0 : index
    %c0_4 = arith.constant 0 : index
    %2 = vector.load %arg1[%c0_3, %c0_4] : memref<48x32xbf16, #tpu.memory_space<vmem>>, vector<48x32xbf16>
    %c0_5 = arith.constant 0 : index
    %c0_6 = arith.constant 0 : index
    %3 = vector.load %arg2[%c0_5, %c0_6] : memref<48x4xbf16, #tpu.memory_space<vmem>>, vector<48x4xbf16>
    %c0_7 = arith.constant 0 : index
    %c0_8 = arith.constant 0 : index
    %4 = vector.load %arg5[%c0_7, %c0_8] : memref<48x16xbf16, #tpu.memory_space<vmem>>, vector<48x16xbf16>
    %c0_9 = arith.constant 0 : index
    %c0_10 = arith.constant 0 : index
    %5 = vector.load %arg8[%c0_9, %c0_10] : memref<32x65xbf16, #tpu.memory_space<vmem>>, vector<32x65xbf16>
    %c0_11 = arith.constant 0 : index
    %c0_12 = arith.constant 0 : index
    %6 = vector.load %arg9[%c0_11, %c0_12] : memref<4x65xbf16, #tpu.memory_space<vmem>>, vector<4x65xbf16>
    %c0_13 = arith.constant 0 : index
    %c0_14 = arith.constant 0 : index
    %7 = vector.load %arg10[%c0_13, %c0_14] : memref<32x65xbf16, #tpu.memory_space<vmem>>, vector<32x65xbf16>
    %c0_15 = arith.constant 0 : index
    %c0_16 = arith.constant 0 : index
    %8 = vector.load %arg11[%c0_15, %c0_16] : memref<32x65xbf16, #tpu.memory_space<vmem>>, vector<32x65xbf16>
    %c0_17 = arith.constant 0 : index
    %c0_18 = arith.constant 0 : index
    %9 = vector.load %arg12[%c0_17, %c0_18] : memref<1x65xf32, #tpu.memory_space<vmem>>, vector<1x65xf32>
    %10 = arith.truncf %0 : vector<16x32xf32> to vector<16x32xbf16>
    %cst = arith.constant dense<0.000000e+00> : vector<16x65xf32>
    %11 = tpu.matmul %10, %7, %cst {dimension_numbers = #tpu.dot_dimension_numbers<[1], [0], [0], [1], [0, 0, 1, 1], [], []>} : vector<16x32xbf16>, vector<32x65xbf16>, vector<16x65xf32> -> vector<16x65xf32>
    %12 = arith.truncf %0 : vector<16x32xf32> to vector<16x32xbf16>
    %cst_19 = arith.constant dense<0.000000e+00> : vector<16x65xf32>
    %13 = tpu.matmul %12, %8, %cst_19 {dimension_numbers = #tpu.dot_dimension_numbers<[1], [0], [0], [1], [0, 0, 1, 1], [], []>} : vector<16x32xbf16>, vector<32x65xbf16>, vector<16x65xf32> -> vector<16x65xf32>
    %cst_20 = arith.constant dense<0.000000e+00> : vector<48x65xf32>
    %14 = tpu.matmul %2, %5, %cst_20 {dimension_numbers = #tpu.dot_dimension_numbers<[1], [0], [0], [1], [0, 0, 1, 1], [], []>} : vector<48x32xbf16>, vector<32x65xbf16>, vector<48x65xf32> -> vector<48x65xf32>
    %cst_21 = arith.constant dense<0.000000e+00> : vector<48x65xf32>
    %15 = tpu.matmul %3, %6, %cst_21 {dimension_numbers = #tpu.dot_dimension_numbers<[1], [0], [0], [1], [0, 0, 1, 1], [], []>} : vector<48x4xbf16>, vector<4x65xbf16>, vector<48x65xf32> -> vector<48x65xf32>
    %16 = arith.addf %14, %15 : vector<48x65xf32>
    %17 = arith.truncf %11 : vector<16x65xf32> to vector<16x65xbf16>
    %cst_22 = arith.constant dense<0.000000e+00> : vector<48x65xf32>
    %18 = tpu.matmul %1, %17, %cst_22 {dimension_numbers = #tpu.dot_dimension_numbers<[1], [0], [0], [1], [0, 0, 1, 1], [], []>} : vector<48x16xbf16>, vector<16x65xbf16>, vector<48x65xf32> -> vector<48x65xf32>
    %19 = arith.addf %16, %18 : vector<48x65xf32>
    %20 = arith.truncf %13 : vector<16x65xf32> to vector<16x65xbf16>
    %cst_23 = arith.constant dense<0.000000e+00> : vector<48x65xf32>
    %21 = tpu.matmul %4, %20, %cst_23 {dimension_numbers = #tpu.dot_dimension_numbers<[1], [0], [0], [1], [0, 0, 1, 1], [], []>} : vector<48x16xbf16>, vector<16x65xbf16>, vector<48x65xf32> -> vector<48x65xf32>
    %22 = arith.addf %19, %21 : vector<48x65xf32>
    %23 = vector.broadcast %9 : vector<1x65xf32> to vector<48x65xf32>
    %24 = arith.addf %22, %23 : vector<48x65xf32>
    %c0_24 = arith.constant 0 : index
    %c0_25 = arith.constant 0 : index
    %25 = vector.load %arg13[%c0_24, %c0_25] : memref<1x64xf32, #tpu.memory_space<vmem>>, vector<1x64xf32>
    %c0_26 = arith.constant 0 : index
    %c0_27 = arith.constant 0 : index
    %26 = vector.load %arg14[%c0_26, %c0_27] : memref<1x64xf32, #tpu.memory_space<vmem>>, vector<1x64xf32>
    %c0_28 = arith.constant 0 : index
    %c0_29 = arith.constant 0 : index
    %27 = vector.load %arg15[%c0_28, %c0_29] : memref<32x32xbf16, #tpu.memory_space<vmem>>, vector<32x32xbf16>
    %c0_30 = arith.constant 0 : index
    %c0_31 = arith.constant 0 : index
    %28 = vector.load %arg16[%c0_30, %c0_31] : memref<1x32xf32, #tpu.memory_space<vmem>>, vector<1x32xf32>
    %c0_32 = arith.constant 0 : index
    %c0_33 = arith.constant 0 : index
    %29 = vector.load %arg17[%c0_32, %c0_33] : memref<32x32xbf16, #tpu.memory_space<vmem>>, vector<32x32xbf16>
    %c0_34 = arith.constant 0 : index
    %c0_35 = arith.constant 0 : index
    %30 = vector.load %arg18[%c0_34, %c0_35] : memref<1x32xf32, #tpu.memory_space<vmem>>, vector<1x32xf32>
    %31 = vector.extract_strided_slice %24 {offsets = [0, 0], sizes = [48, 32], strides = [1, 1]} : vector<48x65xf32> to vector<48x32xf32>
    %32 = vector.extract_strided_slice %25 {offsets = [0, 0], sizes = [1, 32], strides = [1, 1]} : vector<1x64xf32> to vector<1x32xf32>
    %33 = vector.extract_strided_slice %26 {offsets = [0, 0], sizes = [1, 32], strides = [1, 1]} : vector<1x64xf32> to vector<1x32xf32>
    %cst_36 = arith.constant dense<0.000000e+00> : vector<48xf32>
    %34 = vector.multi_reduction <add>, %31, %cst_36 [1] : vector<48x32xf32> to vector<48xf32>
    %35 = vector.shape_cast %34 : vector<48xf32> to vector<48x1xf32>
    %cst_37 = arith.constant 3.200000e+01 : f32
    %36 = vector.broadcast %cst_37 : f32 to vector<48x1xf32>
    %37 = arith.divf %35, %36 : vector<48x1xf32>
    %38 = vector.broadcast %37 : vector<48x1xf32> to vector<48x32xf32>
    %39 = arith.subf %31, %38 : vector<48x32xf32>
    %40 = arith.mulf %39, %39 : vector<48x32xf32>
    %cst_38 = arith.constant dense<0.000000e+00> : vector<48xf32>
    %41 = vector.multi_reduction <add>, %40, %cst_38 [1] : vector<48x32xf32> to vector<48xf32>
    %42 = vector.shape_cast %41 : vector<48xf32> to vector<48x1xf32>
    %cst_39 = arith.constant 3.200000e+01 : f32
    %43 = vector.broadcast %cst_39 : f32 to vector<48x1xf32>
    %44 = arith.divf %42, %43 : vector<48x1xf32>
    %45 = vector.broadcast %37 : vector<48x1xf32> to vector<48x32xf32>
    %46 = arith.subf %31, %45 : vector<48x32xf32>
    %cst_40 = arith.constant 9.99999974E-6 : f32
    %47 = vector.broadcast %cst_40 : f32 to vector<48x1xf32>
    %48 = arith.addf %44, %47 : vector<48x1xf32>
    %49 = math.rsqrt %48 : vector<48x1xf32>
    %50 = vector.broadcast %49 : vector<48x1xf32> to vector<48x32xf32>
    %51 = arith.mulf %46, %50 : vector<48x32xf32>
    %52 = vector.broadcast %32 : vector<1x32xf32> to vector<48x32xf32>
    %53 = arith.mulf %51, %52 : vector<48x32xf32>
    %54 = vector.broadcast %33 : vector<1x32xf32> to vector<48x32xf32>
    %55 = arith.addf %53, %54 : vector<48x32xf32>
    %cst_41 = arith.constant 0.000000e+00 : f32
    %56 = vector.broadcast %cst_41 : f32 to vector<48x32xf32>
    %57 = arith.maximumf %55, %56 : vector<48x32xf32>
    %58 = vector.extract_strided_slice %24 {offsets = [0, 32], sizes = [48, 32], strides = [1, 1]} : vector<48x65xf32> to vector<48x32xf32>
    %59 = vector.extract_strided_slice %25 {offsets = [0, 32], sizes = [1, 32], strides = [1, 1]} : vector<1x64xf32> to vector<1x32xf32>
    %60 = vector.extract_strided_slice %26 {offsets = [0, 32], sizes = [1, 32], strides = [1, 1]} : vector<1x64xf32> to vector<1x32xf32>
    %cst_42 = arith.constant dense<0.000000e+00> : vector<48xf32>
    %61 = vector.multi_reduction <add>, %58, %cst_42 [1] : vector<48x32xf32> to vector<48xf32>
    %62 = vector.shape_cast %61 : vector<48xf32> to vector<48x1xf32>
    %cst_43 = arith.constant 3.200000e+01 : f32
    %63 = vector.broadcast %cst_43 : f32 to vector<48x1xf32>
    %64 = arith.divf %62, %63 : vector<48x1xf32>
    %65 = vector.broadcast %64 : vector<48x1xf32> to vector<48x32xf32>
    %66 = arith.subf %58, %65 : vector<48x32xf32>
    %67 = arith.mulf %66, %66 : vector<48x32xf32>
    %cst_44 = arith.constant dense<0.000000e+00> : vector<48xf32>
    %68 = vector.multi_reduction <add>, %67, %cst_44 [1] : vector<48x32xf32> to vector<48xf32>
    %69 = vector.shape_cast %68 : vector<48xf32> to vector<48x1xf32>
    %cst_45 = arith.constant 3.200000e+01 : f32
    %70 = vector.broadcast %cst_45 : f32 to vector<48x1xf32>
    %71 = arith.divf %69, %70 : vector<48x1xf32>
    %72 = vector.broadcast %64 : vector<48x1xf32> to vector<48x32xf32>
    %73 = arith.subf %58, %72 : vector<48x32xf32>
    %cst_46 = arith.constant 9.99999974E-6 : f32
    %74 = vector.broadcast %cst_46 : f32 to vector<48x1xf32>
    %75 = arith.addf %71, %74 : vector<48x1xf32>
    %76 = math.rsqrt %75 : vector<48x1xf32>
    %77 = vector.broadcast %76 : vector<48x1xf32> to vector<48x32xf32>
    %78 = arith.mulf %73, %77 : vector<48x32xf32>
    %79 = vector.broadcast %59 : vector<1x32xf32> to vector<48x32xf32>
    %80 = arith.mulf %78, %79 : vector<48x32xf32>
    %81 = vector.broadcast %60 : vector<1x32xf32> to vector<48x32xf32>
    %82 = arith.addf %80, %81 : vector<48x32xf32>
    %cst_47 = arith.constant 0.000000e+00 : f32
    %83 = vector.broadcast %cst_47 : f32 to vector<48x32xf32>
    %84 = arith.maximumf %82, %83 : vector<48x32xf32>
    %85 = vector.extract_strided_slice %24 {offsets = [0, 64], sizes = [48, 1], strides = [1, 1]} : vector<48x65xf32> to vector<48x1xf32>
    %86 = arith.negf %85 : vector<48x1xf32>
    %87 = math.exp %86 : vector<48x1xf32>
    %cst_48 = arith.constant 1.000000e+00 : f32
    %88 = vector.broadcast %cst_48 : f32 to vector<48x1xf32>
    %89 = arith.addf %88, %87 : vector<48x1xf32>
    %90 = arith.divf %88, %89 : vector<48x1xf32>
    %91 = arith.truncf %57 : vector<48x32xf32> to vector<48x32xbf16>
    %cst_49 = arith.constant dense<0.000000e+00> : vector<48x32xf32>
    %92 = tpu.matmul %91, %27, %cst_49 {dimension_numbers = #tpu.dot_dimension_numbers<[1], [0], [0], [1], [0, 0, 1, 1], [], []>} : vector<48x32xbf16>, vector<32x32xbf16>, vector<48x32xf32> -> vector<48x32xf32>
    %93 = vector.broadcast %28 : vector<1x32xf32> to vector<48x32xf32>
    %94 = arith.addf %92, %93 : vector<48x32xf32>
    %95 = arith.truncf %84 : vector<48x32xf32> to vector<48x32xbf16>
    %cst_50 = arith.constant dense<0.000000e+00> : vector<48x32xf32>
    %96 = tpu.matmul %95, %29, %cst_50 {dimension_numbers = #tpu.dot_dimension_numbers<[1], [0], [0], [1], [0, 0, 1, 1], [], []>} : vector<48x32xbf16>, vector<32x32xbf16>, vector<48x32xf32> -> vector<48x32xf32>
    %97 = vector.broadcast %30 : vector<1x32xf32> to vector<48x32xf32>
    %98 = arith.addf %96, %97 : vector<48x32xf32>
    %c0_51 = arith.constant 0 : index
    %c0_52 = arith.constant 0 : index
    %99 = vector.load %arg19[%c0_51, %c0_52] : memref<32x32xbf16, #tpu.memory_space<vmem>>, vector<32x32xbf16>
    %c0_53 = arith.constant 0 : index
    %c0_54 = arith.constant 0 : index
    %100 = vector.load %arg20[%c0_53, %c0_54] : memref<1x32xf32, #tpu.memory_space<vmem>>, vector<1x32xf32>
    %c0_55 = arith.constant 0 : index
    %c0_56 = arith.constant 0 : index
    %101 = vector.load %arg21[%c0_55, %c0_56] : memref<1x32xf32, #tpu.memory_space<vmem>>, vector<1x32xf32>
    %c0_57 = arith.constant 0 : index
    %c0_58 = arith.constant 0 : index
    %102 = vector.load %arg22[%c0_57, %c0_58] : memref<1x32xf32, #tpu.memory_space<vmem>>, vector<1x32xf32>
    %c0_59 = arith.constant 0 : index
    %c0_60 = arith.constant 0 : index
    %103 = vector.load %arg23[%c0_59, %c0_60] : memref<32x32xbf16, #tpu.memory_space<vmem>>, vector<32x32xbf16>
    %c0_61 = arith.constant 0 : index
    %c0_62 = arith.constant 0 : index
    %104 = vector.load %arg24[%c0_61, %c0_62] : memref<1x32xf32, #tpu.memory_space<vmem>>, vector<1x32xf32>
    %105 = arith.truncf %0 : vector<16x32xf32> to vector<16x32xbf16>
    %cst_63 = arith.constant dense<0.000000e+00> : vector<16x32xf32>
    %106 = tpu.matmul %105, %99, %cst_63 {dimension_numbers = #tpu.dot_dimension_numbers<[1], [0], [0], [1], [0, 0, 1, 1], [], []>} : vector<16x32xbf16>, vector<32x32xbf16>, vector<16x32xf32> -> vector<16x32xf32>
    %107 = vector.broadcast %100 : vector<1x32xf32> to vector<16x32xf32>
    %108 = arith.addf %106, %107 : vector<16x32xf32>
    %cst_64 = arith.constant dense<0.000000e+00> : vector<16xf32>
    %109 = vector.multi_reduction <add>, %108, %cst_64 [1] : vector<16x32xf32> to vector<16xf32>
    %110 = vector.shape_cast %109 : vector<16xf32> to vector<16x1xf32>
    %cst_65 = arith.constant 3.200000e+01 : f32
    %111 = vector.broadcast %cst_65 : f32 to vector<16x1xf32>
    %112 = arith.divf %110, %111 : vector<16x1xf32>
    %113 = vector.broadcast %112 : vector<16x1xf32> to vector<16x32xf32>
    %114 = arith.subf %108, %113 : vector<16x32xf32>
    %115 = arith.mulf %114, %114 : vector<16x32xf32>
    %cst_66 = arith.constant dense<0.000000e+00> : vector<16xf32>
    %116 = vector.multi_reduction <add>, %115, %cst_66 [1] : vector<16x32xf32> to vector<16xf32>
    %117 = vector.shape_cast %116 : vector<16xf32> to vector<16x1xf32>
    %cst_67 = arith.constant 3.200000e+01 : f32
    %118 = vector.broadcast %cst_67 : f32 to vector<16x1xf32>
    %119 = arith.divf %117, %118 : vector<16x1xf32>
    %120 = vector.broadcast %112 : vector<16x1xf32> to vector<16x32xf32>
    %121 = arith.subf %108, %120 : vector<16x32xf32>
    %cst_68 = arith.constant 9.99999974E-6 : f32
    %122 = vector.broadcast %cst_68 : f32 to vector<16x1xf32>
    %123 = arith.addf %119, %122 : vector<16x1xf32>
    %124 = math.rsqrt %123 : vector<16x1xf32>
    %125 = vector.broadcast %124 : vector<16x1xf32> to vector<16x32xf32>
    %126 = arith.mulf %121, %125 : vector<16x32xf32>
    %127 = vector.broadcast %101 : vector<1x32xf32> to vector<16x32xf32>
    %128 = arith.mulf %126, %127 : vector<16x32xf32>
    %129 = vector.broadcast %102 : vector<1x32xf32> to vector<16x32xf32>
    %130 = arith.addf %128, %129 : vector<16x32xf32>
    %cst_69 = arith.constant 0.000000e+00 : f32
    %131 = vector.broadcast %cst_69 : f32 to vector<16x32xf32>
    %132 = arith.maximumf %130, %131 : vector<16x32xf32>
    %133 = arith.truncf %132 : vector<16x32xf32> to vector<16x32xbf16>
    %cst_70 = arith.constant dense<0.000000e+00> : vector<16x32xf32>
    %134 = tpu.matmul %133, %103, %cst_70 {dimension_numbers = #tpu.dot_dimension_numbers<[1], [0], [0], [1], [0, 0, 1, 1], [], []>} : vector<16x32xbf16>, vector<32x32xbf16>, vector<16x32xf32> -> vector<16x32xf32>
    %135 = vector.broadcast %104 : vector<1x32xf32> to vector<16x32xf32>
    %136 = arith.addf %134, %135 : vector<16x32xf32>
    %137 = arith.truncf %136 : vector<16x32xf32> to vector<16x32xbf16>
    %cst_71 = arith.constant dense<0.000000e+00> : vector<48x32xf32>
    %138 = tpu.matmul %1, %137, %cst_71 {dimension_numbers = #tpu.dot_dimension_numbers<[1], [0], [0], [1], [0, 0, 1, 1], [], []>} : vector<48x16xbf16>, vector<16x32xbf16>, vector<48x32xf32> -> vector<48x32xf32>
    %139 = arith.mulf %138, %94 : vector<48x32xf32>
    %c0_72 = arith.constant 0 : index
    %c0_73 = arith.constant 0 : index
    %140 = vector.load %arg6[%c0_72, %c0_73] : memref<32x4xbf16, #tpu.memory_space<vmem>>, vector<32x4xbf16>
    %141 = arith.truncf %139 : vector<48x32xf32> to vector<48x32xbf16>
    %cst_74 = arith.constant dense<0.000000e+00> : vector<48x4xf32>
    %142 = tpu.matmul %141, %140, %cst_74 {dimension_numbers = #tpu.dot_dimension_numbers<[1], [0], [0], [1], [0, 0, 1, 1], [], []>} : vector<48x32xbf16>, vector<32x4xbf16>, vector<48x4xf32> -> vector<48x4xf32>
    %143 = arith.extf %1 : vector<48x16xbf16> to vector<48x16xf32>
    %cst_75 = arith.constant 1.000000e+00 : f32
    %144 = vector.broadcast %cst_75 : f32 to vector<48x16xf32>
    %145 = arith.subf %143, %144 : vector<48x16xf32>
    %cst_76 = arith.constant 1.000000e+30 : f32
    %146 = vector.broadcast %cst_76 : f32 to vector<48x16xf32>
    %147 = arith.mulf %145, %146 : vector<48x16xf32>
    %148 = vector.extract_strided_slice %142 {offsets = [0, 0], sizes = [48, 1], strides = [1, 1]} : vector<48x4xf32> to vector<48x1xf32>
    %149 = vector.broadcast %148 : vector<48x1xf32> to vector<48x16xf32>
    %150 = arith.addf %149, %147 : vector<48x16xf32>
    %cst_77 = arith.constant dense<0xFF800000> : vector<16xf32>
    %151 = vector.multi_reduction <maximumf>, %150, %cst_77 [0] : vector<48x16xf32> to vector<16xf32>
    %152 = vector.shape_cast %151 : vector<16xf32> to vector<1x16xf32>
    %153 = vector.extract_strided_slice %142 {offsets = [0, 1], sizes = [48, 1], strides = [1, 1]} : vector<48x4xf32> to vector<48x1xf32>
    %154 = vector.broadcast %153 : vector<48x1xf32> to vector<48x16xf32>
    %155 = arith.addf %154, %147 : vector<48x16xf32>
    %cst_78 = arith.constant dense<0xFF800000> : vector<16xf32>
    %156 = vector.multi_reduction <maximumf>, %155, %cst_78 [0] : vector<48x16xf32> to vector<16xf32>
    %157 = vector.shape_cast %156 : vector<16xf32> to vector<1x16xf32>
    %158 = vector.extract_strided_slice %142 {offsets = [0, 2], sizes = [48, 1], strides = [1, 1]} : vector<48x4xf32> to vector<48x1xf32>
    %159 = vector.broadcast %158 : vector<48x1xf32> to vector<48x16xf32>
    %160 = arith.addf %159, %147 : vector<48x16xf32>
    %cst_79 = arith.constant dense<0xFF800000> : vector<16xf32>
    %161 = vector.multi_reduction <maximumf>, %160, %cst_79 [0] : vector<48x16xf32> to vector<16xf32>
    %162 = vector.shape_cast %161 : vector<16xf32> to vector<1x16xf32>
    %163 = vector.extract_strided_slice %142 {offsets = [0, 3], sizes = [48, 1], strides = [1, 1]} : vector<48x4xf32> to vector<48x1xf32>
    %164 = vector.broadcast %163 : vector<48x1xf32> to vector<48x16xf32>
    %165 = arith.addf %164, %147 : vector<48x16xf32>
    %cst_80 = arith.constant dense<0xFF800000> : vector<16xf32>
    %166 = vector.multi_reduction <maximumf>, %165, %cst_80 [0] : vector<48x16xf32> to vector<16xf32>
    %167 = vector.shape_cast %166 : vector<16xf32> to vector<1x16xf32>
    %168 = tpu.concatenate %152, %157, %162, %167 in 0 : vector<1x16xf32>, vector<1x16xf32>, vector<1x16xf32>, vector<1x16xf32> -> vector<4x16xf32>
    %169 = arith.truncf %168 : vector<4x16xf32> to vector<4x16xbf16>
    %cst_81 = arith.constant dense<0.000000e+00> : vector<48x4xf32>
    %170 = tpu.matmul %1, %169, %cst_81 {dimension_numbers = #tpu.dot_dimension_numbers<[1], [1], [0], [0], [0, 0, 1, 0], [], []>} : vector<48x16xbf16>, vector<4x16xbf16>, vector<48x4xf32> -> vector<48x4xf32>
    %171 = arith.subf %142, %170 : vector<48x4xf32>
    %172 = math.exp %171 : vector<48x4xf32>
    %173 = arith.truncf %172 : vector<48x4xf32> to vector<48x4xbf16>
    %cst_82 = arith.constant dense<0.000000e+00> : vector<16x4xf32>
    %174 = tpu.matmul %1, %173, %cst_82 {dimension_numbers = #tpu.dot_dimension_numbers<[0], [0], [1], [1], [0, 1, 1, 1], [], []>} : vector<48x16xbf16>, vector<48x4xbf16>, vector<16x4xf32> -> vector<16x4xf32>
    %cst_83 = arith.constant 9.99999997E-7 : f32
    %175 = vector.broadcast %cst_83 : f32 to vector<16x4xf32>
    %176 = arith.maximumf %174, %175 : vector<16x4xf32>
    %177 = tpu.reciprocal %176 {approx = true} : vector<16x4xf32> -> vector<16x4xf32>
    %178 = arith.truncf %177 : vector<16x4xf32> to vector<16x4xbf16>
    %cst_84 = arith.constant dense<0.000000e+00> : vector<48x4xf32>
    %179 = tpu.matmul %1, %178, %cst_84 {dimension_numbers = #tpu.dot_dimension_numbers<[1], [0], [0], [1], [0, 0, 1, 1], [], []>} : vector<48x16xbf16>, vector<16x4xbf16>, vector<48x4xf32> -> vector<48x4xf32>
    %180 = arith.mulf %172, %179 : vector<48x4xf32>
    %c0_85 = arith.constant 0 : index
    %c0_86 = arith.constant 0 : index
    %181 = vector.load %arg7[%c0_85, %c0_86] : memref<4x32xbf16, #tpu.memory_space<vmem>>, vector<4x32xbf16>
    %182 = arith.truncf %180 : vector<48x4xf32> to vector<48x4xbf16>
    %cst_87 = arith.constant dense<0.000000e+00> : vector<48x32xf32>
    %183 = tpu.matmul %182, %181, %cst_87 {dimension_numbers = #tpu.dot_dimension_numbers<[1], [0], [0], [1], [0, 0, 1, 1], [], []>} : vector<48x4xbf16>, vector<4x32xbf16>, vector<48x32xf32> -> vector<48x32xf32>
    %184 = arith.mulf %183, %98 : vector<48x32xf32>
    %185 = vector.broadcast %90 : vector<48x1xf32> to vector<48x32xf32>
    %186 = arith.mulf %184, %185 : vector<48x32xf32>
    %187 = arith.truncf %186 : vector<48x32xf32> to vector<48x32xbf16>
    %cst_88 = arith.constant dense<0.000000e+00> : vector<16x32xf32>
    %188 = tpu.matmul %1, %187, %cst_88 {dimension_numbers = #tpu.dot_dimension_numbers<[0], [0], [1], [1], [0, 1, 1, 1], [], []>} : vector<48x16xbf16>, vector<48x32xbf16>, vector<16x32xf32> -> vector<16x32xf32>
    %c0_89 = arith.constant 0 : index
    %c0_90 = arith.constant 0 : index
    %189 = vector.load %arg25[%c0_89, %c0_90] : memref<32x32xbf16, #tpu.memory_space<vmem>>, vector<32x32xbf16>
    %190 = arith.truncf %188 : vector<16x32xf32> to vector<16x32xbf16>
    %cst_91 = arith.constant dense<0.000000e+00> : vector<16x32xf32>
    %191 = tpu.matmul %190, %189, %cst_91 {dimension_numbers = #tpu.dot_dimension_numbers<[1], [0], [0], [1], [0, 0, 1, 1], [], []>} : vector<16x32xbf16>, vector<32x32xbf16>, vector<16x32xf32> -> vector<16x32xf32>
    %c0_92 = arith.constant 0 : index
    %c0_93 = arith.constant 0 : index
    %192 = vector.load %arg26[%c0_92, %c0_93] : memref<32x32xbf16, #tpu.memory_space<vmem>>, vector<32x32xbf16>
    %193 = arith.truncf %0 : vector<16x32xf32> to vector<16x32xbf16>
    %cst_94 = arith.constant dense<0.000000e+00> : vector<16x32xf32>
    %194 = tpu.matmul %193, %192, %cst_94 {dimension_numbers = #tpu.dot_dimension_numbers<[1], [0], [0], [1], [0, 0, 1, 1], [], []>} : vector<16x32xbf16>, vector<32x32xbf16>, vector<16x32xf32> -> vector<16x32xf32>
    %195 = arith.addf %191, %194 : vector<16x32xf32>
    %c0_95 = arith.constant 0 : index
    %c0_96 = arith.constant 0 : index
    %196 = vector.load %arg27[%c0_95, %c0_96] : memref<1x32xf32, #tpu.memory_space<vmem>>, vector<1x32xf32>
    %197 = vector.broadcast %196 : vector<1x32xf32> to vector<16x32xf32>
    %198 = arith.addf %195, %197 : vector<16x32xf32>
    %c0_97 = arith.constant 0 : index
    %c0_98 = arith.constant 0 : index
    %199 = vector.load %arg28[%c0_97, %c0_98] : memref<1x32xf32, #tpu.memory_space<vmem>>, vector<1x32xf32>
    %c0_99 = arith.constant 0 : index
    %c0_100 = arith.constant 0 : index
    %200 = vector.load %arg29[%c0_99, %c0_100] : memref<1x32xf32, #tpu.memory_space<vmem>>, vector<1x32xf32>
    %cst_101 = arith.constant dense<0.000000e+00> : vector<16xf32>
    %201 = vector.multi_reduction <add>, %198, %cst_101 [1] : vector<16x32xf32> to vector<16xf32>
    %202 = vector.shape_cast %201 : vector<16xf32> to vector<16x1xf32>
    %cst_102 = arith.constant 3.200000e+01 : f32
    %203 = vector.broadcast %cst_102 : f32 to vector<16x1xf32>
    %204 = arith.divf %202, %203 : vector<16x1xf32>
    %205 = vector.broadcast %204 : vector<16x1xf32> to vector<16x32xf32>
    %206 = arith.subf %198, %205 : vector<16x32xf32>
    %207 = arith.mulf %206, %206 : vector<16x32xf32>
    %cst_103 = arith.constant dense<0.000000e+00> : vector<16xf32>
    %208 = vector.multi_reduction <add>, %207, %cst_103 [1] : vector<16x32xf32> to vector<16xf32>
    %209 = vector.shape_cast %208 : vector<16xf32> to vector<16x1xf32>
    %cst_104 = arith.constant 3.200000e+01 : f32
    %210 = vector.broadcast %cst_104 : f32 to vector<16x1xf32>
    %211 = arith.divf %209, %210 : vector<16x1xf32>
    %212 = vector.broadcast %204 : vector<16x1xf32> to vector<16x32xf32>
    %213 = arith.subf %198, %212 : vector<16x32xf32>
    %cst_105 = arith.constant 9.99999974E-6 : f32
    %214 = vector.broadcast %cst_105 : f32 to vector<16x1xf32>
    %215 = arith.addf %211, %214 : vector<16x1xf32>
    %216 = math.rsqrt %215 : vector<16x1xf32>
    %217 = vector.broadcast %216 : vector<16x1xf32> to vector<16x32xf32>
    %218 = arith.mulf %213, %217 : vector<16x32xf32>
    %219 = vector.broadcast %199 : vector<1x32xf32> to vector<16x32xf32>
    %220 = arith.mulf %218, %219 : vector<16x32xf32>
    %221 = vector.broadcast %200 : vector<1x32xf32> to vector<16x32xf32>
    %222 = arith.addf %220, %221 : vector<16x32xf32>
    %cst_106 = arith.constant 0.000000e+00 : f32
    %223 = vector.broadcast %cst_106 : f32 to vector<16x32xf32>
    %224 = arith.maximumf %222, %223 : vector<16x32xf32>
    %c0_107 = arith.constant 0 : index
    %c0_108 = arith.constant 0 : index
    %225 = vector.load %arg30[%c0_107, %c0_108] : memref<32x32xbf16, #tpu.memory_space<vmem>>, vector<32x32xbf16>
    %226 = arith.truncf %224 : vector<16x32xf32> to vector<16x32xbf16>
    %cst_109 = arith.constant dense<0.000000e+00> : vector<16x32xf32>
    %227 = tpu.matmul %226, %225, %cst_109 {dimension_numbers = #tpu.dot_dimension_numbers<[1], [0], [0], [1], [0, 0, 1, 1], [], []>} : vector<16x32xbf16>, vector<32x32xbf16>, vector<16x32xf32> -> vector<16x32xf32>
    %c0_110 = arith.constant 0 : index
    %c0_111 = arith.constant 0 : index
    %228 = vector.load %arg31[%c0_110, %c0_111] : memref<1x32xf32, #tpu.memory_space<vmem>>, vector<1x32xf32>
    %229 = vector.broadcast %228 : vector<1x32xf32> to vector<16x32xf32>
    %230 = arith.addf %227, %229 : vector<16x32xf32>
    %231 = arith.addf %230, %0 : vector<16x32xf32>
    %c0_112 = arith.constant 0 : index
    %c0_113 = arith.constant 0 : index
    %232 = vector.load %arg32[%c0_112, %c0_113] : memref<16x32xf32, #tpu.memory_space<vmem>>, vector<16x32xf32>
    tpu.vector_store %arg32[%c0_112, %c0_113], %231 {strides = array<i32>} : memref<16x32xf32, #tpu.memory_space<vmem>>, vector<16x32xf32>,
    return
  }
  func.func @transform_0(%arg0: i32) -> (i32, i32) {
    %c0_i32 = arith.constant 0 : i32
    %c0_i32_0 = arith.constant 0 : i32
    %c0_i32_1 = arith.constant 0 : i32
    return %c0_i32, %c0_i32_0 : i32, i32
  }
  func.func @transform_1(%arg0: i32) -> (i32, i32) {
    %c0_i32 = arith.constant 0 : i32
    %c0_i32_0 = arith.constant 0 : i32
    %c0_i32_1 = arith.constant 0 : i32
    return %c0_i32, %c0_i32_0 : i32, i32
  }
  func.func @transform_2(%arg0: i32) -> (i32, i32) {
    %c0_i32 = arith.constant 0 : i32
    %c0_i32_0 = arith.constant 0 : i32
    %c0_i32_1 = arith.constant 0 : i32
    return %c0_i32, %c0_i32_0 : i32, i32
  }
  func.func @transform_3(%arg0: i32) -> (i32, i32) {
    %c0_i32 = arith.constant 0 : i32
    %c0_i32_0 = arith.constant 0 : i32
    %c0_i32_1 = arith.constant 0 : i32
    return %c0_i32, %c0_i32_0 : i32, i32
  }
  func.func @transform_4(%arg0: i32) -> (i32, i32) {
    %c0_i32 = arith.constant 0 : i32
    %c0_i32_0 = arith.constant 0 : i32
    %c0_i32_1 = arith.constant 0 : i32
    return %c0_i32, %c0_i32_0 : i32, i32
  }
  func.func @transform_5(%arg0: i32) -> (i32, i32) {
    %c0_i32 = arith.constant 0 : i32
    %c0_i32_0 = arith.constant 0 : i32
    %c0_i32_1 = arith.constant 0 : i32
    return %c0_i32, %c0_i32_0 : i32, i32
  }
  func.func @transform_6(%arg0: i32) -> (i32, i32) {
    %c0_i32 = arith.constant 0 : i32
    %c0_i32_0 = arith.constant 0 : i32
    %c0_i32_1 = arith.constant 0 : i32
    return %c0_i32, %c0_i32_0 : i32, i32
  }
  func.func @transform_7(%arg0: i32) -> (i32, i32) {
    %c0_i32 = arith.constant 0 : i32
    %c0_i32_0 = arith.constant 0 : i32
    %c0_i32_1 = arith.constant 0 : i32
    return %c0_i32, %c0_i32_0 : i32, i32
  }
  func.func @transform_8(%arg0: i32) -> (i32, i32) {
    %c0_i32 = arith.constant 0 : i32
    %c0_i32_0 = arith.constant 0 : i32
    %c0_i32_1 = arith.constant 0 : i32
    return %c0_i32, %c0_i32_0 : i32, i32
  }
  func.func @transform_9(%arg0: i32) -> (i32, i32) {
    %c0_i32 = arith.constant 0 : i32
    %c0_i32_0 = arith.constant 0 : i32
    %c0_i32_1 = arith.constant 0 : i32
    return %c0_i32, %c0_i32_0 : i32, i32
  }
  func.func @transform_10(%arg0: i32) -> (i32, i32) {
    %c0_i32 = arith.constant 0 : i32
    %c0_i32_0 = arith.constant 0 : i32
    %c0_i32_1 = arith.constant 0 : i32
    return %c0_i32, %c0_i32_0 : i32, i32
  }
  func.func @transform_11(%arg0: i32) -> (i32, i32) {
    %c0_i32 = arith.constant 0 : i32
    %c0_i32_0 = arith.constant 0 : i32
    %c0_i32_1 = arith.constant 0 : i32
    return %c0_i32, %c0_i32_0 : i32, i32
  }
  func.func @transform_12(%arg0: i32) -> (i32, i32) {
    %c0_i32 = arith.constant 0 : i32
    %c0_i32_0 = arith.constant 0 : i32
    %c0_i32_1 = arith.constant 0 : i32
    return %c0_i32, %c0_i32_0 : i32, i32
  }
  func.func @transform_13(%arg0: i32) -> (i32, i32) {
    %c0_i32 = arith.constant 0 : i32
    %c0_i32_0 = arith.constant 0 : i32
    %c0_i32_1 = arith.constant 0 : i32
    return %c0_i32, %c0_i32_0 : i32, i32
  }
  func.func @transform_14(%arg0: i32) -> (i32, i32) {
    %c0_i32 = arith.constant 0 : i32
    %c0_i32_0 = arith.constant 0 : i32
    %c0_i32_1 = arith.constant 0 : i32
    return %c0_i32, %c0_i32_0 : i32, i32
  }
  func.func @transform_15(%arg0: i32) -> (i32, i32) {
    %c0_i32 = arith.constant 0 : i32
    %c0_i32_0 = arith.constant 0 : i32
    %c0_i32_1 = arith.constant 0 : i32
    return %c0_i32, %c0_i32_0 : i32, i32
  }
  func.func @transform_16(%arg0: i32) -> (i32, i32) {
    %c0_i32 = arith.constant 0 : i32
    %c0_i32_0 = arith.constant 0 : i32
    %c0_i32_1 = arith.constant 0 : i32
    return %c0_i32, %c0_i32_0 : i32, i32
  }
  func.func @transform_17(%arg0: i32) -> (i32, i32) {
    %c0_i32 = arith.constant 0 : i32
    %c0_i32_0 = arith.constant 0 : i32
    %c0_i32_1 = arith.constant 0 : i32
    return %c0_i32, %c0_i32_0 : i32, i32
  }
  func.func @transform_18(%arg0: i32) -> (i32, i32) {
    %c0_i32 = arith.constant 0 : i32
    %c0_i32_0 = arith.constant 0 : i32
    %c0_i32_1 = arith.constant 0 : i32
    return %c0_i32, %c0_i32_0 : i32, i32
  }
  func.func @transform_19(%arg0: i32) -> (i32, i32) {
    %c0_i32 = arith.constant 0 : i32
    %c0_i32_0 = arith.constant 0 : i32
    %c0_i32_1 = arith.constant 0 : i32
    return %c0_i32, %c0_i32_0 : i32, i32
  }
  func.func @transform_20(%arg0: i32) -> (i32, i32) {
    %c0_i32 = arith.constant 0 : i32
    %c0_i32_0 = arith.constant 0 : i32
    %c0_i32_1 = arith.constant 0 : i32
    return %c0_i32, %c0_i32_0 : i32, i32
  }
  func.func @transform_21(%arg0: i32) -> (i32, i32) {
    %c0_i32 = arith.constant 0 : i32
    %c0_i32_0 = arith.constant 0 : i32
    %c0_i32_1 = arith.constant 0 : i32
    return %c0_i32, %c0_i32_0 : i32, i32
  }
  func.func @transform_22(%arg0: i32) -> (i32, i32) {
    %c0_i32 = arith.constant 0 : i32
    %c0_i32_0 = arith.constant 0 : i32
    %c0_i32_1 = arith.constant 0 : i32
    return %c0_i32, %c0_i32_0 : i32, i32
  }
  func.func @transform_23(%arg0: i32) -> (i32, i32) {
    %c0_i32 = arith.constant 0 : i32
    %c0_i32_0 = arith.constant 0 : i32
    %c0_i32_1 = arith.constant 0 : i32
    return %c0_i32, %c0_i32_0 : i32, i32
  }
  func.func @transform_24(%arg0: i32) -> (i32, i32) {
    %c0_i32 = arith.constant 0 : i32
    %c0_i32_0 = arith.constant 0 : i32
    %c0_i32_1 = arith.constant 0 : i32
    return %c0_i32, %c0_i32_0 : i32, i32
  }
  func.func @transform_25(%arg0: i32) -> (i32, i32) {
    %c0_i32 = arith.constant 0 : i32
    %c0_i32_0 = arith.constant 0 : i32
    %c0_i32_1 = arith.constant 0 : i32
    return %c0_i32, %c0_i32_0 : i32, i32
  }
  func.func @transform_26(%arg0: i32) -> (i32, i32) {
    %c0_i32 = arith.constant 0 : i32
    %c0_i32_0 = arith.constant 0 : i32
    %c0_i32_1 = arith.constant 0 : i32
    return %c0_i32, %c0_i32_0 : i32, i32
  }
  func.func @transform_27(%arg0: i32) -> (i32, i32) {
    %c0_i32 = arith.constant 0 : i32
    %c0_i32_0 = arith.constant 0 : i32
    %c0_i32_1 = arith.constant 0 : i32
    return %c0_i32, %c0_i32_0 : i32, i32
  }
  func.func @transform_28(%arg0: i32) -> (i32, i32) {
    %c0_i32 = arith.constant 0 : i32
    %c0_i32_0 = arith.constant 0 : i32
    %c0_i32_1 = arith.constant 0 : i32
    return %c0_i32, %c0_i32_0 : i32, i32
  }
  func.func @transform_29(%arg0: i32) -> (i32, i32) {
    %c0_i32 = arith.constant 0 : i32
    %c0_i32_0 = arith.constant 0 : i32
    %c0_i32_1 = arith.constant 0 : i32
    return %c0_i32, %c0_i32_0 : i32, i32
  }
  func.func @transform_30(%arg0: i32) -> (i32, i32) {
    %c0_i32 = arith.constant 0 : i32
    %c0_i32_0 = arith.constant 0 : i32
    %c0_i32_1 = arith.constant 0 : i32
    return %c0_i32, %c0_i32_0 : i32, i32
  }
  func.func @transform_31(%arg0: i32) -> (i32, i32) {
    %c0_i32 = arith.constant 0 : i32
    %c0_i32_0 = arith.constant 0 : i32
    %c0_i32_1 = arith.constant 0 : i32
    return %c0_i32, %c0_i32_0 : i32, i32
  }
}

</mosaic_0001>

<llo_original>
// kernel: _lambda_.3
$region0: #{_lambda_.3}
  #allocation0 [shape = 'u32[]', space=smem, size = 0x4, offset = 0x4, fixed_abs, tag = 'smem constant byte address 0x4 - core index']
  #allocation1 [shape = 'u32[72,128]{1,0:T(1,128)}', space=vmem, size = 0x9000, scoped, tag = 'internal scratch']
  %s0 = inlined_call_operand.vmem [shape: bf16[48,32], index: 0, kind: input, shape index: {}]
  %s1 = inlined_call_operand.vmem [shape: bf16[48,4], index: 1, kind: input, shape index: {}]
  %s2 = inlined_call_operand.vmem [shape: f32[16,32], index: 2, kind: input, shape index: {}]
  %s3 = inlined_call_operand.vmem [shape: f32[48,3], index: 3, kind: input, shape index: {}]
  %s4 = inlined_call_operand.vmem [shape: f32[16,3], index: 4, kind: input, shape index: {}]
  %s5 = inlined_call_operand.vmem [shape: f32[16,1], index: 5, kind: input, shape index: {}]
  %s6 = inlined_call_operand.vmem [shape: bf16[48,16], index: 6, kind: input, shape index: {}]
  %s7 = inlined_call_operand.vmem [shape: bf16[48,16], index: 7, kind: input, shape index: {}]
  %s8 = inlined_call_operand.vmem [shape: bf16[32,4], index: 8, kind: input, shape index: {}]
  %s9 = inlined_call_operand.vmem [shape: bf16[32,65], index: 9, kind: input, shape index: {}]
  %s10 = inlined_call_operand.vmem [shape: bf16[4,65], index: 10, kind: input, shape index: {}]
  %s11 = inlined_call_operand.vmem [shape: bf16[32,65], index: 11, kind: input, shape index: {}]
  %s12 = inlined_call_operand.vmem [shape: bf16[32,65], index: 12, kind: input, shape index: {}]
  %s13 = inlined_call_operand.vmem [shape: f32[1,65], index: 13, kind: input, shape index: {}]
  %s14 = inlined_call_operand.vmem [shape: f32[1,64], index: 14, kind: input, shape index: {}]
  %s15 = inlined_call_operand.vmem [shape: f32[1,64], index: 15, kind: input, shape index: {}]
  %s16 = inlined_call_operand.vmem [shape: bf16[32,32], index: 16, kind: input, shape index: {}]
  %s17 = inlined_call_operand.vmem [shape: f32[1,32], index: 17, kind: input, shape index: {}]
  %s18 = inlined_call_operand.vmem [shape: bf16[32,4], index: 18, kind: input, shape index: {}]
  %s19 = inlined_call_operand.vmem [shape: f32[1,4], index: 19, kind: input, shape index: {}]
  %s20 = inlined_call_operand.vmem [shape: bf16[32,32], index: 20, kind: input, shape index: {}]
  %s21 = inlined_call_operand.vmem [shape: f32[1,32], index: 21, kind: input, shape index: {}]
  %s22 = inlined_call_operand.vmem [shape: f32[1,32], index: 22, kind: input, shape index: {}]
  %s23 = inlined_call_operand.vmem [shape: f32[1,32], index: 23, kind: input, shape index: {}]
  %s24 = inlined_call_operand.vmem [shape: bf16[32,32], index: 24, kind: input, shape index: {}]
  %s25 = inlined_call_operand.vmem [shape: f32[1,32], index: 25, kind: input, shape index: {}]
  %s26 = inlined_call_operand.vmem [shape: f32[16,3], index: 26, kind: output, shape index: {}]
  %s27 = sld [smem:[#allocation0]]
  $region114: #{_lambda_.3} parent=0
    _
  %s29 = ssub.s32 1, %s27
  %s30 = scalar_select 0, %s29, %s27
  // Predicated region
  $region2: #{_lambda_.3} parent=0 // pred_check
    _
  $region3: #{_lambda_.3} parent=0 // pred_check_branch
    %32 = sbr.rel (0) target = $region5
  $region4: #{_lambda_.3} parent=0 // pred_region
    _
  $region5: #{_lambda_.3} parent=0 // pred_fallthru
    _
  // Predicated region
  $region6: #{_lambda_.3} parent=0 // pred_check
    _
  $region7: #{_lambda_.3} parent=0 // pred_check_branch
    %34 = sbr.rel (0) target = $region9
  $region8: #{_lambda_.3} parent=0 // pred_region
    _
  $region9: #{_lambda_.3} parent=0 // pred_fallthru
    _
  // Predicated region
  $region10: #{_lambda_.3} parent=0 // pred_check
    _
  $region11: #{_lambda_.3} parent=0 // pred_check_branch
    %36 = sbr.rel (0) target = $region13
  $region12: #{_lambda_.3} parent=0 // pred_region
    _
  $region13: #{_lambda_.3} parent=0 // pred_fallthru
    _
  // Predicated region
  $region14: #{_lambda_.3} parent=0 // pred_check
    _
  $region15: #{_lambda_.3} parent=0 // pred_check_branch
    %38 = sbr.rel (0) target = $region17
  $region16: #{_lambda_.3} parent=0 // pred_region
    _
  $region17: #{_lambda_.3} parent=0 // pred_fallthru
    _
  // Predicated region
  $region18: #{_lambda_.3} parent=0 // pred_check
    _
  $region19: #{_lambda_.3} parent=0 // pred_check_branch
    %40 = sbr.rel (0) target = $region21
  $region20: #{_lambda_.3} parent=0 // pred_region
    _
  $region21: #{_lambda_.3} parent=0 // pred_fallthru
    _
  // Predicated region
  $region22: #{_lambda_.3} parent=0 // pred_check
    _
  $region23: #{_lambda_.3} parent=0 // pred_check_branch
    %42 = sbr.rel (0) target = $region25
  $region24: #{_lambda_.3} parent=0 // pred_region
    _
  $region25: #{_lambda_.3} parent=0 // pred_fallthru
    _
  // Predicated region
  $region26: #{_lambda_.3} parent=0 // pred_check
    _
  $region27: #{_lambda_.3} parent=0 // pred_check_branch
    %44 = sbr.rel (0) target = $region29
  $region28: #{_lambda_.3} parent=0 // pred_region
    _
  $region29: #{_lambda_.3} parent=0 // pred_fallthru
    _
  // Predicated region
  $region30: #{_lambda_.3} parent=0 // pred_check
    _
  $region31: #{_lambda_.3} parent=0 // pred_check_branch
    %46 = sbr.rel (0) target = $region33
  $region32: #{_lambda_.3} parent=0 // pred_region
    _
  $region33: #{_lambda_.3} parent=0 // pred_fallthru
    _
  // Predicated region
  $region34: #{_lambda_.3} parent=0 // pred_check
    _
  $region35: #{_lambda_.3} parent=0 // pred_check_branch
    %48 = sbr.rel (0) target = $region37
  $region36: #{_lambda_.3} parent=0 // pred_region
    _
  $region37: #{_lambda_.3} parent=0 // pred_fallthru
    _
  // Predicated region
  $region38: #{_lambda_.3} parent=0 // pred_check
    _
  $region39: #{_lambda_.3} parent=0 // pred_check_branch
    %50 = sbr.rel (0) target = $region41
  $region40: #{_lambda_.3} parent=0 // pred_region
    _
  $region41: #{_lambda_.3} parent=0 // pred_fallthru
    _
  // Predicated region
  $region42: #{_lambda_.3} parent=0 // pred_check
    _
  $region43: #{_lambda_.3} parent=0 // pred_check_branch
    %52 = sbr.rel (0) target = $region45
  $region44: #{_lambda_.3} parent=0 // pred_region
    _
  $region45: #{_lambda_.3} parent=0 // pred_fallthru
    _
  // Predicated region
  $region46: #{_lambda_.3} parent=0 // pred_check
    _
  $region47: #{_lambda_.3} parent=0 // pred_check_branch
    %54 = sbr.rel (0) target = $region49
  $region48: #{_lambda_.3} parent=0 // pred_region
    _
  $region49: #{_lambda_.3} parent=0 // pred_fallthru
    _
  // Predicated region
  $region50: #{_lambda_.3} parent=0 // pred_check
    _
  $region51: #{_lambda_.3} parent=0 // pred_check_branch
    %56 = sbr.rel (0) target = $region53
  $region52: #{_lambda_.3} parent=0 // pred_region
    _
  $region53: #{_lambda_.3} parent=0 // pred_fallthru
    _
  // Predicated region
  $region54: #{_lambda_.3} parent=0 // pred_check
    _
  $region55: #{_lambda_.3} parent=0 // pred_check_branch
    %58 = sbr.rel (0) target = $region57
  $region56: #{_lambda_.3} parent=0 // pred_region
    _
  $region57: #{_lambda_.3} parent=0 // pred_fallthru
    _
  // Predicated region
  $region58: #{_lambda_.3} parent=0 // pred_check
    _
  $region59: #{_lambda_.3} parent=0 // pred_check_branch
    %60 = sbr.rel (0) target = $region61
  $region60: #{_lambda_.3} parent=0 // pred_region
    _
  $region61: #{_lambda_.3} parent=0 // pred_fallthru
    _
  // Predicated region
  $region62: #{_lambda_.3} parent=0 // pred_check
    _
  $region63: #{_lambda_.3} parent=0 // pred_check_branch
    %62 = sbr.rel (0) target = $region65
  $region64: #{_lambda_.3} parent=0 // pred_region
    _
  $region65: #{_lambda_.3} parent=0 // pred_fallthru
    _
  // Predicated region
  $region66: #{_lambda_.3} parent=0 // pred_check
    _
  $region67: #{_lambda_.3} parent=0 // pred_check_branch
    %64 = sbr.rel (0) target = $region69
  $region68: #{_lambda_.3} parent=0 // pred_region
    _
  $region69: #{_lambda_.3} parent=0 // pred_fallthru
    _
  // Predicated region
  $region70: #{_lambda_.3} parent=0 // pred_check
    _
  $region71: #{_lambda_.3} parent=0 // pred_check_branch
    %66 = sbr.rel (0) target = $region73
  $region72: #{_lambda_.3} parent=0 // pred_region
    _
  $region73: #{_lambda_.3} parent=0 // pred_fallthru
    _
  // Predicated region
  $region74: #{_lambda_.3} parent=0 // pred_check
    _
  $region75: #{_lambda_.3} parent=0 // pred_check_branch
    %68 = sbr.rel (0) target = $region77
  $region76: #{_lambda_.3} parent=0 // pred_region
    _
  $region77: #{_lambda_.3} parent=0 // pred_fallthru
    _
  // Predicated region
  $region78: #{_lambda_.3} parent=0 // pred_check
    _
  $region79: #{_lambda_.3} parent=0 // pred_check_branch
    %70 = sbr.rel (0) target = $region81
  $region80: #{_lambda_.3} parent=0 // pred_region
    _
  $region81: #{_lambda_.3} parent=0 // pred_fallthru
    _
  // Predicated region
  $region82: #{_lambda_.3} parent=0 // pred_check
    _
  $region83: #{_lambda_.3} parent=0 // pred_check_branch
    %72 = sbr.rel (0) target = $region85
  $region84: #{_lambda_.3} parent=0 // pred_region
    _
  $region85: #{_lambda_.3} parent=0 // pred_fallthru
    _
  // Predicated region
  $region86: #{_lambda_.3} parent=0 // pred_check
    _
  $region87: #{_lambda_.3} parent=0 // pred_check_branch
    %74 = sbr.rel (0) target = $region89
  $region88: #{_lambda_.3} parent=0 // pred_region
    _
  $region89: #{_lambda_.3} parent=0 // pred_fallthru
    _
  // Predicated region
  $region90: #{_lambda_.3} parent=0 // pred_check
    _
  $region91: #{_lambda_.3} parent=0 // pred_check_branch
    %76 = sbr.rel (0) target = $region93
  $region92: #{_lambda_.3} parent=0 // pred_region
    _
  $region93: #{_lambda_.3} parent=0 // pred_fallthru
    _
  // Predicated region
  $region94: #{_lambda_.3} parent=0 // pred_check
    _
  $region95: #{_lambda_.3} parent=0 // pred_check_branch
    %78 = sbr.rel (0) target = $region97
  $region96: #{_lambda_.3} parent=0 // pred_region
    _
  $region97: #{_lambda_.3} parent=0 // pred_fallthru
    _
  // Predicated region
  $region98: #{_lambda_.3} parent=0 // pred_check
    _
  $region99: #{_lambda_.3} parent=0 // pred_check_branch
    %80 = sbr.rel (0) target = $region101
  $region100: #{_lambda_.3} parent=0 // pred_region
    _
  $region101: #{_lambda_.3} parent=0 // pred_fallthru
    _
  // Predicated region
  $region102: #{_lambda_.3} parent=0 // pred_check
    _
  $region103: #{_lambda_.3} parent=0 // pred_check_branch
    %82 = sbr.rel (0) target = $region105
  $region104: #{_lambda_.3} parent=0 // pred_region
    _
  $region105: #{_lambda_.3} parent=0 // pred_fallthru
    _
  %v84 = vld [vmem:[%s2] sm:$0xff]
  %v85 = vld [vmem:[%s2 + $0x8] sm:$0xff]
  %v86 = vld [vmem:[%s6] sm:$0xf]
  %v87 = vld [vmem:[%s6 + $0x4] sm:$0xf]
  %v88 = vld [vmem:[%s6 + $0x8] sm:$0xf]
  %v89 = vld [vmem:[%s6 + $0xc] sm:$0xf]
  %v90 = vld [vmem:[%s6 + $0x10] sm:$0xf]
  %v91 = vld [vmem:[%s6 + $0x14] sm:$0xf]
  %v92 = vld [vmem:[%s0] sm:$0xf]
  %v93 = vld [vmem:[%s0 + $0x4] sm:$0xf]
  %v94 = vld [vmem:[%s0 + $0x8] sm:$0xf]
  %v95 = vld [vmem:[%s0 + $0xc] sm:$0xf]
  %v96 = vld [vmem:[%s0 + $0x10] sm:$0xf]
  %v97 = vld [vmem:[%s0 + $0x14] sm:$0xf]
  %v98 = vld [vmem:[%s1] sm:$0xf]
  %v99 = vld [vmem:[%s1 + $0x4] sm:$0xf]
  %v100 = vld [vmem:[%s1 + $0x8] sm:$0xf]
  %v101 = vld [vmem:[%s1 + $0xc] sm:$0xf]
  %v102 = vld [vmem:[%s1 + $0x10] sm:$0xf]
  %v103 = vld [vmem:[%s1 + $0x14] sm:$0xf]
  %v104 = vld [vmem:[%s7] sm:$0xf]
  %v105 = vld [vmem:[%s7 + $0x4] sm:$0xf]
  %v106 = vld [vmem:[%s7 + $0x8] sm:$0xf]
  %v107 = vld [vmem:[%s7 + $0xc] sm:$0xf]
  %v108 = vld [vmem:[%s7 + $0x10] sm:$0xf]
  %v109 = vld [vmem:[%s7 + $0x14] sm:$0xf]
  %v110 = vld [vmem:[%s9] sm:$0xf]
  %v111 = vld [vmem:[%s9 + $0x4] sm:$0xf]
  %v112 = vld [vmem:[%s9 + $0x8] sm:$0xf]
  %v113 = vld [vmem:[%s9 + $0xc] sm:$0xf]
  %v114 = vld [vmem:[%s10] sm:$0x3]
  %v115 = vld [vmem:[%s11] sm:$0xf]
  %v116 = vld [vmem:[%s11 + $0x4] sm:$0xf]
  %v117 = vld [vmem:[%s11 + $0x8] sm:$0xf]
  %v118 = vld [vmem:[%s11 + $0xc] sm:$0xf]
  %v119 = vld [vmem:[%s12] sm:$0xf]
  %v120 = vld [vmem:[%s12 + $0x4] sm:$0xf]
  %v121 = vld [vmem:[%s12 + $0x8] sm:$0xf]
  %v122 = vld [vmem:[%s12 + $0xc] sm:$0xf]
  %v123 = vld [vmem:[%s13] sm:$0x1]
  %v124 = vpack.c.bf16 %v85, %v84
  %v129 = vunpack.c.l.b16 %v115
  %v130 = vunpack.c.l.b16 %v116
  %v131 = vunpack.c.l.b16 %v117
  %v132 = vunpack.c.l.b16 %v118
  %v133 = vpack.c.b16 %v130, %v129
  %v134 = vpack.c.b16 %v132, %v131
  %vm137 = vcmask 261120
  %v139 = vsel %vm137, %v124, 0
  %141 = vmatpush.bf16.msra.mxu0 0
  %142 = vmatpush.bf16.msra.mxu0 0
  %143 = vmatpush.bf16.msra.mxu0 0
  %144 = vmatpush.bf16.msra.mxu0 0
  %145 = vmatpush.bf16.msra.mxu0 0
  %146 = vmatpush.bf16.msra.mxu0 0
  %147 = vmatpush.bf16.msra.mxu0 %v134
  %148 = vmatpush.bf16.msra.mxu0 %v133
  %149 = vmatmul.bf16.gmra.mxu0 %v139
  %v150 = vpop.f32.mrf.mxu0
  %v151 = vadd.f32 0.0, %v150
  %v152 = vpop.f32.mrf.mxu0
  %v153 = vadd.f32 0.0, %v152
  %154 = vdwg.mxu0
  %v159 = vunpack.c.l.b16 %v119
  %v160 = vunpack.c.l.b16 %v120
  %v161 = vunpack.c.l.b16 %v121
  %v162 = vunpack.c.l.b16 %v122
  %v163 = vpack.c.b16 %v160, %v159
  %v164 = vpack.c.b16 %v162, %v161
  %167 = vmatpush.bf16.msra.mxu0 0
  %168 = vmatpush.bf16.msra.mxu0 0
  %169 = vmatpush.bf16.msra.mxu0 0
  %170 = vmatpush.bf16.msra.mxu0 0
  %171 = vmatpush.bf16.msra.mxu0 0
  %172 = vmatpush.bf16.msra.mxu0 0
  %173 = vmatpush.bf16.msra.mxu0 %v164
  %174 = vmatpush.bf16.msra.mxu0 %v163
  %175 = vmatmul.bf16.gmra.mxu0 %v139
  %v176 = vpop.f32.mrf.mxu0
  %v177 = vadd.f32 0.0, %v176
  %v178 = vpop.f32.mrf.mxu0
  %v179 = vadd.f32 0.0, %v178
  %180 = vdwg.mxu0
  %v187 = vunpack.c.l.b16 %v98
  %v188 = vunpack.c.l.b16 %v99
  %v189 = vunpack.c.l.b16 %v100
  %v190 = vunpack.c.l.b16 %v101
  %v191 = vunpack.c.l.b16 %v102
  %v192 = vunpack.c.l.b16 %v103
  %v193 = vpack.c.b16 %v188, %v187
  %v194 = vpack.c.b16 %v190, %v189
  %v195 = vpack.c.b16 %v192, %v191
  %vm196 = vcmask 31744
  %v198 = vsel %vm196, %v193, 0
  %v201 = vsel %vm196, %v194, 0
  %v204 = vsel %vm196, %v195, 0
  %vm206 = vcmask 1041408
  %v208 = vsel %vm206, %v114, 0
  %210 = vmatpush.bf16.msra.mxu0 0
  %211 = vmatpush.bf16.msra.mxu0 0
  %212 = vmatpush.bf16.msra.mxu0 0
  %213 = vmatpush.bf16.msra.mxu0 0
  %214 = vmatpush.bf16.msra.mxu0 0
  %215 = vmatpush.bf16.msra.mxu0 0
  %216 = vmatpush.bf16.msra.mxu0 0
  %217 = vmatpush.bf16.msra.mxu0 %v208
  %218 = vmatmul.bf16.gmra.mxu0 %v198
  %v219 = vpop.f32.mrf.mxu0
  %v220 = vadd.f32 0.0, %v219
  %v221 = vpop.f32.mrf.mxu0
  %v222 = vadd.f32 0.0, %v221
  %223 = vmatmul.bf16.gmra.mxu0 %v201
  %v224 = vpop.f32.mrf.mxu0
  %v225 = vadd.f32 0.0, %v224
  %v226 = vpop.f32.mrf.mxu0
  %v227 = vadd.f32 0.0, %v226
  %228 = vmatmul.bf16.gmra.mxu0 %v204
  %v229 = vpop.f32.mrf.mxu0
  %v230 = vadd.f32 0.0, %v229
  %v231 = vpop.f32.mrf.mxu0
  %v232 = vadd.f32 0.0, %v231
  %233 = vdwg.mxu0
  %v240 = vunpack.c.l.b16 %v92
  %v241 = vunpack.c.l.b16 %v93
  %v242 = vunpack.c.l.b16 %v94
  %v243 = vunpack.c.l.b16 %v95
  %v244 = vunpack.c.l.b16 %v96
  %v245 = vunpack.c.l.b16 %v97
  %v246 = vpack.c.b16 %v241, %v240
  %v247 = vpack.c.b16 %v243, %v242
  %v248 = vpack.c.b16 %v245, %v244
  %v253 = vunpack.c.l.b16 %v110
  %v254 = vunpack.c.l.b16 %v111
  %v255 = vunpack.c.l.b16 %v112
  %v256 = vunpack.c.l.b16 %v113
  %v257 = vpack.c.b16 %v254, %v253
  %v258 = vpack.c.b16 %v256, %v255
  %v262 = vsel %vm137, %v246, 0
  %v265 = vsel %vm137, %v247, 0
  %v268 = vsel %vm137, %v248, 0
  %270 = vmatpush.bf16.msra.mxu0 0
  %271 = vmatpush.bf16.msra.mxu0 0
  %272 = vmatpush.bf16.msra.mxu0 0
  %273 = vmatpush.bf16.msra.mxu0 0
  %274 = vmatpush.bf16.msra.mxu0 0
  %275 = vmatpush.bf16.msra.mxu0 0
  %276 = vmatpush.bf16.msra.mxu0 %v258
  %277 = vmatpush.bf16.msra.mxu0 %v257
  %278 = vmatmul.bf16.gmra.mxu0 %v262
  %v279 = vpop.f32.mrf.mxu0
  %v280 = vadd.f32 %v220, %v279
  %v281 = vpop.f32.mrf.mxu0
  %v282 = vadd.f32 %v222, %v281
  %283 = vmatmul.bf16.gmra.mxu0 %v265
  %v284 = vpop.f32.mrf.mxu0
  %v285 = vadd.f32 %v225, %v284
  %v286 = vpop.f32.mrf.mxu0
  %v287 = vadd.f32 %v227, %v286
  %288 = vmatmul.bf16.gmra.mxu0 %v268
  %v289 = vpop.f32.mrf.mxu0
  %v290 = vadd.f32 %v230, %v289
  %v291 = vpop.f32.mrf.mxu0
  %v292 = vadd.f32 %v232, %v291
  %293 = vdwg.mxu0
  %v294 = vpack.c.bf16 %v153, %v151
  %v301 = vunpack.c.l.b16 %v86
  %v302 = vunpack.c.l.b16 %v87
  %v303 = vunpack.c.l.b16 %v88
  %v304 = vunpack.c.l.b16 %v89
  %v305 = vunpack.c.l.b16 %v90
  %v306 = vunpack.c.l.b16 %v91
  %v307 = vpack.c.b16 %v302, %v301
  %v308 = vpack.c.b16 %v304, %v303
  %v309 = vpack.c.b16 %v306, %v305
  %vm310 = vcmask 130048
  %v312 = vsel %vm310, %v307, 0
  %v315 = vsel %vm310, %v308, 0
  %v318 = vsel %vm310, %v309, 0
  %320 = vmatpush.bf16.msra.mxu0 0
  %321 = vmatpush.bf16.msra.mxu0 0
  %322 = vmatpush.bf16.msra.mxu0 0
  %323 = vmatpush.bf16.msra.mxu0 0
  %324 = vmatpush.bf16.msra.mxu0 0
  %325 = vmatpush.bf16.msra.mxu0 0
  %326 = vmatpush.bf16.msra.mxu0 0
  %327 = vmatpush.bf16.msra.mxu0 %v294
  %328 = vmatmul.bf16.gmra.mxu0 %v312
  %v329 = vpop.f32.mrf.mxu0
  %v330 = vadd.f32 0.0, %v329
  %v331 = vpop.f32.mrf.mxu0
  %v332 = vadd.f32 0.0, %v331
  %333 = vmatmul.bf16.gmra.mxu0 %v315
  %v334 = vpop.f32.mrf.mxu0
  %v335 = vadd.f32 0.0, %v334
  %v336 = vpop.f32.mrf.mxu0
  %v337 = vadd.f32 0.0, %v336
  %338 = vmatmul.bf16.gmra.mxu0 %v318
  %v339 = vpop.f32.mrf.mxu0
  %v340 = vadd.f32 0.0, %v339
  %v341 = vpop.f32.mrf.mxu0
  %v342 = vadd.f32 0.0, %v341
  %343 = vdwg.mxu0
  %v344 = vadd.f32 %v280, %v330
  %v345 = vadd.f32 %v282, %v332
  %v346 = vadd.f32 %v285, %v335
  %v347 = vadd.f32 %v287, %v337
  %v348 = vadd.f32 %v290, %v340
  %v349 = vadd.f32 %v292, %v342
  %v350 = vpack.c.bf16 %v179, %v177
  %v357 = vunpack.c.l.b16 %v104
  %v358 = vunpack.c.l.b16 %v105
  %v359 = vunpack.c.l.b16 %v106
  %v360 = vunpack.c.l.b16 %v107
  %v361 = vunpack.c.l.b16 %v108
  %v362 = vunpack.c.l.b16 %v109
  %v363 = vpack.c.b16 %v358, %v357
  %v364 = vpack.c.b16 %v360, %v359
  %v365 = vpack.c.b16 %v362, %v361
  %v367 = vsel %vm310, %v363, 0
  %v370 = vsel %vm310, %v364, 0
  %v373 = vsel %vm310, %v365, 0
  %375 = vmatpush.bf16.msra.mxu0 0
  %376 = vmatpush.bf16.msra.mxu0 0
  %377 = vmatpush.bf16.msra.mxu0 0
  %378 = vmatpush.bf16.msra.mxu0 0
  %379 = vmatpush.bf16.msra.mxu0 0
  %380 = vmatpush.bf16.msra.mxu0 0
  %381 = vmatpush.bf16.msra.mxu0 0
  %382 = vmatpush.bf16.msra.mxu0 %v350
  %383 = vmatmul.bf16.gmra.mxu0 %v367
  %v384 = vpop.f32.mrf.mxu0
  %v385 = vadd.f32 0.0, %v384
  %v386 = vpop.f32.mrf.mxu0
  %v387 = vadd.f32 0.0, %v386
  %388 = vmatmul.bf16.gmra.mxu0 %v370
  %v389 = vpop.f32.mrf.mxu0
  %v390 = vadd.f32 0.0, %v389
  %v391 = vpop.f32.mrf.mxu0
  %v392 = vadd.f32 0.0, %v391
  %393 = vmatmul.bf16.gmra.mxu0 %v373
  %v394 = vpop.f32.mrf.mxu0
  %v395 = vadd.f32 0.0, %v394
  %v396 = vpop.f32.mrf.mxu0
  %v397 = vadd.f32 0.0, %v396
  %398 = vdwg.mxu0
  %v399 = vadd.f32 %v344, %v385
  %v400 = vadd.f32 %v345, %v387
  %v401 = vadd.f32 %v346, %v390
  %v402 = vadd.f32 %v347, %v392
  %v403 = vadd.f32 %v348, %v395
  %v404 = vadd.f32 %v349, %v397
  %v406 = vperm.slane %v123, 0
  %v408 = vadd.f32 %v399, %v406
  %v409 = vadd.f32 %v400, %v406
  %v410 = vadd.f32 %v401, %v406
  %v411 = vadd.f32 %v402, %v406
  %v412 = vadd.f32 %v403, %v406
  %v413 = vadd.f32 %v404, %v406
  %v414 = vld [vmem:[%s14] sm:$0x1]
  %v415 = vld [vmem:[%s15] sm:$0x1]
  %v416 = vld [vmem:[%s16] sm:$0xf]
  %v417 = vld [vmem:[%s16 + $0x4] sm:$0xf]
  %v418 = vld [vmem:[%s16 + $0x8] sm:$0xf]
  %v419 = vld [vmem:[%s16 + $0xc] sm:$0xf]
  %v420 = vld [vmem:[%s17] sm:$0x1]
  %v421 = vld [vmem:[%s18] sm:$0xf]
  %v422 = vld [vmem:[%s18 + $0x4] sm:$0xf]
  %v423 = vld [vmem:[%s18 + $0x8] sm:$0xf]
  %v424 = vld [vmem:[%s18 + $0xc] sm:$0xf]
  %v425 = vld [vmem:[%s19] sm:$0x1]
  %v426 = vsel %vm137, %v408, 0.0
  %427 = vadd.xlane.f32.xlu0 %v426
  %v428 = vpop.xlane.xlu0 %427
  %v429 = vsel %vm137, %v409, 0.0
  %430 = vadd.xlane.f32.xlu0 %v429
  %v431 = vpop.xlane.xlu0 %430
  %v432 = vsel %vm137, %v410, 0.0
  %433 = vadd.xlane.f32.xlu0 %v432
  %v434 = vpop.xlane.xlu0 %433
  %v435 = vsel %vm137, %v411, 0.0
  %436 = vadd.xlane.f32.xlu0 %v435
  %v437 = vpop.xlane.xlu0 %436
  %v438 = vsel %vm137, %v412, 0.0
  %439 = vadd.xlane.f32.xlu0 %v438
  %v440 = vpop.xlane.xlu0 %439
  %v441 = vsel %vm137, %v413, 0.0
  %442 = vadd.xlane.f32.xlu0 %v441
  %v443 = vpop.xlane.xlu0 %442
  %v444 = vrcp.pop 32.0
  %v445 = vmul.f32 32.0, %v444
  %v446 = vsub.f32 1.0, %v445
  %v447 = vmul.f32 %v444, %v446
  %v448 = vadd.f32 %v444, %v447
  %vm449 = vweird.f32 %v444
  %v450 = vsel %vm449, %v444, %v448
  %v451 = vmul.f32 %v428, %v450
  %v452 = vmul.f32 %v431, %v450
  %v453 = vmul.f32 %v434, %v450
  %v454 = vmul.f32 %v437, %v450
  %v455 = vmul.f32 %v440, %v450
  %v456 = vmul.f32 %v443, %v450
  %v457 = vsub.f32 %v408, %v451
  %v458 = vsub.f32 %v409, %v452
  %v459 = vsub.f32 %v410, %v453
  %v460 = vsub.f32 %v411, %v454
  %v461 = vsub.f32 %v412, %v455
  %v462 = vsub.f32 %v413, %v456
  %v463 = vmul.f32 %v457, %v457
  %v464 = vmul.f32 %v458, %v458
  %v465 = vmul.f32 %v459, %v459
  %v466 = vmul.f32 %v460, %v460
  %v467 = vmul.f32 %v461, %v461
  %v468 = vmul.f32 %v462, %v462
  %v469 = vsel %vm137, %v463, 0.0
  %470 = vadd.xlane.f32.xlu0 %v469
  %v471 = vpop.xlane.xlu0 %470
  %v472 = vsel %vm137, %v464, 0.0
  %473 = vadd.xlane.f32.xlu0 %v472
  %v474 = vpop.xlane.xlu0 %473
  %v475 = vsel %vm137, %v465, 0.0
  %476 = vadd.xlane.f32.xlu0 %v475
  %v477 = vpop.xlane.xlu0 %476
  %v478 = vsel %vm137, %v466, 0.0
  %479 = vadd.xlane.f32.xlu0 %v478
  %v480 = vpop.xlane.xlu0 %479
  %v481 = vsel %vm137, %v467, 0.0
  %482 = vadd.xlane.f32.xlu0 %v481
  %v483 = vpop.xlane.xlu0 %482
  %v484 = vsel %vm137, %v468, 0.0
  %485 = vadd.xlane.f32.xlu0 %v484
  %v486 = vpop.xlane.xlu0 %485
  %v487 = vmul.f32 %v471, %v450
  %v488 = vmul.f32 %v474, %v450
  %v489 = vmul.f32 %v477, %v450
  %v490 = vmul.f32 %v480, %v450
  %v491 = vmul.f32 %v483, %v450
  %v492 = vmul.f32 %v486, %v450
  %v493 = vadd.f32 %v487, 1e-05
  %v494 = vadd.f32 %v488, 1e-05
  %v495 = vadd.f32 %v489, 1e-05
  %v496 = vadd.f32 %v490, 1e-05
  %v497 = vadd.f32 %v491, 1e-05
  %v498 = vadd.f32 %v492, 1e-05
  %v499 = vrsqrt.pop %v493
  %v500 = vmul.f32 %v499, %v493
  %v501 = vmul.f32 %v500, %v499
  %v502 = vmul.f32 0.5, %v501
  %v503 = vsub.f32 1.5, %v502
  %v504 = vmul.f32 %v499, %v503
  %vm505 = vweird.f32 %v493
  %vm506 = vweird.f32 %v499
  %vm507 = vmor %vm505, %vm506
  %v508 = vsel %vm507, %v499, %v504
  %v509 = vrsqrt.pop %v494
  %v510 = vmul.f32 %v509, %v494
  %v511 = vmul.f32 %v510, %v509
  %v512 = vmul.f32 0.5, %v511
  %v513 = vsub.f32 1.5, %v512
  %v514 = vmul.f32 %v509, %v513
  %vm515 = vweird.f32 %v494
  %vm516 = vweird.f32 %v509
  %vm517 = vmor %vm515, %vm516
  %v518 = vsel %vm517, %v509, %v514
  %v519 = vrsqrt.pop %v495
  %v520 = vmul.f32 %v519, %v495
  %v521 = vmul.f32 %v520, %v519
  %v522 = vmul.f32 0.5, %v521
  %v523 = vsub.f32 1.5, %v522
  %v524 = vmul.f32 %v519, %v523
  %vm525 = vweird.f32 %v495
  %vm526 = vweird.f32 %v519
  %vm527 = vmor %vm525, %vm526
  %v528 = vsel %vm527, %v519, %v524
  %v529 = vrsqrt.pop %v496
  %v530 = vmul.f32 %v529, %v496
  %v531 = vmul.f32 %v530, %v529
  %v532 = vmul.f32 0.5, %v531
  %v533 = vsub.f32 1.5, %v532
  %v534 = vmul.f32 %v529, %v533
  %vm535 = vweird.f32 %v496
  %vm536 = vweird.f32 %v529
  %vm537 = vmor %vm535, %vm536
  %v538 = vsel %vm537, %v529, %v534
  %v539 = vrsqrt.pop %v497
  %v540 = vmul.f32 %v539, %v497
  %v541 = vmul.f32 %v540, %v539
  %v542 = vmul.f32 0.5, %v541
  %v543 = vsub.f32 1.5, %v542
  %v544 = vmul.f32 %v539, %v543
  %vm545 = vweird.f32 %v497
  %vm546 = vweird.f32 %v539
  %vm547 = vmor %vm545, %vm546
  %v548 = vsel %vm547, %v539, %v544
  %v549 = vrsqrt.pop %v498
  %v550 = vmul.f32 %v549, %v498
  %v551 = vmul.f32 %v550, %v549
  %v552 = vmul.f32 0.5, %v551
  %v553 = vsub.f32 1.5, %v552
  %v554 = vmul.f32 %v549, %v553
  %vm555 = vweird.f32 %v498
  %vm556 = vweird.f32 %v549
  %vm557 = vmor %vm555, %vm556
  %v558 = vsel %vm557, %v549, %v554
  %v559 = vmul.f32 %v457, %v508
  %v560 = vmul.f32 %v458, %v518
  %v561 = vmul.f32 %v459, %v528
  %v562 = vmul.f32 %v460, %v538
  %v563 = vmul.f32 %v461, %v548
  %v564 = vmul.f32 %v462, %v558
  %v566 = vperm.slane %v414, 0
  %v568 = vmul.f32 %v559, %v566
  %v569 = vmul.f32 %v560, %v566
  %v570 = vmul.f32 %v561, %v566
  %v571 = vmul.f32 %v562, %v566
  %v572 = vmul.f32 %v563, %v566
  %v573 = vmul.f32 %v564, %v566
  %v575 = vperm.slane %v415, 0
  %v577 = vadd.f32 %v568, %v575
  %v578 = vadd.f32 %v569, %v575
  %v579 = vadd.f32 %v570, %v575
  %v580 = vadd.f32 %v571, %v575
  %v581 = vadd.f32 %v572, %v575
  %v582 = vadd.f32 %v573, %v575
  %v583 = vmax.f32 %v577, 0.0
  %v584 = vmax.f32 %v578, 0.0
  %v585 = vmax.f32 %v579, 0.0
  %v586 = vmax.f32 %v580, 0.0
  %v587 = vmax.f32 %v581, 0.0
  %v588 = vmax.f32 %v582, 0.0
  %595 = vrot.lane.b32.xlu0 %v408, 96
  %v596 = vpop.permute.xlu0 %595
  %597 = vrot.lane.b32.xlu0 %v409, 96
  %v598 = vpop.permute.xlu0 %597
  %599 = vrot.lane.b32.xlu0 %v410, 96
  %v600 = vpop.permute.xlu0 %599
  %601 = vrot.lane.b32.xlu0 %v411, 96
  %v602 = vpop.permute.xlu0 %601
  %603 = vrot.lane.b32.xlu0 %v412, 96
  %v604 = vpop.permute.xlu0 %603
  %605 = vrot.lane.b32.xlu0 %v413, 96
  %v606 = vpop.permute.xlu0 %605
  %v613 = vsel %vm137, %v596, 0.0
  %614 = vadd.xlane.f32.xlu0 %v613
  %v615 = vpop.xlane.xlu0 %614
  %v616 = vsel %vm137, %v598, 0.0
  %617 = vadd.xlane.f32.xlu0 %v616
  %v618 = vpop.xlane.xlu0 %617
  %v619 = vsel %vm137, %v600, 0.0
  %620 = vadd.xlane.f32.xlu0 %v619
  %v621 = vpop.xlane.xlu0 %620
  %v622 = vsel %vm137, %v602, 0.0
  %623 = vadd.xlane.f32.xlu0 %v622
  %v624 = vpop.xlane.xlu0 %623
  %v625 = vsel %vm137, %v604, 0.0
  %626 = vadd.xlane.f32.xlu0 %v625
  %v627 = vpop.xlane.xlu0 %626
  %v628 = vsel %vm137, %v606, 0.0
  %629 = vadd.xlane.f32.xlu0 %v628
  %v630 = vpop.xlane.xlu0 %629
  %v631 = vmul.f32 %v615, %v450
  %v632 = vmul.f32 %v618, %v450
  %v633 = vmul.f32 %v621, %v450
  %v634 = vmul.f32 %v624, %v450
  %v635 = vmul.f32 %v627, %v450
  %v636 = vmul.f32 %v630, %v450
  %v637 = vsub.f32 %v408, %v631
  %v638 = vsub.f32 %v409, %v632
  %v639 = vsub.f32 %v410, %v633
  %v640 = vsub.f32 %v411, %v634
  %v641 = vsub.f32 %v412, %v635
  %v642 = vsub.f32 %v413, %v636
  %v643 = vmul.f32 %v637, %v637
  %v644 = vmul.f32 %v638, %v638
  %v645 = vmul.f32 %v639, %v639
  %v646 = vmul.f32 %v640, %v640
  %v647 = vmul.f32 %v641, %v641
  %v648 = vmul.f32 %v642, %v642
  %655 = vrot.lane.b32.xlu0 %v643, 96
  %v656 = vpop.permute.xlu0 %655
  %657 = vrot.lane.b32.xlu0 %v644, 96
  %v658 = vpop.permute.xlu0 %657
  %659 = vrot.lane.b32.xlu0 %v645, 96
  %v660 = vpop.permute.xlu0 %659
  %661 = vrot.lane.b32.xlu0 %v646, 96
  %v662 = vpop.permute.xlu0 %661
  %663 = vrot.lane.b32.xlu0 %v647, 96
  %v664 = vpop.permute.xlu0 %663
  %665 = vrot.lane.b32.xlu0 %v648, 96
  %v666 = vpop.permute.xlu0 %665
  %v673 = vsel %vm137, %v656, 0.0
  %674 = vadd.xlane.f32.xlu0 %v673
  %v675 = vpop.xlane.xlu0 %674
  %v676 = vsel %vm137, %v658, 0.0
  %677 = vadd.xlane.f32.xlu0 %v676
  %v678 = vpop.xlane.xlu0 %677
  %v679 = vsel %vm137, %v660, 0.0
  %680 = vadd.xlane.f32.xlu0 %v679
  %v681 = vpop.xlane.xlu0 %680
  %v682 = vsel %vm137, %v662, 0.0
  %683 = vadd.xlane.f32.xlu0 %v682
  %v684 = vpop.xlane.xlu0 %683
  %v685 = vsel %vm137, %v664, 0.0
  %686 = vadd.xlane.f32.xlu0 %v685
  %v687 = vpop.xlane.xlu0 %686
  %v688 = vsel %vm137, %v666, 0.0
  %689 = vadd.xlane.f32.xlu0 %v688
  %v690 = vpop.xlane.xlu0 %689
  %v691 = vmul.f32 %v675, %v450
  %v692 = vmul.f32 %v678, %v450
  %v693 = vmul.f32 %v681, %v450
  %v694 = vmul.f32 %v684, %v450
  %v695 = vmul.f32 %v687, %v450
  %v696 = vmul.f32 %v690, %v450
  %v697 = vadd.f32 %v691, 1e-05
  %v698 = vadd.f32 %v692, 1e-05
  %v699 = vadd.f32 %v693, 1e-05
  %v700 = vadd.f32 %v694, 1e-05
  %v701 = vadd.f32 %v695, 1e-05
  %v702 = vadd.f32 %v696, 1e-05
  %v703 = vrsqrt.pop %v697
  %v704 = vmul.f32 %v703, %v697
  %v705 = vmul.f32 %v704, %v703
  %v706 = vmul.f32 0.5, %v705
  %v707 = vsub.f32 1.5, %v706
  %v708 = vmul.f32 %v703, %v707
  %vm709 = vweird.f32 %v697
  %vm710 = vweird.f32 %v703
  %vm711 = vmor %vm709, %vm710
  %v712 = vsel %vm711, %v703, %v708
  %v713 = vrsqrt.pop %v698
  %v714 = vmul.f32 %v713, %v698
  %v715 = vmul.f32 %v714, %v713
  %v716 = vmul.f32 0.5, %v715
  %v717 = vsub.f32 1.5, %v716
  %v718 = vmul.f32 %v713, %v717
  %vm719 = vweird.f32 %v698
  %vm720 = vweird.f32 %v713
  %vm721 = vmor %vm719, %vm720
  %v722 = vsel %vm721, %v713, %v718
  %v723 = vrsqrt.pop %v699
  %v724 = vmul.f32 %v723, %v699
  %v725 = vmul.f32 %v724, %v723
  %v726 = vmul.f32 0.5, %v725
  %v727 = vsub.f32 1.5, %v726
  %v728 = vmul.f32 %v723, %v727
  %vm729 = vweird.f32 %v699
  %vm730 = vweird.f32 %v723
  %vm731 = vmor %vm729, %vm730
  %v732 = vsel %vm731, %v723, %v728
  %v733 = vrsqrt.pop %v700
  %v734 = vmul.f32 %v733, %v700
  %v735 = vmul.f32 %v734, %v733
  %v736 = vmul.f32 0.5, %v735
  %v737 = vsub.f32 1.5, %v736
  %v738 = vmul.f32 %v733, %v737
  %vm739 = vweird.f32 %v700
  %vm740 = vweird.f32 %v733
  %vm741 = vmor %vm739, %vm740
  %v742 = vsel %vm741, %v733, %v738
  %v743 = vrsqrt.pop %v701
  %v744 = vmul.f32 %v743, %v701
  %v745 = vmul.f32 %v744, %v743
  %v746 = vmul.f32 0.5, %v745
  %v747 = vsub.f32 1.5, %v746
  %v748 = vmul.f32 %v743, %v747
  %vm749 = vweird.f32 %v701
  %vm750 = vweird.f32 %v743
  %vm751 = vmor %vm749, %vm750
  %v752 = vsel %vm751, %v743, %v748
  %v753 = vrsqrt.pop %v702
  %v754 = vmul.f32 %v753, %v702
  %v755 = vmul.f32 %v754, %v753
  %v756 = vmul.f32 0.5, %v755
  %v757 = vsub.f32 1.5, %v756
  %v758 = vmul.f32 %v753, %v757
  %vm759 = vweird.f32 %v702
  %vm760 = vweird.f32 %v753
  %vm761 = vmor %vm759, %vm760
  %v762 = vsel %vm761, %v753, %v758
  %v763 = vmul.f32 %v637, %v712
  %v764 = vmul.f32 %v638, %v722
  %v765 = vmul.f32 %v639, %v732
  %v766 = vmul.f32 %v640, %v742
  %v767 = vmul.f32 %v641, %v752
  %v768 = vmul.f32 %v642, %v762
  %v769 = vmul.f32 %v763, %v566
  %v770 = vmul.f32 %v764, %v566
  %v771 = vmul.f32 %v765, %v566
  %v772 = vmul.f32 %v766, %v566
  %v773 = vmul.f32 %v767, %v566
  %v774 = vmul.f32 %v768, %v566
  %v775 = vadd.f32 %v769, %v575
  %v776 = vadd.f32 %v770, %v575
  %v777 = vadd.f32 %v771, %v575
  %v778 = vadd.f32 %v772, %v575
  %v779 = vadd.f32 %v773, %v575
  %v780 = vadd.f32 %v774, %v575
  %v781 = vmax.f32 %v775, 0.0
  %v782 = vmax.f32 %v776, 0.0
  %v783 = vmax.f32 %v777, 0.0
  %v784 = vmax.f32 %v778, 0.0
  %v785 = vmax.f32 %v779, 0.0
  %v786 = vmax.f32 %v780, 0.0
  %v787 = vxor.u32 %v408, 2147483648
  %v788 = vxor.u32 %v409, 2147483648
  %v789 = vxor.u32 %v410, 2147483648
  %v790 = vxor.u32 %v411, 2147483648
  %v791 = vxor.u32 %v412, 2147483648
  %v792 = vxor.u32 %v413, 2147483648
  %v793 = vmul.f32 %v787, 1.442695
  %v794 = vpow.pop %v793
  %v795 = vmul.f32 %v788, 1.442695
  %v796 = vpow.pop %v795
  %v797 = vmul.f32 %v789, 1.442695
  %v798 = vpow.pop %v797
  %v799 = vmul.f32 %v790, 1.442695
  %v800 = vpow.pop %v799
  %v801 = vmul.f32 %v791, 1.442695
  %v802 = vpow.pop %v801
  %v803 = vmul.f32 %v792, 1.442695
  %v804 = vpow.pop %v803
  %v805 = vadd.f32 %v794, 1.0
  %v806 = vadd.f32 %v796, 1.0
  %v807 = vadd.f32 %v798, 1.0
  %v808 = vadd.f32 %v800, 1.0
  %v809 = vadd.f32 %v802, 1.0
  %v810 = vadd.f32 %v804, 1.0
  %v811 = vrcp.pop %v805
  %v812 = vmul.f32 %v805, %v811
  %v813 = vsub.f32 1.0, %v812
  %v814 = vmul.f32 %v811, %v813
  %v815 = vadd.f32 %v811, %v814
  %vm816 = vweird.f32 %v805
  %vm817 = vweird.f32 %v811
  %vm818 = vmor %vm816, %vm817
  %v819 = vsel %vm818, %v811, %v815
  %v820 = vand.u32 2147483647, %v805
  %vm821 = vcmp.eq.f32.partialorder %v820, 8.507059e+37
  %v822 = vand.u32 %v805, 2147483648
  %v823 = vor.u32 1.1754944e-38, %v822
  %v824 = vsel %vm821, %v823, %v819
  %v825 = vmul.f32 1.0, %v824
  %v826 = vrcp.pop %v806
  %v827 = vmul.f32 %v806, %v826
  %v828 = vsub.f32 1.0, %v827
  %v829 = vmul.f32 %v826, %v828
  %v830 = vadd.f32 %v826, %v829
  %vm831 = vweird.f32 %v806
  %vm832 = vweird.f32 %v826
  %vm833 = vmor %vm831, %vm832
  %v834 = vsel %vm833, %v826, %v830
  %v835 = vand.u32 2147483647, %v806
  %vm836 = vcmp.eq.f32.partialorder %v835, 8.507059e+37
  %v837 = vand.u32 %v806, 2147483648
  %v838 = vor.u32 1.1754944e-38, %v837
  %v839 = vsel %vm836, %v838, %v834
  %v840 = vmul.f32 1.0, %v839
  %v841 = vrcp.pop %v807
  %v842 = vmul.f32 %v807, %v841
  %v843 = vsub.f32 1.0, %v842
  %v844 = vmul.f32 %v841, %v843
  %v845 = vadd.f32 %v841, %v844
  %vm846 = vweird.f32 %v807
  %vm847 = vweird.f32 %v841
  %vm848 = vmor %vm846, %vm847
  %v849 = vsel %vm848, %v841, %v845
  %v850 = vand.u32 2147483647, %v807
  %vm851 = vcmp.eq.f32.partialorder %v850, 8.507059e+37
  %v852 = vand.u32 %v807, 2147483648
  %v853 = vor.u32 1.1754944e-38, %v852
  %v854 = vsel %vm851, %v853, %v849
  %v855 = vmul.f32 1.0, %v854
  %v856 = vrcp.pop %v808
  %v857 = vmul.f32 %v808, %v856
  %v858 = vsub.f32 1.0, %v857
  %v859 = vmul.f32 %v856, %v858
  %v860 = vadd.f32 %v856, %v859
  %vm861 = vweird.f32 %v808
  %vm862 = vweird.f32 %v856
  %vm863 = vmor %vm861, %vm862
  %v864 = vsel %vm863, %v856, %v860
  %v865 = vand.u32 2147483647, %v808
  %vm866 = vcmp.eq.f32.partialorder %v865, 8.507059e+37
  %v867 = vand.u32 %v808, 2147483648
  %v868 = vor.u32 1.1754944e-38, %v867
  %v869 = vsel %vm866, %v868, %v864
  %v870 = vmul.f32 1.0, %v869
  %v871 = vrcp.pop %v809
  %v872 = vmul.f32 %v809, %v871
  %v873 = vsub.f32 1.0, %v872
  %v874 = vmul.f32 %v871, %v873
  %v875 = vadd.f32 %v871, %v874
  %vm876 = vweird.f32 %v809
  %vm877 = vweird.f32 %v871
  %vm878 = vmor %vm876, %vm877
  %v879 = vsel %vm878, %v871, %v875
  %v880 = vand.u32 2147483647, %v809
  %vm881 = vcmp.eq.f32.partialorder %v880, 8.507059e+37
  %v882 = vand.u32 %v809, 2147483648
  %v883 = vor.u32 1.1754944e-38, %v882
  %v884 = vsel %vm881, %v883, %v879
  %v885 = vmul.f32 1.0, %v884
  %v886 = vrcp.pop %v810
  %v887 = vmul.f32 %v810, %v886
  %v888 = vsub.f32 1.0, %v887
  %v889 = vmul.f32 %v886, %v888
  %v890 = vadd.f32 %v886, %v889
  %vm891 = vweird.f32 %v810
  %vm892 = vweird.f32 %v886
  %vm893 = vmor %vm891, %vm892
  %v894 = vsel %vm893, %v886, %v890
  %v895 = vand.u32 2147483647, %v810
  %vm896 = vcmp.eq.f32.partialorder %v895, 8.507059e+37
  %v897 = vand.u32 %v810, 2147483648
  %v898 = vor.u32 1.1754944e-38, %v897
  %v899 = vsel %vm896, %v898, %v894
  %v900 = vmul.f32 1.0, %v899
  %v901 = vpack.c.bf16 %v584, %v583
  %v902 = vpack.c.bf16 %v586, %v585
  %v903 = vpack.c.bf16 %v588, %v587
  %v905 = vperm.slane %v420, 0
  %v911 = vunpack.c.l.b16 %v416
  %v912 = vunpack.c.l.b16 %v417
  %v913 = vunpack.c.l.b16 %v418
  %v914 = vunpack.c.l.b16 %v419
  %v915 = vpack.c.b16 %v912, %v911
  %v916 = vpack.c.b16 %v914, %v913
  %v920 = vsel %vm137, %v901, 0
  %v923 = vsel %vm137, %v902, 0
  %v926 = vsel %vm137, %v903, 0
  %928 = vmatpush.bf16.msra.mxu0 0
  %929 = vmatpush.bf16.msra.mxu0 0
  %930 = vmatpush.bf16.msra.mxu0 0
  %931 = vmatpush.bf16.msra.mxu0 0
  %932 = vmatpush.bf16.msra.mxu0 0
  %933 = vmatpush.bf16.msra.mxu0 0
  %934 = vmatpush.bf16.msra.mxu0 %v916
  %935 = vmatpush.bf16.msra.mxu0 %v915
  %936 = vmatmul.bf16.gmra.mxu0 %v920
  %v937 = vpop.f32.mrf.mxu0
  %v938 = vadd.f32 %v905, %v937
  %v939 = vpop.f32.mrf.mxu0
  %v940 = vadd.f32 %v905, %v939
  %941 = vmatmul.bf16.gmra.mxu0 %v923
  %v942 = vpop.f32.mrf.mxu0
  %v943 = vadd.f32 %v905, %v942
  %v944 = vpop.f32.mrf.mxu0
  %v945 = vadd.f32 %v905, %v944
  %946 = vmatmul.bf16.gmra.mxu0 %v926
  %v947 = vpop.f32.mrf.mxu0
  %v948 = vadd.f32 %v905, %v947
  %v949 = vpop.f32.mrf.mxu0
  %v950 = vadd.f32 %v905, %v949
  %951 = vdwg.mxu0
  %v952 = vpack.c.bf16 %v782, %v781
  %v953 = vpack.c.bf16 %v784, %v783
  %v954 = vpack.c.bf16 %v786, %v785
  %v956 = vperm.slane %v425, 0
  %961 = vrot.lane.b32.xlu0 %v952, 96
  %v962 = vpop.permute.xlu0 %961
  %963 = vrot.lane.b32.xlu0 %v953, 96
  %v964 = vpop.permute.xlu0 %963
  %965 = vrot.lane.b32.xlu0 %v954, 96
  %v966 = vpop.permute.xlu0 %965
  %v971 = vunpack.c.l.b16 %v421
  %v972 = vunpack.c.l.b16 %v422
  %v973 = vunpack.c.l.b16 %v423
  %v974 = vunpack.c.l.b16 %v424
  %v975 = vpack.c.b16 %v972, %v971
  %v976 = vpack.c.b16 %v974, %v973
  %v980 = vsel %vm137, %v962, 0
  %v983 = vsel %vm137, %v964, 0
  %v986 = vsel %vm137, %v966, 0
  %988 = vmatpush.bf16.msra.mxu0 0
  %989 = vmatpush.bf16.msra.mxu0 0
  %990 = vmatpush.bf16.msra.mxu0 0
  %991 = vmatpush.bf16.msra.mxu0 0
  %992 = vmatpush.bf16.msra.mxu0 0
  %993 = vmatpush.bf16.msra.mxu0 0
  %994 = vmatpush.bf16.msra.mxu0 %v976
  %995 = vmatpush.bf16.msra.mxu0 %v975
  %996 = vmatmul.bf16.gmra.mxu0 %v980
  %v997 = vpop.f32.mrf.mxu0
  %v998 = vadd.f32 %v956, %v997
  %v999 = vpop.f32.mrf.mxu0
  %v1000 = vadd.f32 %v956, %v999
  %1001 = vmatmul.bf16.gmra.mxu0 %v983
  %v1002 = vpop.f32.mrf.mxu0
  %v1003 = vadd.f32 %v956, %v1002
  %v1004 = vpop.f32.mrf.mxu0
  %v1005 = vadd.f32 %v956, %v1004
  %1006 = vmatmul.bf16.gmra.mxu0 %v986
  %v1007 = vpop.f32.mrf.mxu0
  %v1008 = vadd.f32 %v956, %v1007
  %v1009 = vpop.f32.mrf.mxu0
  %v1010 = vadd.f32 %v956, %v1009
  %1011 = vdwg.mxu0
  %v1012 = vld [vmem:[%s20] sm:$0xf]
  %v1013 = vld [vmem:[%s20 + $0x4] sm:$0xf]
  %v1014 = vld [vmem:[%s20 + $0x8] sm:$0xf]
  %v1015 = vld [vmem:[%s20 + $0xc] sm:$0xf]
  %v1016 = vld [vmem:[%s21] sm:$0x1]
  %v1017 = vld [vmem:[%s22] sm:$0x1]
  %v1018 = vld [vmem:[%s23] sm:$0x1]
  %v1019 = vld [vmem:[%s24] sm:$0xf]
  %v1020 = vld [vmem:[%s24 + $0x4] sm:$0xf]
  %v1021 = vld [vmem:[%s24 + $0x8] sm:$0xf]
  %v1022 = vld [vmem:[%s24 + $0xc] sm:$0xf]
  %v1023 = vld [vmem:[%s25] sm:$0x1]
  %v1025 = vperm.slane %v1016, 0
  %v1031 = vunpack.c.l.b16 %v1012
  %v1032 = vunpack.c.l.b16 %v1013
  %v1033 = vunpack.c.l.b16 %v1014
  %v1034 = vunpack.c.l.b16 %v1015
  %v1035 = vpack.c.b16 %v1032, %v1031
  %v1036 = vpack.c.b16 %v1034, %v1033
  %1039 = vmatpush.bf16.msra.mxu0 0
  %1040 = vmatpush.bf16.msra.mxu0 0
  %1041 = vmatpush.bf16.msra.mxu0 0
  %1042 = vmatpush.bf16.msra.mxu0 0
  %1043 = vmatpush.bf16.msra.mxu0 0
  %1044 = vmatpush.bf16.msra.mxu0 0
  %1045 = vmatpush.bf16.msra.mxu0 %v1036
  %1046 = vmatpush.bf16.msra.mxu0 %v1035
  %1047 = vmatmul.bf16.gmra.mxu0 %v139
  %v1048 = vpop.f32.mrf.mxu0
  %v1049 = vadd.f32 %v1025, %v1048
  %v1050 = vpop.f32.mrf.mxu0
  %v1051 = vadd.f32 %v1025, %v1050
  %1052 = vdwg.mxu0
  %v1053 = vsel %vm137, %v1049, 0.0
  %1054 = vadd.xlane.f32.xlu0 %v1053
  %v1055 = vpop.xlane.xlu0 %1054
  %v1056 = vsel %vm137, %v1051, 0.0
  %1057 = vadd.xlane.f32.xlu0 %v1056
  %v1058 = vpop.xlane.xlu0 %1057
  %v1059 = vmul.f32 %v1055, %v450
  %v1060 = vmul.f32 %v1058, %v450
  %v1061 = vsub.f32 %v1049, %v1059
  %v1062 = vsub.f32 %v1051, %v1060
  %v1063 = vmul.f32 %v1061, %v1061
  %v1064 = vmul.f32 %v1062, %v1062
  %v1065 = vsel %vm137, %v1063, 0.0
  %1066 = vadd.xlane.f32.xlu0 %v1065
  %v1067 = vpop.xlane.xlu0 %1066
  %v1068 = vsel %vm137, %v1064, 0.0
  %1069 = vadd.xlane.f32.xlu0 %v1068
  %v1070 = vpop.xlane.xlu0 %1069
  %v1071 = vmul.f32 %v1067, %v450
  %v1072 = vmul.f32 %v1070, %v450
  %v1073 = vadd.f32 %v1071, 1e-05
  %v1074 = vadd.f32 %v1072, 1e-05
  %v1075 = vrsqrt.pop %v1073
  %v1076 = vmul.f32 %v1075, %v1073
  %v1077 = vmul.f32 %v1076, %v1075
  %v1078 = vmul.f32 0.5, %v1077
  %v1079 = vsub.f32 1.5, %v1078
  %v1080 = vmul.f32 %v1075, %v1079
  %vm1081 = vweird.f32 %v1073
  %vm1082 = vweird.f32 %v1075
  %vm1083 = vmor %vm1081, %vm1082
  %v1084 = vsel %vm1083, %v1075, %v1080
  %v1085 = vrsqrt.pop %v1074
  %v1086 = vmul.f32 %v1085, %v1074
  %v1087 = vmul.f32 %v1086, %v1085
  %v1088 = vmul.f32 0.5, %v1087
  %v1089 = vsub.f32 1.5, %v1088
  %v1090 = vmul.f32 %v1085, %v1089
  %vm1091 = vweird.f32 %v1074
  %vm1092 = vweird.f32 %v1085
  %vm1093 = vmor %vm1091, %vm1092
  %v1094 = vsel %vm1093, %v1085, %v1090
  %v1095 = vmul.f32 %v1061, %v1084
  %v1096 = vmul.f32 %v1062, %v1094
  %v1098 = vperm.slane %v1017, 0
  %v1100 = vmul.f32 %v1095, %v1098
  %v1101 = vmul.f32 %v1096, %v1098
  %v1103 = vperm.slane %v1018, 0
  %v1105 = vadd.f32 %v1100, %v1103
  %v1106 = vadd.f32 %v1101, %v1103
  %v1107 = vmax.f32 %v1105, 0.0
  %v1108 = vmax.f32 %v1106, 0.0
  %v1109 = vpack.c.bf16 %v1108, %v1107
  %v1111 = vperm.slane %v1023, 0
  %v1117 = vunpack.c.l.b16 %v1019
  %v1118 = vunpack.c.l.b16 %v1020
  %v1119 = vunpack.c.l.b16 %v1021
  %v1120 = vunpack.c.l.b16 %v1022
  %v1121 = vpack.c.b16 %v1118, %v1117
  %v1122 = vpack.c.b16 %v1120, %v1119
  %v1126 = vsel %vm137, %v1109, 0
  %1128 = vmatpush.bf16.msra.mxu0 0
  %1129 = vmatpush.bf16.msra.mxu0 0
  %1130 = vmatpush.bf16.msra.mxu0 0
  %1131 = vmatpush.bf16.msra.mxu0 0
  %1132 = vmatpush.bf16.msra.mxu0 0
  %1133 = vmatpush.bf16.msra.mxu0 0
  %1134 = vmatpush.bf16.msra.mxu0 %v1122
  %1135 = vmatpush.bf16.msra.mxu0 %v1121
  %1136 = vmatmul.bf16.gmra.mxu0 %v1126
  %v1137 = vpop.f32.mrf.mxu0
  %v1138 = vadd.f32 %v1111, %v1137
  %v1139 = vpop.f32.mrf.mxu0
  %v1140 = vadd.f32 %v1111, %v1139
  %1141 = vdwg.mxu0
  %v1142 = vpack.c.bf16 %v1140, %v1138
  %1143 = vmatpush.bf16.msra.mxu0 0
  %1144 = vmatpush.bf16.msra.mxu0 0
  %1145 = vmatpush.bf16.msra.mxu0 0
  %1146 = vmatpush.bf16.msra.mxu0 0
  %1147 = vmatpush.bf16.msra.mxu0 0
  %1148 = vmatpush.bf16.msra.mxu0 0
  %1149 = vmatpush.bf16.msra.mxu0 0
  %1150 = vmatpush.bf16.msra.mxu0 %v1142
  %1151 = vmatmul.bf16.gmra.mxu0 %v312
  %v1152 = vpop.f32.mrf.mxu0
  %v1153 = vadd.f32 0.0, %v1152
  %v1154 = vpop.f32.mrf.mxu0
  %v1155 = vadd.f32 0.0, %v1154
  %1156 = vmatmul.bf16.gmra.mxu0 %v315
  %v1157 = vpop.f32.mrf.mxu0
  %v1158 = vadd.f32 0.0, %v1157
  %v1159 = vpop.f32.mrf.mxu0
  %v1160 = vadd.f32 0.0, %v1159
  %1161 = vmatmul.bf16.gmra.mxu0 %v318
  %v1162 = vpop.f32.mrf.mxu0
  %v1163 = vadd.f32 0.0, %v1162
  %v1164 = vpop.f32.mrf.mxu0
  %v1165 = vadd.f32 0.0, %v1164
  %1166 = vdwg.mxu0
  %v1167 = vmul.f32 %v1153, %v938
  %v1168 = vmul.f32 %v1155, %v940
  %v1169 = vmul.f32 %v1158, %v943
  %v1170 = vmul.f32 %v1160, %v945
  %v1171 = vmul.f32 %v1163, %v948
  %v1172 = vmul.f32 %v1165, %v950
  %v1173 = vld [vmem:[%s8] sm:$0xf]
  %v1174 = vld [vmem:[%s8 + $0x4] sm:$0xf]
  %v1175 = vld [vmem:[%s8 + $0x8] sm:$0xf]
  %v1176 = vld [vmem:[%s8 + $0xc] sm:$0xf]
  %v1177 = vpack.c.bf16 %v1168, %v1167
  %v1178 = vpack.c.bf16 %v1170, %v1169
  %v1179 = vpack.c.bf16 %v1172, %v1171
  %v1184 = vunpack.c.l.b16 %v1173
  %v1185 = vunpack.c.l.b16 %v1174
  %v1186 = vunpack.c.l.b16 %v1175
  %v1187 = vunpack.c.l.b16 %v1176
  %v1188 = vpack.c.b16 %v1185, %v1184
  %v1189 = vpack.c.b16 %v1187, %v1186
  %v1193 = vsel %vm137, %v1177, 0
  %v1196 = vsel %vm137, %v1178, 0
  %v1199 = vsel %vm137, %v1179, 0
  %1201 = vmatpush.bf16.msra.mxu0 0
  %1202 = vmatpush.bf16.msra.mxu0 0
  %1203 = vmatpush.bf16.msra.mxu0 0
  %1204 = vmatpush.bf16.msra.mxu0 0
  %1205 = vmatpush.bf16.msra.mxu0 0
  %1206 = vmatpush.bf16.msra.mxu0 0
  %1207 = vmatpush.bf16.msra.mxu0 %v1189
  %1208 = vmatpush.bf16.msra.mxu0 %v1188
  %1209 = vmatmul.bf16.gmra.mxu0 %v1193
  %v1210 = vpop.f32.mrf.mxu0
  %v1211 = vadd.f32 0.0, %v1210
  %v1212 = vpop.f32.mrf.mxu0
  %v1213 = vadd.f32 0.0, %v1212
  %1214 = vmatmul.bf16.gmra.mxu0 %v1196
  %v1215 = vpop.f32.mrf.mxu0
  %v1216 = vadd.f32 0.0, %v1215
  %v1217 = vpop.f32.mrf.mxu0
  %v1218 = vadd.f32 0.0, %v1217
  %1219 = vmatmul.bf16.gmra.mxu0 %v1199
  %v1220 = vpop.f32.mrf.mxu0
  %v1221 = vadd.f32 0.0, %v1220
  %v1222 = vpop.f32.mrf.mxu0
  %v1223 = vadd.f32 0.0, %v1222
  %1224 = vdwg.mxu0
  %v1225 = vunpack.c.l.bf16 %v86
  %v1226 = vunpack.c.l.bf16 %v87
  %v1227 = vunpack.c.l.bf16 %v88
  %v1228 = vunpack.c.l.bf16 %v89
  %v1229 = vunpack.c.l.bf16 %v90
  %v1230 = vunpack.c.l.bf16 %v91
  %v1231 = vsub.f32 %v1225, 1.0
  %v1232 = vsub.f32 %v1226, 1.0
  %v1233 = vsub.f32 %v1227, 1.0
  %v1234 = vsub.f32 %v1228, 1.0
  %v1235 = vsub.f32 %v1229, 1.0
  %v1236 = vsub.f32 %v1230, 1.0
  %v1237 = vmul.f32 %v1231, 1e+30
  %v1238 = vmul.f32 %v1232, 1e+30
  %v1239 = vmul.f32 %v1233, 1e+30
  %v1240 = vmul.f32 %v1234, 1e+30
  %v1241 = vmul.f32 %v1235, 1e+30
  %v1242 = vmul.f32 %v1236, 1e+30
  %1244 = vset.pattern.permute.xlu0 0
  %1245 = vperm.xlu0 %1244, %v1211
  %v1246 = vpop.permute.xlu0 %1245
  %1249 = vset.pattern.permute.xlu0 0
  %1250 = vperm.xlu0 %1249, %v1213
  %v1251 = vpop.permute.xlu0 %1250
  %1254 = vset.pattern.permute.xlu0 0
  %1255 = vperm.xlu0 %1254, %v1216
  %v1256 = vpop.permute.xlu0 %1255
  %1259 = vset.pattern.permute.xlu0 0
  %1260 = vperm.xlu0 %1259, %v1218
  %v1261 = vpop.permute.xlu0 %1260
  %1264 = vset.pattern.permute.xlu0 0
  %1265 = vperm.xlu0 %1264, %v1221
  %v1266 = vpop.permute.xlu0 %1265
  %1269 = vset.pattern.permute.xlu0 0
  %1270 = vperm.xlu0 %1269, %v1223
  %v1271 = vpop.permute.xlu0 %1270
  %v1273 = vadd.f32 %v1246, %v1237
  %v1274 = vadd.f32 %v1251, %v1238
  %v1275 = vadd.f32 %v1256, %v1239
  %v1276 = vadd.f32 %v1261, %v1240
  %v1277 = vadd.f32 %v1266, %v1241
  %v1278 = vadd.f32 %v1271, %v1242
  %v1279 = vsel %vm310, %v1273, -inf
  %v1280 = vsel %vm310, %v1274, -inf
  %v1281 = vsel %vm310, %v1275, -inf
  %v1282 = vsel %vm310, %v1276, -inf
  %v1283 = vsel %vm310, %v1277, -inf
  %v1284 = vmax.f32 %v1279, %v1283
  %v1285 = vsel %vm310, %v1278, -inf
  %v1286 = vmax.f32 %v1280, %v1285
  %v1287 = vmax.f32 %v1284, %v1286
  %v1288 = vmax.f32 %v1281, %v1282
  %v1289 = vmax.f32 %v1287, %v1288
  %v1290 = vrot.slane %v1289, 4
  %v1291 = vmax.f32 %v1289, %v1290
  %v1292 = vrot.slane %v1291, 2
  %v1293 = vmax.f32 %v1291, %v1292
  %v1294 = vrot.slane %v1293, 1
  %v1295 = vmax.f32 %v1293, %v1294
  %1296 = vset.pattern.permute.xlu0 1
  %1297 = vperm.xlu0 %1296, %v1211
  %v1298 = vpop.permute.xlu0 %1297
  %1300 = vset.pattern.permute.xlu0 1
  %1301 = vperm.xlu0 %1300, %v1213
  %v1302 = vpop.permute.xlu0 %1301
  %1304 = vset.pattern.permute.xlu0 1
  %1305 = vperm.xlu0 %1304, %v1216
  %v1306 = vpop.permute.xlu0 %1305
  %1308 = vset.pattern.permute.xlu0 1
  %1309 = vperm.xlu0 %1308, %v1218
  %v1310 = vpop.permute.xlu0 %1309
  %1312 = vset.pattern.permute.xlu0 1
  %1313 = vperm.xlu0 %1312, %v1221
  %v1314 = vpop.permute.xlu0 %1313
  %1316 = vset.pattern.permute.xlu0 1
  %1317 = vperm.xlu0 %1316, %v1223
  %v1318 = vpop.permute.xlu0 %1317
  %v1320 = vadd.f32 %v1298, %v1237
  %v1321 = vadd.f32 %v1302, %v1238
  %v1322 = vadd.f32 %v1306, %v1239
  %v1323 = vadd.f32 %v1310, %v1240
  %v1324 = vadd.f32 %v1314, %v1241
  %v1325 = vadd.f32 %v1318, %v1242
  %v1326 = vsel %vm310, %v1320, -inf
  %v1327 = vsel %vm310, %v1321, -inf
  %v1328 = vsel %vm310, %v1322, -inf
  %v1329 = vsel %vm310, %v1323, -inf
  %v1330 = vsel %vm310, %v1324, -inf
  %v1331 = vmax.f32 %v1326, %v1330
  %v1332 = vsel %vm310, %v1325, -inf
  %v1333 = vmax.f32 %v1327, %v1332
  %v1334 = vmax.f32 %v1331, %v1333
  %v1335 = vmax.f32 %v1328, %v1329
  %v1336 = vmax.f32 %v1334, %v1335
  %v1337 = vrot.slane %v1336, 4
  %v1338 = vmax.f32 %v1336, %v1337
  %v1339 = vrot.slane %v1338, 2
  %v1340 = vmax.f32 %v1338, %v1339
  %v1341 = vrot.slane %v1340, 1
  %v1342 = vmax.f32 %v1340, %v1341
  %1343 = vset.pattern.permute.xlu0 2
  %1344 = vperm.xlu0 %1343, %v1211
  %v1345 = vpop.permute.xlu0 %1344
  %1347 = vset.pattern.permute.xlu0 2
  %1348 = vperm.xlu0 %1347, %v1213
  %v1349 = vpop.permute.xlu0 %1348
  %1351 = vset.pattern.permute.xlu0 2
  %1352 = vperm.xlu0 %1351, %v1216
  %v1353 = vpop.permute.xlu0 %1352
  %1355 = vset.pattern.permute.xlu0 2
  %1356 = vperm.xlu0 %1355, %v1218
  %v1357 = vpop.permute.xlu0 %1356
  %1359 = vset.pattern.permute.xlu0 2
  %1360 = vperm.xlu0 %1359, %v1221
  %v1361 = vpop.permute.xlu0 %1360
  %1363 = vset.pattern.permute.xlu0 2
  %1364 = vperm.xlu0 %1363, %v1223
  %v1365 = vpop.permute.xlu0 %1364
  %v1367 = vadd.f32 %v1345, %v1237
  %v1368 = vadd.f32 %v1349, %v1238
  %v1369 = vadd.f32 %v1353, %v1239
  %v1370 = vadd.f32 %v1357, %v1240
  %v1371 = vadd.f32 %v1361, %v1241
  %v1372 = vadd.f32 %v1365, %v1242
  %v1373 = vsel %vm310, %v1367, -inf
  %v1374 = vsel %vm310, %v1368, -inf
  %v1375 = vsel %vm310, %v1369, -inf
  %v1376 = vsel %vm310, %v1370, -inf
  %v1377 = vsel %vm310, %v1371, -inf
  %v1378 = vmax.f32 %v1373, %v1377
  %v1379 = vsel %vm310, %v1372, -inf
  %v1380 = vmax.f32 %v1374, %v1379
  %v1381 = vmax.f32 %v1378, %v1380
  %v1382 = vmax.f32 %v1375, %v1376
  %v1383 = vmax.f32 %v1381, %v1382
  %v1384 = vrot.slane %v1383, 4
  %v1385 = vmax.f32 %v1383, %v1384
  %v1386 = vrot.slane %v1385, 2
  %v1387 = vmax.f32 %v1385, %v1386
  %v1388 = vrot.slane %v1387, 1
  %v1389 = vmax.f32 %v1387, %v1388
  %1390 = vset.pattern.permute.xlu0 3
  %1391 = vperm.xlu0 %1390, %v1211
  %v1392 = vpop.permute.xlu0 %1391
  %1394 = vset.pattern.permute.xlu0 3
  %1395 = vperm.xlu0 %1394, %v1213
  %v1396 = vpop.permute.xlu0 %1395
  %1398 = vset.pattern.permute.xlu0 3
  %1399 = vperm.xlu0 %1398, %v1216
  %v1400 = vpop.permute.xlu0 %1399
  %1402 = vset.pattern.permute.xlu0 3
  %1403 = vperm.xlu0 %1402, %v1218
  %v1404 = vpop.permute.xlu0 %1403
  %1406 = vset.pattern.permute.xlu0 3
  %1407 = vperm.xlu0 %1406, %v1221
  %v1408 = vpop.permute.xlu0 %1407
  %1410 = vset.pattern.permute.xlu0 3
  %1411 = vperm.xlu0 %1410, %v1223
  %v1412 = vpop.permute.xlu0 %1411
  %v1414 = vadd.f32 %v1392, %v1237
  %v1415 = vadd.f32 %v1396, %v1238
  %v1416 = vadd.f32 %v1400, %v1239
  %v1417 = vadd.f32 %v1404, %v1240
  %v1418 = vadd.f32 %v1408, %v1241
  %v1419 = vadd.f32 %v1412, %v1242
  %v1420 = vsel %vm310, %v1414, -inf
  %v1421 = vsel %vm310, %v1415, -inf
  %v1422 = vsel %vm310, %v1416, -inf
  %v1423 = vsel %vm310, %v1417, -inf
  %v1424 = vsel %vm310, %v1418, -inf
  %v1425 = vmax.f32 %v1420, %v1424
  %v1426 = vsel %vm310, %v1419, -inf
  %v1427 = vmax.f32 %v1421, %v1426
  %v1428 = vmax.f32 %v1425, %v1427
  %v1429 = vmax.f32 %v1422, %v1423
  %v1430 = vmax.f32 %v1428, %v1429
  %v1431 = vrot.slane %v1430, 4
  %v1432 = vmax.f32 %v1430, %v1431
  %v1433 = vrot.slane %v1432, 2
  %v1434 = vmax.f32 %v1432, %v1433
  %v1435 = vrot.slane %v1434, 1
  %v1436 = vmax.f32 %v1434, %v1435
  %vm1437 = vcmask 1040384
  %v1438 = vsel %vm1437, %v1295, %v1342
  %v1439 = vsel %vm206, %v1438, %v1389
  %vm1440 = vcmask 1042432
  %v1441 = vsel %vm1440, %v1439, %v1436
  %v1442 = vpack.c.bf16 %v1441, %v1441
  %v1444 = vsel %vm310, %v1442, 0
  %1446 = vmatpush.bf16.xpose.msra.mxu0 0
  %1447 = vmatpush.bf16.xpose.msra.mxu0 0
  %1448 = vmatpush.bf16.xpose.msra.mxu0 0
  %1449 = vmatpush.bf16.xpose.msra.mxu0 0
  %1450 = vmatpush.bf16.xpose.msra.mxu0 0
  %1451 = vmatpush.bf16.xpose.msra.mxu0 0
  %1452 = vmatpush.bf16.xpose.msra.mxu0 0
  %1453 = vmatpush.bf16.xpose.msra.mxu0 %v1444
  %1454 = vmatmul.bf16.gmra.mxu0 %v312
  %v1455 = vpop.f32.mrf.mxu0
  %v1456 = vadd.f32 0.0, %v1455
  %v1457 = vpop.f32.mrf.mxu0
  %v1458 = vadd.f32 0.0, %v1457
  %1459 = vmatmul.bf16.gmra.mxu0 %v315
  %v1460 = vpop.f32.mrf.mxu0
  %v1461 = vadd.f32 0.0, %v1460
  %v1462 = vpop.f32.mrf.mxu0
  %v1463 = vadd.f32 0.0, %v1462
  %1464 = vmatmul.bf16.gmra.mxu0 %v318
  %v1465 = vpop.f32.mrf.mxu0
  %v1466 = vadd.f32 0.0, %v1465
  %v1467 = vpop.f32.mrf.mxu0
  %v1468 = vadd.f32 0.0, %v1467
  %1469 = vdwg.mxu0
  %v1470 = vsub.f32 %v1211, %v1456
  %v1471 = vsub.f32 %v1213, %v1458
  %v1472 = vsub.f32 %v1216, %v1461
  %v1473 = vsub.f32 %v1218, %v1463
  %v1474 = vsub.f32 %v1221, %v1466
  %v1475 = vsub.f32 %v1223, %v1468
  %v1476 = vmul.f32 %v1470, 1.442695
  %v1477 = vpow.pop %v1476
  %v1478 = vmul.f32 %v1471, 1.442695
  %v1479 = vpow.pop %v1478
  %v1480 = vmul.f32 %v1472, 1.442695
  %v1481 = vpow.pop %v1480
  %v1482 = vmul.f32 %v1473, 1.442695
  %v1483 = vpow.pop %v1482
  %v1484 = vmul.f32 %v1474, 1.442695
  %v1485 = vpow.pop %v1484
  %v1486 = vmul.f32 %v1475, 1.442695
  %v1487 = vpow.pop %v1486
  %v1488 = vpack.c.bf16 %v1479, %v1477
  %v1489 = vpack.c.bf16 %v1483, %v1481
  %v1490 = vpack.c.bf16 %v1487, %v1485
  %1494 = vxpose.xlu0.c.b16.start [1/8] %v307, 128
  %1495 = vxpose.xlu0.c.b16.cont [2/8] %v308, 128
  %1496 = vxpose.xlu0.c.b16.cont [3/8] %v309, 128
  %1497 = vxpose.xlu0.c.b16.cont [4/8] 0, 128
  %1498 = vxpose.xlu0.c.b16.cont [5/8] 0, 128
  %1499 = vxpose.xlu0.c.b16.cont [6/8] 0, 128
  %1500 = vxpose.xlu0.c.b16.cont [7/8] 0, 128
  %1501 = vxpose.xlu0.c.b16.end [8/8] 0, 128
  %v1502 = vpop.trf.xlu0
  %v1503 = vpop.trf.xlu0
  %v1504 = vpop.trf.xlu0
  %v1505 = vpop.trf.xlu0
  %v1506 = vpop.trf.xlu0
  %v1507 = vpop.trf.xlu0
  %v1508 = vpop.trf.xlu0
  %v1509 = vpop.trf.xlu0
  %vm1510 = vcmask 392192
  %v1512 = vsel %vm1510, %v1502, 0
  %1514 = vmatpush.bf16.msra.mxu0 0
  %1515 = vmatpush.bf16.msra.mxu0 0
  %1516 = vmatpush.bf16.msra.mxu0 0
  %1517 = vmatpush.bf16.msra.mxu0 0
  %1518 = vmatpush.bf16.msra.mxu0 0
  %1519 = vmatpush.bf16.msra.mxu0 %v1490
  %1520 = vmatpush.bf16.msra.mxu0 %v1489
  %1521 = vmatpush.bf16.msra.mxu0 %v1488
  %1522 = vmatmul.bf16.gmra.mxu0 %v1512
  %v1523 = vpop.f32.mrf.mxu0
  %v1524 = vadd.f32 0.0, %v1523
  %v1525 = vpop.f32.mrf.mxu0
  %v1526 = vadd.f32 0.0, %v1525
  %1527 = vdwg.mxu0
  %v1528 = vmax.f32 %v1524, 1e-06
  %v1529 = vmax.f32 %v1526, 1e-06
  %v1530 = vrcp.pop %v1528
  %v1531 = vrcp.pop %v1529
  %v1532 = vpack.c.bf16 %v1531, %v1530
  %1533 = vmatpush.bf16.msra.mxu0 0
  %1534 = vmatpush.bf16.msra.mxu0 0
  %1535 = vmatpush.bf16.msra.mxu0 0
  %1536 = vmatpush.bf16.msra.mxu0 0
  %1537 = vmatpush.bf16.msra.mxu0 0
  %1538 = vmatpush.bf16.msra.mxu0 0
  %1539 = vmatpush.bf16.msra.mxu0 0
  %1540 = vmatpush.bf16.msra.mxu0 %v1532
  %1541 = vmatmul.bf16.gmra.mxu0 %v312
  %v1542 = vpop.f32.mrf.mxu0
  %v1543 = vadd.f32 0.0, %v1542
  %v1544 = vpop.f32.mrf.mxu0
  %v1545 = vadd.f32 0.0, %v1544
  %1546 = vmatmul.bf16.gmra.mxu0 %v315
  %v1547 = vpop.f32.mrf.mxu0
  %v1548 = vadd.f32 0.0, %v1547
  %v1549 = vpop.f32.mrf.mxu0
  %v1550 = vadd.f32 0.0, %v1549
  %1551 = vmatmul.bf16.gmra.mxu0 %v318
  %v1552 = vpop.f32.mrf.mxu0
  %v1553 = vadd.f32 0.0, %v1552
  %v1554 = vpop.f32.mrf.mxu0
  %v1555 = vadd.f32 0.0, %v1554
  %1556 = vdwg.mxu0
  %v1557 = vmul.f32 %v1477, %v1543
  %v1558 = vmul.f32 %v1479, %v1545
  %v1559 = vmul.f32 %v1481, %v1548
  %v1560 = vmul.f32 %v1483, %v1550
  %v1561 = vmul.f32 %v1485, %v1553
  %v1562 = vmul.f32 %v1487, %v1555
  %v1563 = vmul.f32 %v1557, %v998
  %v1564 = vmul.f32 %v1558, %v1000
  %v1565 = vmul.f32 %v1559, %v1003
  %v1566 = vmul.f32 %v1560, %v1005
  %v1567 = vmul.f32 %v1561, %v1008
  %v1568 = vmul.f32 %v1562, %v1010
  %v1569 = vsel %vm196, %v1563, 0.0
  %1570 = vadd.xlane.f32.xlu0 %v1569
  %v1571 = vpop.xlane.xlu0 %1570
  %v1572 = vsel %vm196, %v1564, 0.0
  %1573 = vadd.xlane.f32.xlu0 %v1572
  %v1574 = vpop.xlane.xlu0 %1573
  %v1575 = vsel %vm196, %v1565, 0.0
  %1576 = vadd.xlane.f32.xlu0 %v1575
  %v1577 = vpop.xlane.xlu0 %1576
  %v1578 = vsel %vm196, %v1566, 0.0
  %1579 = vadd.xlane.f32.xlu0 %v1578
  %v1580 = vpop.xlane.xlu0 %1579
  %v1581 = vsel %vm196, %v1567, 0.0
  %1582 = vadd.xlane.f32.xlu0 %v1581
  %v1583 = vpop.xlane.xlu0 %1582
  %v1584 = vsel %vm196, %v1568, 0.0
  %1585 = vadd.xlane.f32.xlu0 %v1584
  %v1586 = vpop.xlane.xlu0 %1585
  %v1587 = vrcp.pop 4.0
  %v1588 = vmul.f32 4.0, %v1587
  %v1589 = vsub.f32 1.0, %v1588
  %v1590 = vmul.f32 %v1587, %v1589
  %v1591 = vadd.f32 %v1587, %v1590
  %vm1592 = vweird.f32 %v1587
  %v1593 = vsel %vm1592, %v1587, %v1591
  %v1594 = vmul.f32 %v1571, %v1593
  %v1595 = vmul.f32 %v1574, %v1593
  %v1596 = vmul.f32 %v1577, %v1593
  %v1597 = vmul.f32 %v1580, %v1593
  %v1598 = vmul.f32 %v1583, %v1593
  %v1599 = vmul.f32 %v1586, %v1593
  %v1600 = vmul.f32 %v1594, %v825
  %v1601 = vmul.f32 %v1595, %v840
  %v1602 = vmul.f32 %v1596, %v855
  %v1603 = vmul.f32 %v1597, %v870
  %v1604 = vmul.f32 %v1598, %v885
  %v1605 = vmul.f32 %v1599, %v900
  %v1606 = vld [vmem:[%s3] sm:$0xff]
  %v1607 = vld [vmem:[%s3 + $0x8] sm:$0xff]
  %v1608 = vld [vmem:[%s3 + $0x10] sm:$0xff]
  %v1609 = vld [vmem:[%s3 + $0x18] sm:$0xff]
  %v1610 = vld [vmem:[%s3 + $0x20] sm:$0xff]
  %v1611 = vld [vmem:[%s3 + $0x28] sm:$0xff]
  %1613 = vset.pattern.permute.xlu0 64
  %1614 = vperm.xlu0 %1613, %v1600
  %v1615 = vpop.permute.xlu0 %1614
  %1618 = vset.pattern.permute.xlu0 64
  %1619 = vperm.xlu0 %1618, %v1601
  %v1620 = vpop.permute.xlu0 %1619
  %1623 = vset.pattern.permute.xlu0 64
  %1624 = vperm.xlu0 %1623, %v1602
  %v1625 = vpop.permute.xlu0 %1624
  %1628 = vset.pattern.permute.xlu0 64
  %1629 = vperm.xlu0 %1628, %v1603
  %v1630 = vpop.permute.xlu0 %1629
  %1633 = vset.pattern.permute.xlu0 64
  %1634 = vperm.xlu0 %1633, %v1604
  %v1635 = vpop.permute.xlu0 %1634
  %1638 = vset.pattern.permute.xlu0 64
  %1639 = vperm.xlu0 %1638, %v1605
  %v1640 = vpop.permute.xlu0 %1639
  %v1642 = vmul.f32 %v1615, %v1606
  %v1643 = vmul.f32 %v1620, %v1607
  %v1644 = vmul.f32 %v1625, %v1608
  %v1645 = vmul.f32 %v1630, %v1609
  %v1646 = vmul.f32 %v1635, %v1610
  %v1647 = vmul.f32 %v1640, %v1611
  %v1648 = vpack.c.bf16 %v1643, %v1642
  %v1649 = vpack.c.bf16 %v1645, %v1644
  %v1650 = vpack.c.bf16 %v1647, %v1646
  %1651 = vmatpush.bf16.msra.mxu0 0
  %1652 = vmatpush.bf16.msra.mxu0 0
  %1653 = vmatpush.bf16.msra.mxu0 0
  %1654 = vmatpush.bf16.msra.mxu0 0
  %1655 = vmatpush.bf16.msra.mxu0 0
  %1656 = vmatpush.bf16.msra.mxu0 %v1650
  %1657 = vmatpush.bf16.msra.mxu0 %v1649
  %1658 = vmatpush.bf16.msra.mxu0 %v1648
  %1659 = vmatmul.bf16.gmra.mxu0 %v1512
  %v1660 = vpop.f32.mrf.mxu0
  %v1661 = vadd.f32 0.0, %v1660
  %v1662 = vpop.f32.mrf.mxu0
  %v1663 = vadd.f32 0.0, %v1662
  %1664 = vdwg.mxu0
  %v1665 = vld [vmem:[%s4] sm:$0xff]
  %v1666 = vld [vmem:[%s4 + $0x8] sm:$0xff]
  %v1667 = vld [vmem:[%s5] sm:$0xff]
  %v1668 = vld [vmem:[%s5 + $0x8] sm:$0xff]
  %1670 = vset.pattern.permute.xlu0 0
  %1671 = vperm.xlu0 %1670, %v1667
  %v1672 = vpop.permute.xlu0 %1671
  %1675 = vset.pattern.permute.xlu0 0
  %1676 = vperm.xlu0 %1675, %v1668
  %v1677 = vpop.permute.xlu0 %1676
  %v1679 = vmul.f32 %v1661, %v1672
  %v1680 = vmul.f32 %v1663, %v1677
  %v1681 = vadd.f32 %v1665, %v1679
  %v1682 = vadd.f32 %v1666, %v1680
  %vm1683 = vcmask 23552
  %1684 = vst.msk [vmem:[%s26] sm:$0xff] %vm1683, %v1681
  %1685 = vst.msk [vmem:[%s26 + $0x8] sm:$0xff] %vm1683, %v1682
  // Predicated region
  $region106: #{_lambda_.3} parent=0 // pred_check
    _
  $region107: #{_lambda_.3} parent=0 // pred_check_branch
    %1687 = sbr.rel (0) target = $region109
  $region108: #{_lambda_.3} parent=0 // pred_region
    _
  $region109: #{_lambda_.3} parent=0 // pred_fallthru
    _
  // Predicated region
  $region110: #{_lambda_.3} parent=0 // pred_check
    _
  $region111: #{_lambda_.3} parent=0 // pred_check_branch
    %1689 = sbr.rel (0) target = $region113
  $region112: #{_lambda_.3} parent=0 // pred_region
    _
  $region113: #{_lambda_.3} parent=0 // pred_fallthru
    _

// kernel: _lambda_.2
$region0: #{_lambda_.2}
  #allocation0 [shape = 'u32[]', space=smem, size = 0x4, offset = 0x4, fixed_abs, tag = 'smem constant byte address 0x4 - core index']
  #allocation1 [shape = 'u32[72,128]{1,0:T(1,128)}', space=vmem, size = 0x9000, scoped, tag = 'internal scratch']
  %s0 = inlined_call_operand.smem [shape: u32[32], index: -1, kind: input, shape index: {}]
  %s1 = sld [smem:[%s0]]
  %s2 = scalar_lea.smem %s0, 1
  %s3 = sld [smem:[%s2]]
  %s4 = scalar_lea.smem %s0, 2
  %s5 = sld [smem:[%s4]]
  %s6 = scalar_lea.smem %s0, 3
  %s7 = sld [smem:[%s6]]
  %s8 = scalar_lea.smem %s0, 4
  %s9 = sld [smem:[%s8]]
  %s10 = scalar_lea.smem %s0, 5
  %s11 = sld [smem:[%s10]]
  %s12 = scalar_lea.smem %s0, 6
  %s13 = sld [smem:[%s12]]
  %s14 = scalar_lea.smem %s0, 7
  %s15 = sld [smem:[%s14]]
  %s16 = scalar_lea.smem %s0, 8
  %s17 = sld [smem:[%s16]]
  %s18 = scalar_lea.smem %s0, 9
  %s19 = sld [smem:[%s18]]
  %s20 = scalar_lea.smem %s0, 10
  %s21 = sld [smem:[%s20]]
  %s22 = scalar_lea.smem %s0, 11
  %s23 = sld [smem:[%s22]]
  %s24 = scalar_lea.smem %s0, 12
  %s25 = sld [smem:[%s24]]
  %s26 = scalar_lea.smem %s0, 13
  %s27 = sld [smem:[%s26]]
  %s28 = scalar_lea.smem %s0, 14
  %s29 = sld [smem:[%s28]]
  %s30 = scalar_lea.smem %s0, 15
  %s31 = sld [smem:[%s30]]
  %s32 = scalar_lea.smem %s0, 16
  %s33 = sld [smem:[%s32]]
  %s34 = scalar_lea.smem %s0, 17
  %s35 = sld [smem:[%s34]]
  %s36 = scalar_lea.smem %s0, 18
  %s37 = sld [smem:[%s36]]
  %s38 = scalar_lea.smem %s0, 19
  %s39 = sld [smem:[%s38]]
  %s40 = scalar_lea.smem %s0, 20
  %s41 = sld [smem:[%s40]]
  %s42 = scalar_lea.smem %s0, 21
  %s43 = sld [smem:[%s42]]
  %s44 = scalar_lea.smem %s0, 22
  %s45 = sld [smem:[%s44]]
  %s46 = scalar_lea.smem %s0, 23
  %s47 = sld [smem:[%s46]]
  %s48 = scalar_lea.smem %s0, 24
  %s49 = sld [smem:[%s48]]
  %s50 = scalar_lea.smem %s0, 25
  %s51 = sld [smem:[%s50]]
  %s52 = scalar_lea.smem %s0, 26
  %s53 = sld [smem:[%s52]]
  %s54 = scalar_lea.smem %s0, 27
  %s55 = sld [smem:[%s54]]
  %s56 = scalar_lea.smem %s0, 28
  %s57 = sld [smem:[%s56]]
  %s58 = scalar_lea.smem %s0, 29
  %s59 = sld [smem:[%s58]]
  %s60 = scalar_lea.smem %s0, 30
  %s61 = sld [smem:[%s60]]
  %s62 = scalar_lea.smem %s0, 31
  %s63 = sld [smem:[%s62]]
  %s64 = sld [smem:[#allocation0]]
  $region134: #{_lambda_.2} parent=0
    _
  %s66 = ssub.s32 1, %s64
  %s67 = scalar_select 0, %s66, %s64
  // Predicated region
  $region2: #{_lambda_.2} parent=0 // pred_check
    _
  $region3: #{_lambda_.2} parent=0 // pred_check_branch
    %69 = sbr.rel (0) target = $region5
  $region4: #{_lambda_.2} parent=0 // pred_region
    _
  $region5: #{_lambda_.2} parent=0 // pred_fallthru
    _
  // Predicated region
  $region6: #{_lambda_.2} parent=0 // pred_check
    _
  $region7: #{_lambda_.2} parent=0 // pred_check_branch
    %71 = sbr.rel (0) target = $region9
  $region8: #{_lambda_.2} parent=0 // pred_region
    _
  $region9: #{_lambda_.2} parent=0 // pred_fallthru
    _
  // Predicated region
  $region10: #{_lambda_.2} parent=0 // pred_check
    _
  $region11: #{_lambda_.2} parent=0 // pred_check_branch
    %73 = sbr.rel (0) target = $region13
  $region12: #{_lambda_.2} parent=0 // pred_region
    _
  $region13: #{_lambda_.2} parent=0 // pred_fallthru
    _
  // Predicated region
  $region14: #{_lambda_.2} parent=0 // pred_check
    _
  $region15: #{_lambda_.2} parent=0 // pred_check_branch
    %75 = sbr.rel (0) target = $region17
  $region16: #{_lambda_.2} parent=0 // pred_region
    _
  $region17: #{_lambda_.2} parent=0 // pred_fallthru
    _
  // Predicated region
  $region18: #{_lambda_.2} parent=0 // pred_check
    _
  $region19: #{_lambda_.2} parent=0 // pred_check_branch
    %77 = sbr.rel (0) target = $region21
  $region20: #{_lambda_.2} parent=0 // pred_region
    _
  $region21: #{_lambda_.2} parent=0 // pred_fallthru
    _
  // Predicated region
  $region22: #{_lambda_.2} parent=0 // pred_check
    _
  $region23: #{_lambda_.2} parent=0 // pred_check_branch
    %79 = sbr.rel (0) target = $region25
  $region24: #{_lambda_.2} parent=0 // pred_region
    _
  $region25: #{_lambda_.2} parent=0 // pred_fallthru
    _
  // Predicated region
  $region26: #{_lambda_.2} parent=0 // pred_check
    _
  $region27: #{_lambda_.2} parent=0 // pred_check_branch
    %81 = sbr.rel (0) target = $region29
  $region28: #{_lambda_.2} parent=0 // pred_region
    _
  $region29: #{_lambda_.2} parent=0 // pred_fallthru
    _
  // Predicated region
  $region30: #{_lambda_.2} parent=0 // pred_check
    _
  $region31: #{_lambda_.2} parent=0 // pred_check_branch
    %83 = sbr.rel (0) target = $region33
  $region32: #{_lambda_.2} parent=0 // pred_region
    _
  $region33: #{_lambda_.2} parent=0 // pred_fallthru
    _
  // Predicated region
  $region34: #{_lambda_.2} parent=0 // pred_check
    _
  $region35: #{_lambda_.2} parent=0 // pred_check_branch
    %85 = sbr.rel (0) target = $region37
  $region36: #{_lambda_.2} parent=0 // pred_region
    _
  $region37: #{_lambda_.2} parent=0 // pred_fallthru
    _
  // Predicated region
  $region38: #{_lambda_.2} parent=0 // pred_check
    _
  $region39: #{_lambda_.2} parent=0 // pred_check_branch
    %87 = sbr.rel (0) target = $region41
  $region40: #{_lambda_.2} parent=0 // pred_region
    _
  $region41: #{_lambda_.2} parent=0 // pred_fallthru
    _
  // Predicated region
  $region42: #{_lambda_.2} parent=0 // pred_check
    _
  $region43: #{_lambda_.2} parent=0 // pred_check_branch
    %89 = sbr.rel (0) target = $region45
  $region44: #{_lambda_.2} parent=0 // pred_region
    _
  $region45: #{_lambda_.2} parent=0 // pred_fallthru
    _
  // Predicated region
  $region46: #{_lambda_.2} parent=0 // pred_check
    _
  $region47: #{_lambda_.2} parent=0 // pred_check_branch
    %91 = sbr.rel (0) target = $region49
  $region48: #{_lambda_.2} parent=0 // pred_region
    _
  $region49: #{_lambda_.2} parent=0 // pred_fallthru
    _
  // Predicated region
  $region50: #{_lambda_.2} parent=0 // pred_check
    _
  $region51: #{_lambda_.2} parent=0 // pred_check_branch
    %93 = sbr.rel (0) target = $region53
  $region52: #{_lambda_.2} parent=0 // pred_region
    _
  $region53: #{_lambda_.2} parent=0 // pred_fallthru
    _
  // Predicated region
  $region54: #{_lambda_.2} parent=0 // pred_check
    _
  $region55: #{_lambda_.2} parent=0 // pred_check_branch
    %95 = sbr.rel (0) target = $region57
  $region56: #{_lambda_.2} parent=0 // pred_region
    _
  $region57: #{_lambda_.2} parent=0 // pred_fallthru
    _
  // Predicated region
  $region58: #{_lambda_.2} parent=0 // pred_check
    _
  $region59: #{_lambda_.2} parent=0 // pred_check_branch
    %97 = sbr.rel (0) target = $region61
  $region60: #{_lambda_.2} parent=0 // pred_region
    _
  $region61: #{_lambda_.2} parent=0 // pred_fallthru
    _
  // Predicated region
  $region62: #{_lambda_.2} parent=0 // pred_check
    _
  $region63: #{_lambda_.2} parent=0 // pred_check_branch
    %99 = sbr.rel (0) target = $region65
  $region64: #{_lambda_.2} parent=0 // pred_region
    _
  $region65: #{_lambda_.2} parent=0 // pred_fallthru
    _
  // Predicated region
  $region66: #{_lambda_.2} parent=0 // pred_check
    _
  $region67: #{_lambda_.2} parent=0 // pred_check_branch
    %101 = sbr.rel (0) target = $region69
  $region68: #{_lambda_.2} parent=0 // pred_region
    _
  $region69: #{_lambda_.2} parent=0 // pred_fallthru
    _
  // Predicated region
  $region70: #{_lambda_.2} parent=0 // pred_check
    _
  $region71: #{_lambda_.2} parent=0 // pred_check_branch
    %103 = sbr.rel (0) target = $region73
  $region72: #{_lambda_.2} parent=0 // pred_region
    _
  $region73: #{_lambda_.2} parent=0 // pred_fallthru
    _
  // Predicated region
  $region74: #{_lambda_.2} parent=0 // pred_check
    _
  $region75: #{_lambda_.2} parent=0 // pred_check_branch
    %105 = sbr.rel (0) target = $region77
  $region76: #{_lambda_.2} parent=0 // pred_region
    _
  $region77: #{_lambda_.2} parent=0 // pred_fallthru
    _
  // Predicated region
  $region78: #{_lambda_.2} parent=0 // pred_check
    _
  $region79: #{_lambda_.2} parent=0 // pred_check_branch
    %107 = sbr.rel (0) target = $region81
  $region80: #{_lambda_.2} parent=0 // pred_region
    _
  $region81: #{_lambda_.2} parent=0 // pred_fallthru
    _
  // Predicated region
  $region82: #{_lambda_.2} parent=0 // pred_check
    _
  $region83: #{_lambda_.2} parent=0 // pred_check_branch
    %109 = sbr.rel (0) target = $region85
  $region84: #{_lambda_.2} parent=0 // pred_region
    _
  $region85: #{_lambda_.2} parent=0 // pred_fallthru
    _
  // Predicated region
  $region86: #{_lambda_.2} parent=0 // pred_check
    _
  $region87: #{_lambda_.2} parent=0 // pred_check_branch
    %111 = sbr.rel (0) target = $region89
  $region88: #{_lambda_.2} parent=0 // pred_region
    _
  $region89: #{_lambda_.2} parent=0 // pred_fallthru
    _
  // Predicated region
  $region90: #{_lambda_.2} parent=0 // pred_check
    _
  $region91: #{_lambda_.2} parent=0 // pred_check_branch
    %113 = sbr.rel (0) target = $region93
  $region92: #{_lambda_.2} parent=0 // pred_region
    _
  $region93: #{_lambda_.2} parent=0 // pred_fallthru
    _
  // Predicated region
  $region94: #{_lambda_.2} parent=0 // pred_check
    _
  $region95: #{_lambda_.2} parent=0 // pred_check_branch
    %115 = sbr.rel (0) target = $region97
  $region96: #{_lambda_.2} parent=0 // pred_region
    _
  $region97: #{_lambda_.2} parent=0 // pred_fallthru
    _
  // Predicated region
  $region98: #{_lambda_.2} parent=0 // pred_check
    _
  $region99: #{_lambda_.2} parent=0 // pred_check_branch
    %117 = sbr.rel (0) target = $region101
  $region100: #{_lambda_.2} parent=0 // pred_region
    _
  $region101: #{_lambda_.2} parent=0 // pred_fallthru
    _
  // Predicated region
  $region102: #{_lambda_.2} parent=0 // pred_check
    _
  $region103: #{_lambda_.2} parent=0 // pred_check_branch
    %119 = sbr.rel (0) target = $region105
  $region104: #{_lambda_.2} parent=0 // pred_region
    _
  $region105: #{_lambda_.2} parent=0 // pred_fallthru
    _
  // Predicated region
  $region106: #{_lambda_.2} parent=0 // pred_check
    _
  $region107: #{_lambda_.2} parent=0 // pred_check_branch
    %121 = sbr.rel (0) target = $region109
  $region108: #{_lambda_.2} parent=0 // pred_region
    _
  $region109: #{_lambda_.2} parent=0 // pred_fallthru
    _
  // Predicated region
  $region110: #{_lambda_.2} parent=0 // pred_check
    _
  $region111: #{_lambda_.2} parent=0 // pred_check_branch
    %123 = sbr.rel (0) target = $region113
  $region112: #{_lambda_.2} parent=0 // pred_region
    _
  $region113: #{_lambda_.2} parent=0 // pred_fallthru
    _
  // Predicated region
  $region114: #{_lambda_.2} parent=0 // pred_check
    _
  $region115: #{_lambda_.2} parent=0 // pred_check_branch
    %125 = sbr.rel (0) target = $region117
  $region116: #{_lambda_.2} parent=0 // pred_region
    _
  $region117: #{_lambda_.2} parent=0 // pred_fallthru
    _
  // Predicated region
  $region118: #{_lambda_.2} parent=0 // pred_check
    _
  $region119: #{_lambda_.2} parent=0 // pred_check_branch
    %127 = sbr.rel (0) target = $region121
  $region120: #{_lambda_.2} parent=0 // pred_region
    _
  $region121: #{_lambda_.2} parent=0 // pred_fallthru
    _
  // Predicated region
  $region122: #{_lambda_.2} parent=0 // pred_check
    _
  $region123: #{_lambda_.2} parent=0 // pred_check_branch
    %129 = sbr.rel (0) target = $region125
  $region124: #{_lambda_.2} parent=0 // pred_region
    _
  $region125: #{_lambda_.2} parent=0 // pred_fallthru
    _
  %v131 = vld [vmem:[%s5] sm:$0xff]
  %v132 = vld [vmem:[%s5 + $0x8] sm:$0xff]
  %v133 = vld [vmem:[%s7] sm:$0xf]
  %v134 = vld [vmem:[%s7 + $0x4] sm:$0xf]
  %v135 = vld [vmem:[%s7 + $0x8] sm:$0xf]
  %v136 = vld [vmem:[%s7 + $0xc] sm:$0xf]
  %v137 = vld [vmem:[%s7 + $0x10] sm:$0xf]
  %v138 = vld [vmem:[%s7 + $0x14] sm:$0xf]
  %v139 = vld [vmem:[%s1] sm:$0xf]
  %v140 = vld [vmem:[%s1 + $0x4] sm:$0xf]
  %v141 = vld [vmem:[%s1 + $0x8] sm:$0xf]
  %v142 = vld [vmem:[%s1 + $0xc] sm:$0xf]
  %v143 = vld [vmem:[%s1 + $0x10] sm:$0xf]
  %v144 = vld [vmem:[%s1 + $0x14] sm:$0xf]
  %v145 = vld [vmem:[%s3] sm:$0xf]
  %v146 = vld [vmem:[%s3 + $0x4] sm:$0xf]
  %v147 = vld [vmem:[%s3 + $0x8] sm:$0xf]
  %v148 = vld [vmem:[%s3 + $0xc] sm:$0xf]
  %v149 = vld [vmem:[%s3 + $0x10] sm:$0xf]
  %v150 = vld [vmem:[%s3 + $0x14] sm:$0xf]
  %v151 = vld [vmem:[%s9] sm:$0xf]
  %v152 = vld [vmem:[%s9 + $0x4] sm:$0xf]
  %v153 = vld [vmem:[%s9 + $0x8] sm:$0xf]
  %v154 = vld [vmem:[%s9 + $0xc] sm:$0xf]
  %v155 = vld [vmem:[%s9 + $0x10] sm:$0xf]
  %v156 = vld [vmem:[%s9 + $0x14] sm:$0xf]
  %v157 = vld [vmem:[%s15] sm:$0xf]
  %v158 = vld [vmem:[%s15 + $0x4] sm:$0xf]
  %v159 = vld [vmem:[%s15 + $0x8] sm:$0xf]
  %v160 = vld [vmem:[%s15 + $0xc] sm:$0xf]
  %v161 = vld [vmem:[%s17] sm:$0x3]
  %v162 = vld [vmem:[%s19] sm:$0xf]
  %v163 = vld [vmem:[%s19 + $0x4] sm:$0xf]
  %v164 = vld [vmem:[%s19 + $0x8] sm:$0xf]
  %v165 = vld [vmem:[%s19 + $0xc] sm:$0xf]
  %v166 = vld [vmem:[%s21] sm:$0xf]
  %v167 = vld [vmem:[%s21 + $0x4] sm:$0xf]
  %v168 = vld [vmem:[%s21 + $0x8] sm:$0xf]
  %v169 = vld [vmem:[%s21 + $0xc] sm:$0xf]
  %v170 = vld [vmem:[%s23] sm:$0x1]
  %v171 = vpack.c.bf16 %v132, %v131
  %v176 = vunpack.c.l.b16 %v162
  %v177 = vunpack.c.l.b16 %v163
  %v178 = vunpack.c.l.b16 %v164
  %v179 = vunpack.c.l.b16 %v165
  %v180 = vpack.c.b16 %v177, %v176
  %v181 = vpack.c.b16 %v179, %v178
  %vm184 = vcmask 261120
  %v186 = vsel %vm184, %v171, 0
  %188 = vmatpush.bf16.msra.mxu0 0
  %189 = vmatpush.bf16.msra.mxu0 0
  %190 = vmatpush.bf16.msra.mxu0 0
  %191 = vmatpush.bf16.msra.mxu0 0
  %192 = vmatpush.bf16.msra.mxu0 0
  %193 = vmatpush.bf16.msra.mxu0 0
  %194 = vmatpush.bf16.msra.mxu0 %v181
  %195 = vmatpush.bf16.msra.mxu0 %v180
  %196 = vmatmul.bf16.gmra.mxu0 %v186
  %v197 = vpop.f32.mrf.mxu0
  %v198 = vadd.f32 0.0, %v197
  %v199 = vpop.f32.mrf.mxu0
  %v200 = vadd.f32 0.0, %v199
  %201 = vdwg.mxu0
  %v206 = vunpack.c.l.b16 %v166
  %v207 = vunpack.c.l.b16 %v167
  %v208 = vunpack.c.l.b16 %v168
  %v209 = vunpack.c.l.b16 %v169
  %v210 = vpack.c.b16 %v207, %v206
  %v211 = vpack.c.b16 %v209, %v208
  %214 = vmatpush.bf16.msra.mxu0 0
  %215 = vmatpush.bf16.msra.mxu0 0
  %216 = vmatpush.bf16.msra.mxu0 0
  %217 = vmatpush.bf16.msra.mxu0 0
  %218 = vmatpush.bf16.msra.mxu0 0
  %219 = vmatpush.bf16.msra.mxu0 0
  %220 = vmatpush.bf16.msra.mxu0 %v211
  %221 = vmatpush.bf16.msra.mxu0 %v210
  %222 = vmatmul.bf16.gmra.mxu0 %v186
  %v223 = vpop.f32.mrf.mxu0
  %v224 = vadd.f32 0.0, %v223
  %v225 = vpop.f32.mrf.mxu0
  %v226 = vadd.f32 0.0, %v225
  %227 = vdwg.mxu0
  %v234 = vunpack.c.l.b16 %v145
  %v235 = vunpack.c.l.b16 %v146
  %v236 = vunpack.c.l.b16 %v147
  %v237 = vunpack.c.l.b16 %v148
  %v238 = vunpack.c.l.b16 %v149
  %v239 = vunpack.c.l.b16 %v150
  %v240 = vpack.c.b16 %v235, %v234
  %v241 = vpack.c.b16 %v237, %v236
  %v242 = vpack.c.b16 %v239, %v238
  %vm243 = vcmask 31744
  %v245 = vsel %vm243, %v240, 0
  %v248 = vsel %vm243, %v241, 0
  %v251 = vsel %vm243, %v242, 0
  %vm253 = vcmask 1041408
  %v255 = vsel %vm253, %v161, 0
  %257 = vmatpush.bf16.msra.mxu0 0
  %258 = vmatpush.bf16.msra.mxu0 0
  %259 = vmatpush.bf16.msra.mxu0 0
  %260 = vmatpush.bf16.msra.mxu0 0
  %261 = vmatpush.bf16.msra.mxu0 0
  %262 = vmatpush.bf16.msra.mxu0 0
  %263 = vmatpush.bf16.msra.mxu0 0
  %264 = vmatpush.bf16.msra.mxu0 %v255
  %265 = vmatmul.bf16.gmra.mxu0 %v245
  %v266 = vpop.f32.mrf.mxu0
  %v267 = vadd.f32 0.0, %v266
  %v268 = vpop.f32.mrf.mxu0
  %v269 = vadd.f32 0.0, %v268
  %270 = vmatmul.bf16.gmra.mxu0 %v248
  %v271 = vpop.f32.mrf.mxu0
  %v272 = vadd.f32 0.0, %v271
  %v273 = vpop.f32.mrf.mxu0
  %v274 = vadd.f32 0.0, %v273
  %275 = vmatmul.bf16.gmra.mxu0 %v251
  %v276 = vpop.f32.mrf.mxu0
  %v277 = vadd.f32 0.0, %v276
  %v278 = vpop.f32.mrf.mxu0
  %v279 = vadd.f32 0.0, %v278
  %280 = vdwg.mxu0
  %v287 = vunpack.c.l.b16 %v139
  %v288 = vunpack.c.l.b16 %v140
  %v289 = vunpack.c.l.b16 %v141
  %v290 = vunpack.c.l.b16 %v142
  %v291 = vunpack.c.l.b16 %v143
  %v292 = vunpack.c.l.b16 %v144
  %v293 = vpack.c.b16 %v288, %v287
  %v294 = vpack.c.b16 %v290, %v289
  %v295 = vpack.c.b16 %v292, %v291
  %v300 = vunpack.c.l.b16 %v157
  %v301 = vunpack.c.l.b16 %v158
  %v302 = vunpack.c.l.b16 %v159
  %v303 = vunpack.c.l.b16 %v160
  %v304 = vpack.c.b16 %v301, %v300
  %v305 = vpack.c.b16 %v303, %v302
  %v309 = vsel %vm184, %v293, 0
  %v312 = vsel %vm184, %v294, 0
  %v315 = vsel %vm184, %v295, 0
  %317 = vmatpush.bf16.msra.mxu0 0
  %318 = vmatpush.bf16.msra.mxu0 0
  %319 = vmatpush.bf16.msra.mxu0 0
  %320 = vmatpush.bf16.msra.mxu0 0
  %321 = vmatpush.bf16.msra.mxu0 0
  %322 = vmatpush.bf16.msra.mxu0 0
  %323 = vmatpush.bf16.msra.mxu0 %v305
  %324 = vmatpush.bf16.msra.mxu0 %v304
  %325 = vmatmul.bf16.gmra.mxu0 %v309
  %v326 = vpop.f32.mrf.mxu0
  %v327 = vadd.f32 %v267, %v326
  %v328 = vpop.f32.mrf.mxu0
  %v329 = vadd.f32 %v269, %v328
  %330 = vmatmul.bf16.gmra.mxu0 %v312
  %v331 = vpop.f32.mrf.mxu0
  %v332 = vadd.f32 %v272, %v331
  %v333 = vpop.f32.mrf.mxu0
  %v334 = vadd.f32 %v274, %v333
  %335 = vmatmul.bf16.gmra.mxu0 %v315
  %v336 = vpop.f32.mrf.mxu0
  %v337 = vadd.f32 %v277, %v336
  %v338 = vpop.f32.mrf.mxu0
  %v339 = vadd.f32 %v279, %v338
  %340 = vdwg.mxu0
  %v341 = vpack.c.bf16 %v200, %v198
  %v348 = vunpack.c.l.b16 %v133
  %v349 = vunpack.c.l.b16 %v134
  %v350 = vunpack.c.l.b16 %v135
  %v351 = vunpack.c.l.b16 %v136
  %v352 = vunpack.c.l.b16 %v137
  %v353 = vunpack.c.l.b16 %v138
  %v354 = vpack.c.b16 %v349, %v348
  %v355 = vpack.c.b16 %v351, %v350
  %v356 = vpack.c.b16 %v353, %v352
  %vm357 = vcmask 130048
  %v359 = vsel %vm357, %v354, 0
  %v362 = vsel %vm357, %v355, 0
  %v365 = vsel %vm357, %v356, 0
  %367 = vmatpush.bf16.msra.mxu0 0
  %368 = vmatpush.bf16.msra.mxu0 0
  %369 = vmatpush.bf16.msra.mxu0 0
  %370 = vmatpush.bf16.msra.mxu0 0
  %371 = vmatpush.bf16.msra.mxu0 0
  %372 = vmatpush.bf16.msra.mxu0 0
  %373 = vmatpush.bf16.msra.mxu0 0
  %374 = vmatpush.bf16.msra.mxu0 %v341
  %375 = vmatmul.bf16.gmra.mxu0 %v359
  %v376 = vpop.f32.mrf.mxu0
  %v377 = vadd.f32 0.0, %v376
  %v378 = vpop.f32.mrf.mxu0
  %v379 = vadd.f32 0.0, %v378
  %380 = vmatmul.bf16.gmra.mxu0 %v362
  %v381 = vpop.f32.mrf.mxu0
  %v382 = vadd.f32 0.0, %v381
  %v383 = vpop.f32.mrf.mxu0
  %v384 = vadd.f32 0.0, %v383
  %385 = vmatmul.bf16.gmra.mxu0 %v365
  %v386 = vpop.f32.mrf.mxu0
  %v387 = vadd.f32 0.0, %v386
  %v388 = vpop.f32.mrf.mxu0
  %v389 = vadd.f32 0.0, %v388
  %390 = vdwg.mxu0
  %v391 = vadd.f32 %v327, %v377
  %v392 = vadd.f32 %v329, %v379
  %v393 = vadd.f32 %v332, %v382
  %v394 = vadd.f32 %v334, %v384
  %v395 = vadd.f32 %v337, %v387
  %v396 = vadd.f32 %v339, %v389
  %v397 = vpack.c.bf16 %v226, %v224
  %v404 = vunpack.c.l.b16 %v151
  %v405 = vunpack.c.l.b16 %v152
  %v406 = vunpack.c.l.b16 %v153
  %v407 = vunpack.c.l.b16 %v154
  %v408 = vunpack.c.l.b16 %v155
  %v409 = vunpack.c.l.b16 %v156
  %v410 = vpack.c.b16 %v405, %v404
  %v411 = vpack.c.b16 %v407, %v406
  %v412 = vpack.c.b16 %v409, %v408
  %v414 = vsel %vm357, %v410, 0
  %v417 = vsel %vm357, %v411, 0
  %v420 = vsel %vm357, %v412, 0
  %422 = vmatpush.bf16.msra.mxu0 0
  %423 = vmatpush.bf16.msra.mxu0 0
  %424 = vmatpush.bf16.msra.mxu0 0
  %425 = vmatpush.bf16.msra.mxu0 0
  %426 = vmatpush.bf16.msra.mxu0 0
  %427 = vmatpush.bf16.msra.mxu0 0
  %428 = vmatpush.bf16.msra.mxu0 0
  %429 = vmatpush.bf16.msra.mxu0 %v397
  %430 = vmatmul.bf16.gmra.mxu0 %v414
  %v431 = vpop.f32.mrf.mxu0
  %v432 = vadd.f32 0.0, %v431
  %v433 = vpop.f32.mrf.mxu0
  %v434 = vadd.f32 0.0, %v433
  %435 = vmatmul.bf16.gmra.mxu0 %v417
  %v436 = vpop.f32.mrf.mxu0
  %v437 = vadd.f32 0.0, %v436
  %v438 = vpop.f32.mrf.mxu0
  %v439 = vadd.f32 0.0, %v438
  %440 = vmatmul.bf16.gmra.mxu0 %v420
  %v441 = vpop.f32.mrf.mxu0
  %v442 = vadd.f32 0.0, %v441
  %v443 = vpop.f32.mrf.mxu0
  %v444 = vadd.f32 0.0, %v443
  %445 = vdwg.mxu0
  %v446 = vadd.f32 %v391, %v432
  %v447 = vadd.f32 %v392, %v434
  %v448 = vadd.f32 %v393, %v437
  %v449 = vadd.f32 %v394, %v439
  %v450 = vadd.f32 %v395, %v442
  %v451 = vadd.f32 %v396, %v444
  %v453 = vperm.slane %v170, 0
  %v455 = vadd.f32 %v446, %v453
  %v456 = vadd.f32 %v447, %v453
  %v457 = vadd.f32 %v448, %v453
  %v458 = vadd.f32 %v449, %v453
  %v459 = vadd.f32 %v450, %v453
  %v460 = vadd.f32 %v451, %v453
  %v461 = vld [vmem:[%s25] sm:$0x1]
  %v462 = vld [vmem:[%s27] sm:$0x1]
  %v463 = vld [vmem:[%s29] sm:$0xf]
  %v464 = vld [vmem:[%s29 + $0x4] sm:$0xf]
  %v465 = vld [vmem:[%s29 + $0x8] sm:$0xf]
  %v466 = vld [vmem:[%s29 + $0xc] sm:$0xf]
  %v467 = vld [vmem:[%s31] sm:$0x1]
  %v468 = vld [vmem:[%s33] sm:$0xf]
  %v469 = vld [vmem:[%s33 + $0x4] sm:$0xf]
  %v470 = vld [vmem:[%s33 + $0x8] sm:$0xf]
  %v471 = vld [vmem:[%s33 + $0xc] sm:$0xf]
  %v472 = vld [vmem:[%s35] sm:$0x1]
  %v473 = vsel %vm184, %v455, 0.0
  %474 = vadd.xlane.f32.xlu0 %v473
  %v475 = vpop.xlane.xlu0 %474
  %v476 = vsel %vm184, %v456, 0.0
  %477 = vadd.xlane.f32.xlu0 %v476
  %v478 = vpop.xlane.xlu0 %477
  %v479 = vsel %vm184, %v457, 0.0
  %480 = vadd.xlane.f32.xlu0 %v479
  %v481 = vpop.xlane.xlu0 %480
  %v482 = vsel %vm184, %v458, 0.0
  %483 = vadd.xlane.f32.xlu0 %v482
  %v484 = vpop.xlane.xlu0 %483
  %v485 = vsel %vm184, %v459, 0.0
  %486 = vadd.xlane.f32.xlu0 %v485
  %v487 = vpop.xlane.xlu0 %486
  %v488 = vsel %vm184, %v460, 0.0
  %489 = vadd.xlane.f32.xlu0 %v488
  %v490 = vpop.xlane.xlu0 %489
  %v491 = vrcp.pop 32.0
  %v492 = vmul.f32 32.0, %v491
  %v493 = vsub.f32 1.0, %v492
  %v494 = vmul.f32 %v491, %v493
  %v495 = vadd.f32 %v491, %v494
  %vm496 = vweird.f32 %v491
  %v497 = vsel %vm496, %v491, %v495
  %v498 = vmul.f32 %v475, %v497
  %v499 = vmul.f32 %v478, %v497
  %v500 = vmul.f32 %v481, %v497
  %v501 = vmul.f32 %v484, %v497
  %v502 = vmul.f32 %v487, %v497
  %v503 = vmul.f32 %v490, %v497
  %v504 = vsub.f32 %v455, %v498
  %v505 = vsub.f32 %v456, %v499
  %v506 = vsub.f32 %v457, %v500
  %v507 = vsub.f32 %v458, %v501
  %v508 = vsub.f32 %v459, %v502
  %v509 = vsub.f32 %v460, %v503
  %v510 = vmul.f32 %v504, %v504
  %v511 = vmul.f32 %v505, %v505
  %v512 = vmul.f32 %v506, %v506
  %v513 = vmul.f32 %v507, %v507
  %v514 = vmul.f32 %v508, %v508
  %v515 = vmul.f32 %v509, %v509
  %v516 = vsel %vm184, %v510, 0.0
  %517 = vadd.xlane.f32.xlu0 %v516
  %v518 = vpop.xlane.xlu0 %517
  %v519 = vsel %vm184, %v511, 0.0
  %520 = vadd.xlane.f32.xlu0 %v519
  %v521 = vpop.xlane.xlu0 %520
  %v522 = vsel %vm184, %v512, 0.0
  %523 = vadd.xlane.f32.xlu0 %v522
  %v524 = vpop.xlane.xlu0 %523
  %v525 = vsel %vm184, %v513, 0.0
  %526 = vadd.xlane.f32.xlu0 %v525
  %v527 = vpop.xlane.xlu0 %526
  %v528 = vsel %vm184, %v514, 0.0
  %529 = vadd.xlane.f32.xlu0 %v528
  %v530 = vpop.xlane.xlu0 %529
  %v531 = vsel %vm184, %v515, 0.0
  %532 = vadd.xlane.f32.xlu0 %v531
  %v533 = vpop.xlane.xlu0 %532
  %v534 = vmul.f32 %v518, %v497
  %v535 = vmul.f32 %v521, %v497
  %v536 = vmul.f32 %v524, %v497
  %v537 = vmul.f32 %v527, %v497
  %v538 = vmul.f32 %v530, %v497
  %v539 = vmul.f32 %v533, %v497
  %v540 = vadd.f32 %v534, 1e-05
  %v541 = vadd.f32 %v535, 1e-05
  %v542 = vadd.f32 %v536, 1e-05
  %v543 = vadd.f32 %v537, 1e-05
  %v544 = vadd.f32 %v538, 1e-05
  %v545 = vadd.f32 %v539, 1e-05
  %v546 = vrsqrt.pop %v540
  %v547 = vmul.f32 %v546, %v540
  %v548 = vmul.f32 %v547, %v546
  %v549 = vmul.f32 0.5, %v548
  %v550 = vsub.f32 1.5, %v549
  %v551 = vmul.f32 %v546, %v550
  %vm552 = vweird.f32 %v540
  %vm553 = vweird.f32 %v546
  %vm554 = vmor %vm552, %vm553
  %v555 = vsel %vm554, %v546, %v551
  %v556 = vrsqrt.pop %v541
  %v557 = vmul.f32 %v556, %v541
  %v558 = vmul.f32 %v557, %v556
  %v559 = vmul.f32 0.5, %v558
  %v560 = vsub.f32 1.5, %v559
  %v561 = vmul.f32 %v556, %v560
  %vm562 = vweird.f32 %v541
  %vm563 = vweird.f32 %v556
  %vm564 = vmor %vm562, %vm563
  %v565 = vsel %vm564, %v556, %v561
  %v566 = vrsqrt.pop %v542
  %v567 = vmul.f32 %v566, %v542
  %v568 = vmul.f32 %v567, %v566
  %v569 = vmul.f32 0.5, %v568
  %v570 = vsub.f32 1.5, %v569
  %v571 = vmul.f32 %v566, %v570
  %vm572 = vweird.f32 %v542
  %vm573 = vweird.f32 %v566
  %vm574 = vmor %vm572, %vm573
  %v575 = vsel %vm574, %v566, %v571
  %v576 = vrsqrt.pop %v543
  %v577 = vmul.f32 %v576, %v543
  %v578 = vmul.f32 %v577, %v576
  %v579 = vmul.f32 0.5, %v578
  %v580 = vsub.f32 1.5, %v579
  %v581 = vmul.f32 %v576, %v580
  %vm582 = vweird.f32 %v543
  %vm583 = vweird.f32 %v576
  %vm584 = vmor %vm582, %vm583
  %v585 = vsel %vm584, %v576, %v581
  %v586 = vrsqrt.pop %v544
  %v587 = vmul.f32 %v586, %v544
  %v588 = vmul.f32 %v587, %v586
  %v589 = vmul.f32 0.5, %v588
  %v590 = vsub.f32 1.5, %v589
  %v591 = vmul.f32 %v586, %v590
  %vm592 = vweird.f32 %v544
  %vm593 = vweird.f32 %v586
  %vm594 = vmor %vm592, %vm593
  %v595 = vsel %vm594, %v586, %v591
  %v596 = vrsqrt.pop %v545
  %v597 = vmul.f32 %v596, %v545
  %v598 = vmul.f32 %v597, %v596
  %v599 = vmul.f32 0.5, %v598
  %v600 = vsub.f32 1.5, %v599
  %v601 = vmul.f32 %v596, %v600
  %vm602 = vweird.f32 %v545
  %vm603 = vweird.f32 %v596
  %vm604 = vmor %vm602, %vm603
  %v605 = vsel %vm604, %v596, %v601
  %v606 = vmul.f32 %v504, %v555
  %v607 = vmul.f32 %v505, %v565
  %v608 = vmul.f32 %v506, %v575
  %v609 = vmul.f32 %v507, %v585
  %v610 = vmul.f32 %v508, %v595
  %v611 = vmul.f32 %v509, %v605
  %v613 = vperm.slane %v461, 0
  %v615 = vmul.f32 %v606, %v613
  %v616 = vmul.f32 %v607, %v613
  %v617 = vmul.f32 %v608, %v613
  %v618 = vmul.f32 %v609, %v613
  %v619 = vmul.f32 %v610, %v613
  %v620 = vmul.f32 %v611, %v613
  %v622 = vperm.slane %v462, 0
  %v624 = vadd.f32 %v615, %v622
  %v625 = vadd.f32 %v616, %v622
  %v626 = vadd.f32 %v617, %v622
  %v627 = vadd.f32 %v618, %v622
  %v628 = vadd.f32 %v619, %v622
  %v629 = vadd.f32 %v620, %v622
  %v630 = vmax.f32 %v624, 0.0
  %v631 = vmax.f32 %v625, 0.0
  %v632 = vmax.f32 %v626, 0.0
  %v633 = vmax.f32 %v627, 0.0
  %v634 = vmax.f32 %v628, 0.0
  %v635 = vmax.f32 %v629, 0.0
  %642 = vrot.lane.b32.xlu0 %v455, 96
  %v643 = vpop.permute.xlu0 %642
  %644 = vrot.lane.b32.xlu0 %v456, 96
  %v645 = vpop.permute.xlu0 %644
  %646 = vrot.lane.b32.xlu0 %v457, 96
  %v647 = vpop.permute.xlu0 %646
  %648 = vrot.lane.b32.xlu0 %v458, 96
  %v649 = vpop.permute.xlu0 %648
  %650 = vrot.lane.b32.xlu0 %v459, 96
  %v651 = vpop.permute.xlu0 %650
  %652 = vrot.lane.b32.xlu0 %v460, 96
  %v653 = vpop.permute.xlu0 %652
  %v660 = vsel %vm184, %v643, 0.0
  %661 = vadd.xlane.f32.xlu0 %v660
  %v662 = vpop.xlane.xlu0 %661
  %v663 = vsel %vm184, %v645, 0.0
  %664 = vadd.xlane.f32.xlu0 %v663
  %v665 = vpop.xlane.xlu0 %664
  %v666 = vsel %vm184, %v647, 0.0
  %667 = vadd.xlane.f32.xlu0 %v666
  %v668 = vpop.xlane.xlu0 %667
  %v669 = vsel %vm184, %v649, 0.0
  %670 = vadd.xlane.f32.xlu0 %v669
  %v671 = vpop.xlane.xlu0 %670
  %v672 = vsel %vm184, %v651, 0.0
  %673 = vadd.xlane.f32.xlu0 %v672
  %v674 = vpop.xlane.xlu0 %673
  %v675 = vsel %vm184, %v653, 0.0
  %676 = vadd.xlane.f32.xlu0 %v675
  %v677 = vpop.xlane.xlu0 %676
  %v678 = vmul.f32 %v662, %v497
  %v679 = vmul.f32 %v665, %v497
  %v680 = vmul.f32 %v668, %v497
  %v681 = vmul.f32 %v671, %v497
  %v682 = vmul.f32 %v674, %v497
  %v683 = vmul.f32 %v677, %v497
  %v684 = vsub.f32 %v455, %v678
  %v685 = vsub.f32 %v456, %v679
  %v686 = vsub.f32 %v457, %v680
  %v687 = vsub.f32 %v458, %v681
  %v688 = vsub.f32 %v459, %v682
  %v689 = vsub.f32 %v460, %v683
  %v690 = vmul.f32 %v684, %v684
  %v691 = vmul.f32 %v685, %v685
  %v692 = vmul.f32 %v686, %v686
  %v693 = vmul.f32 %v687, %v687
  %v694 = vmul.f32 %v688, %v688
  %v695 = vmul.f32 %v689, %v689
  %702 = vrot.lane.b32.xlu0 %v690, 96
  %v703 = vpop.permute.xlu0 %702
  %704 = vrot.lane.b32.xlu0 %v691, 96
  %v705 = vpop.permute.xlu0 %704
  %706 = vrot.lane.b32.xlu0 %v692, 96
  %v707 = vpop.permute.xlu0 %706
  %708 = vrot.lane.b32.xlu0 %v693, 96
  %v709 = vpop.permute.xlu0 %708
  %710 = vrot.lane.b32.xlu0 %v694, 96
  %v711 = vpop.permute.xlu0 %710
  %712 = vrot.lane.b32.xlu0 %v695, 96
  %v713 = vpop.permute.xlu0 %712
  %v720 = vsel %vm184, %v703, 0.0
  %721 = vadd.xlane.f32.xlu0 %v720
  %v722 = vpop.xlane.xlu0 %721
  %v723 = vsel %vm184, %v705, 0.0
  %724 = vadd.xlane.f32.xlu0 %v723
  %v725 = vpop.xlane.xlu0 %724
  %v726 = vsel %vm184, %v707, 0.0
  %727 = vadd.xlane.f32.xlu0 %v726
  %v728 = vpop.xlane.xlu0 %727
  %v729 = vsel %vm184, %v709, 0.0
  %730 = vadd.xlane.f32.xlu0 %v729
  %v731 = vpop.xlane.xlu0 %730
  %v732 = vsel %vm184, %v711, 0.0
  %733 = vadd.xlane.f32.xlu0 %v732
  %v734 = vpop.xlane.xlu0 %733
  %v735 = vsel %vm184, %v713, 0.0
  %736 = vadd.xlane.f32.xlu0 %v735
  %v737 = vpop.xlane.xlu0 %736
  %v738 = vmul.f32 %v722, %v497
  %v739 = vmul.f32 %v725, %v497
  %v740 = vmul.f32 %v728, %v497
  %v741 = vmul.f32 %v731, %v497
  %v742 = vmul.f32 %v734, %v497
  %v743 = vmul.f32 %v737, %v497
  %v744 = vadd.f32 %v738, 1e-05
  %v745 = vadd.f32 %v739, 1e-05
  %v746 = vadd.f32 %v740, 1e-05
  %v747 = vadd.f32 %v741, 1e-05
  %v748 = vadd.f32 %v742, 1e-05
  %v749 = vadd.f32 %v743, 1e-05
  %v750 = vrsqrt.pop %v744
  %v751 = vmul.f32 %v750, %v744
  %v752 = vmul.f32 %v751, %v750
  %v753 = vmul.f32 0.5, %v752
  %v754 = vsub.f32 1.5, %v753
  %v755 = vmul.f32 %v750, %v754
  %vm756 = vweird.f32 %v744
  %vm757 = vweird.f32 %v750
  %vm758 = vmor %vm756, %vm757
  %v759 = vsel %vm758, %v750, %v755
  %v760 = vrsqrt.pop %v745
  %v761 = vmul.f32 %v760, %v745
  %v762 = vmul.f32 %v761, %v760
  %v763 = vmul.f32 0.5, %v762
  %v764 = vsub.f32 1.5, %v763
  %v765 = vmul.f32 %v760, %v764
  %vm766 = vweird.f32 %v745
  %vm767 = vweird.f32 %v760
  %vm768 = vmor %vm766, %vm767
  %v769 = vsel %vm768, %v760, %v765
  %v770 = vrsqrt.pop %v746
  %v771 = vmul.f32 %v770, %v746
  %v772 = vmul.f32 %v771, %v770
  %v773 = vmul.f32 0.5, %v772
  %v774 = vsub.f32 1.5, %v773
  %v775 = vmul.f32 %v770, %v774
  %vm776 = vweird.f32 %v746
  %vm777 = vweird.f32 %v770
  %vm778 = vmor %vm776, %vm777
  %v779 = vsel %vm778, %v770, %v775
  %v780 = vrsqrt.pop %v747
  %v781 = vmul.f32 %v780, %v747
  %v782 = vmul.f32 %v781, %v780
  %v783 = vmul.f32 0.5, %v782
  %v784 = vsub.f32 1.5, %v783
  %v785 = vmul.f32 %v780, %v784
  %vm786 = vweird.f32 %v747
  %vm787 = vweird.f32 %v780
  %vm788 = vmor %vm786, %vm787
  %v789 = vsel %vm788, %v780, %v785
  %v790 = vrsqrt.pop %v748
  %v791 = vmul.f32 %v790, %v748
  %v792 = vmul.f32 %v791, %v790
  %v793 = vmul.f32 0.5, %v792
  %v794 = vsub.f32 1.5, %v793
  %v795 = vmul.f32 %v790, %v794
  %vm796 = vweird.f32 %v748
  %vm797 = vweird.f32 %v790
  %vm798 = vmor %vm796, %vm797
  %v799 = vsel %vm798, %v790, %v795
  %v800 = vrsqrt.pop %v749
  %v801 = vmul.f32 %v800, %v749
  %v802 = vmul.f32 %v801, %v800
  %v803 = vmul.f32 0.5, %v802
  %v804 = vsub.f32 1.5, %v803
  %v805 = vmul.f32 %v800, %v804
  %vm806 = vweird.f32 %v749
  %vm807 = vweird.f32 %v800
  %vm808 = vmor %vm806, %vm807
  %v809 = vsel %vm808, %v800, %v805
  %v810 = vmul.f32 %v684, %v759
  %v811 = vmul.f32 %v685, %v769
  %v812 = vmul.f32 %v686, %v779
  %v813 = vmul.f32 %v687, %v789
  %v814 = vmul.f32 %v688, %v799
  %v815 = vmul.f32 %v689, %v809
  %v816 = vmul.f32 %v810, %v613
  %v817 = vmul.f32 %v811, %v613
  %v818 = vmul.f32 %v812, %v613
  %v819 = vmul.f32 %v813, %v613
  %v820 = vmul.f32 %v814, %v613
  %v821 = vmul.f32 %v815, %v613
  %v822 = vadd.f32 %v816, %v622
  %v823 = vadd.f32 %v817, %v622
  %v824 = vadd.f32 %v818, %v622
  %v825 = vadd.f32 %v819, %v622
  %v826 = vadd.f32 %v820, %v622
  %v827 = vadd.f32 %v821, %v622
  %v828 = vmax.f32 %v822, 0.0
  %v829 = vmax.f32 %v823, 0.0
  %v830 = vmax.f32 %v824, 0.0
  %v831 = vmax.f32 %v825, 0.0
  %v832 = vmax.f32 %v826, 0.0
  %v833 = vmax.f32 %v827, 0.0
  %v834 = vxor.u32 %v455, 2147483648
  %v835 = vxor.u32 %v456, 2147483648
  %v836 = vxor.u32 %v457, 2147483648
  %v837 = vxor.u32 %v458, 2147483648
  %v838 = vxor.u32 %v459, 2147483648
  %v839 = vxor.u32 %v460, 2147483648
  %v840 = vmul.f32 %v834, 1.442695
  %v841 = vpow.pop %v840
  %v842 = vmul.f32 %v835, 1.442695
  %v843 = vpow.pop %v842
  %v844 = vmul.f32 %v836, 1.442695
  %v845 = vpow.pop %v844
  %v846 = vmul.f32 %v837, 1.442695
  %v847 = vpow.pop %v846
  %v848 = vmul.f32 %v838, 1.442695
  %v849 = vpow.pop %v848
  %v850 = vmul.f32 %v839, 1.442695
  %v851 = vpow.pop %v850
  %v852 = vadd.f32 %v841, 1.0
  %v853 = vadd.f32 %v843, 1.0
  %v854 = vadd.f32 %v845, 1.0
  %v855 = vadd.f32 %v847, 1.0
  %v856 = vadd.f32 %v849, 1.0
  %v857 = vadd.f32 %v851, 1.0
  %v858 = vrcp.pop %v852
  %v859 = vmul.f32 %v852, %v858
  %v860 = vsub.f32 1.0, %v859
  %v861 = vmul.f32 %v858, %v860
  %v862 = vadd.f32 %v858, %v861
  %vm863 = vweird.f32 %v852
  %vm864 = vweird.f32 %v858
  %vm865 = vmor %vm863, %vm864
  %v866 = vsel %vm865, %v858, %v862
  %v867 = vand.u32 2147483647, %v852
  %vm868 = vcmp.eq.f32.partialorder %v867, 8.507059e+37
  %v869 = vand.u32 %v852, 2147483648
  %v870 = vor.u32 1.1754944e-38, %v869
  %v871 = vsel %vm868, %v870, %v866
  %v872 = vmul.f32 1.0, %v871
  %v873 = vrcp.pop %v853
  %v874 = vmul.f32 %v853, %v873
  %v875 = vsub.f32 1.0, %v874
  %v876 = vmul.f32 %v873, %v875
  %v877 = vadd.f32 %v873, %v876
  %vm878 = vweird.f32 %v853
  %vm879 = vweird.f32 %v873
  %vm880 = vmor %vm878, %vm879
  %v881 = vsel %vm880, %v873, %v877
  %v882 = vand.u32 2147483647, %v853
  %vm883 = vcmp.eq.f32.partialorder %v882, 8.507059e+37
  %v884 = vand.u32 %v853, 2147483648
  %v885 = vor.u32 1.1754944e-38, %v884
  %v886 = vsel %vm883, %v885, %v881
  %v887 = vmul.f32 1.0, %v886
  %v888 = vrcp.pop %v854
  %v889 = vmul.f32 %v854, %v888
  %v890 = vsub.f32 1.0, %v889
  %v891 = vmul.f32 %v888, %v890
  %v892 = vadd.f32 %v888, %v891
  %vm893 = vweird.f32 %v854
  %vm894 = vweird.f32 %v888
  %vm895 = vmor %vm893, %vm894
  %v896 = vsel %vm895, %v888, %v892
  %v897 = vand.u32 2147483647, %v854
  %vm898 = vcmp.eq.f32.partialorder %v897, 8.507059e+37
  %v899 = vand.u32 %v854, 2147483648
  %v900 = vor.u32 1.1754944e-38, %v899
  %v901 = vsel %vm898, %v900, %v896
  %v902 = vmul.f32 1.0, %v901
  %v903 = vrcp.pop %v855
  %v904 = vmul.f32 %v855, %v903
  %v905 = vsub.f32 1.0, %v904
  %v906 = vmul.f32 %v903, %v905
  %v907 = vadd.f32 %v903, %v906
  %vm908 = vweird.f32 %v855
  %vm909 = vweird.f32 %v903
  %vm910 = vmor %vm908, %vm909
  %v911 = vsel %vm910, %v903, %v907
  %v912 = vand.u32 2147483647, %v855
  %vm913 = vcmp.eq.f32.partialorder %v912, 8.507059e+37
  %v914 = vand.u32 %v855, 2147483648
  %v915 = vor.u32 1.1754944e-38, %v914
  %v916 = vsel %vm913, %v915, %v911
  %v917 = vmul.f32 1.0, %v916
  %v918 = vrcp.pop %v856
  %v919 = vmul.f32 %v856, %v918
  %v920 = vsub.f32 1.0, %v919
  %v921 = vmul.f32 %v918, %v920
  %v922 = vadd.f32 %v918, %v921
  %vm923 = vweird.f32 %v856
  %vm924 = vweird.f32 %v918
  %vm925 = vmor %vm923, %vm924
  %v926 = vsel %vm925, %v918, %v922
  %v927 = vand.u32 2147483647, %v856
  %vm928 = vcmp.eq.f32.partialorder %v927, 8.507059e+37
  %v929 = vand.u32 %v856, 2147483648
  %v930 = vor.u32 1.1754944e-38, %v929
  %v931 = vsel %vm928, %v930, %v926
  %v932 = vmul.f32 1.0, %v931
  %v933 = vrcp.pop %v857
  %v934 = vmul.f32 %v857, %v933
  %v935 = vsub.f32 1.0, %v934
  %v936 = vmul.f32 %v933, %v935
  %v937 = vadd.f32 %v933, %v936
  %vm938 = vweird.f32 %v857
  %vm939 = vweird.f32 %v933
  %vm940 = vmor %vm938, %vm939
  %v941 = vsel %vm940, %v933, %v937
  %v942 = vand.u32 2147483647, %v857
  %vm943 = vcmp.eq.f32.partialorder %v942, 8.507059e+37
  %v944 = vand.u32 %v857, 2147483648
  %v945 = vor.u32 1.1754944e-38, %v944
  %v946 = vsel %vm943, %v945, %v941
  %v947 = vmul.f32 1.0, %v946
  %v948 = vpack.c.bf16 %v631, %v630
  %v949 = vpack.c.bf16 %v633, %v632
  %v950 = vpack.c.bf16 %v635, %v634
  %v952 = vperm.slane %v467, 0
  %v958 = vunpack.c.l.b16 %v463
  %v959 = vunpack.c.l.b16 %v464
  %v960 = vunpack.c.l.b16 %v465
  %v961 = vunpack.c.l.b16 %v466
  %v962 = vpack.c.b16 %v959, %v958
  %v963 = vpack.c.b16 %v961, %v960
  %v967 = vsel %vm184, %v948, 0
  %v970 = vsel %vm184, %v949, 0
  %v973 = vsel %vm184, %v950, 0
  %975 = vmatpush.bf16.msra.mxu0 0
  %976 = vmatpush.bf16.msra.mxu0 0
  %977 = vmatpush.bf16.msra.mxu0 0
  %978 = vmatpush.bf16.msra.mxu0 0
  %979 = vmatpush.bf16.msra.mxu0 0
  %980 = vmatpush.bf16.msra.mxu0 0
  %981 = vmatpush.bf16.msra.mxu0 %v963
  %982 = vmatpush.bf16.msra.mxu0 %v962
  %983 = vmatmul.bf16.gmra.mxu0 %v967
  %v984 = vpop.f32.mrf.mxu0
  %v985 = vadd.f32 %v952, %v984
  %v986 = vpop.f32.mrf.mxu0
  %v987 = vadd.f32 %v952, %v986
  %988 = vmatmul.bf16.gmra.mxu0 %v970
  %v989 = vpop.f32.mrf.mxu0
  %v990 = vadd.f32 %v952, %v989
  %v991 = vpop.f32.mrf.mxu0
  %v992 = vadd.f32 %v952, %v991
  %993 = vmatmul.bf16.gmra.mxu0 %v973
  %v994 = vpop.f32.mrf.mxu0
  %v995 = vadd.f32 %v952, %v994
  %v996 = vpop.f32.mrf.mxu0
  %v997 = vadd.f32 %v952, %v996
  %998 = vdwg.mxu0
  %v999 = vpack.c.bf16 %v829, %v828
  %v1000 = vpack.c.bf16 %v831, %v830
  %v1001 = vpack.c.bf16 %v833, %v832
  %v1003 = vperm.slane %v472, 0
  %1008 = vrot.lane.b32.xlu0 %v999, 96
  %v1009 = vpop.permute.xlu0 %1008
  %1010 = vrot.lane.b32.xlu0 %v1000, 96
  %v1011 = vpop.permute.xlu0 %1010
  %1012 = vrot.lane.b32.xlu0 %v1001, 96
  %v1013 = vpop.permute.xlu0 %1012
  %v1018 = vunpack.c.l.b16 %v468
  %v1019 = vunpack.c.l.b16 %v469
  %v1020 = vunpack.c.l.b16 %v470
  %v1021 = vunpack.c.l.b16 %v471
  %v1022 = vpack.c.b16 %v1019, %v1018
  %v1023 = vpack.c.b16 %v1021, %v1020
  %v1027 = vsel %vm184, %v1009, 0
  %v1030 = vsel %vm184, %v1011, 0
  %v1033 = vsel %vm184, %v1013, 0
  %1035 = vmatpush.bf16.msra.mxu0 0
  %1036 = vmatpush.bf16.msra.mxu0 0
  %1037 = vmatpush.bf16.msra.mxu0 0
  %1038 = vmatpush.bf16.msra.mxu0 0
  %1039 = vmatpush.bf16.msra.mxu0 0
  %1040 = vmatpush.bf16.msra.mxu0 0
  %1041 = vmatpush.bf16.msra.mxu0 %v1023
  %1042 = vmatpush.bf16.msra.mxu0 %v1022
  %1043 = vmatmul.bf16.gmra.mxu0 %v1027
  %v1044 = vpop.f32.mrf.mxu0
  %v1045 = vadd.f32 %v1003, %v1044
  %v1046 = vpop.f32.mrf.mxu0
  %v1047 = vadd.f32 %v1003, %v1046
  %1048 = vmatmul.bf16.gmra.mxu0 %v1030
  %v1049 = vpop.f32.mrf.mxu0
  %v1050 = vadd.f32 %v1003, %v1049
  %v1051 = vpop.f32.mrf.mxu0
  %v1052 = vadd.f32 %v1003, %v1051
  %1053 = vmatmul.bf16.gmra.mxu0 %v1033
  %v1054 = vpop.f32.mrf.mxu0
  %v1055 = vadd.f32 %v1003, %v1054
  %v1056 = vpop.f32.mrf.mxu0
  %v1057 = vadd.f32 %v1003, %v1056
  %1058 = vdwg.mxu0
  %v1059 = vld [vmem:[%s37] sm:$0xf]
  %v1060 = vld [vmem:[%s37 + $0x4] sm:$0xf]
  %v1061 = vld [vmem:[%s37 + $0x8] sm:$0xf]
  %v1062 = vld [vmem:[%s37 + $0xc] sm:$0xf]
  %v1063 = vld [vmem:[%s39] sm:$0x1]
  %v1064 = vld [vmem:[%s41] sm:$0x1]
  %v1065 = vld [vmem:[%s43] sm:$0x1]
  %v1066 = vld [vmem:[%s45] sm:$0xf]
  %v1067 = vld [vmem:[%s45 + $0x4] sm:$0xf]
  %v1068 = vld [vmem:[%s45 + $0x8] sm:$0xf]
  %v1069 = vld [vmem:[%s45 + $0xc] sm:$0xf]
  %v1070 = vld [vmem:[%s47] sm:$0x1]
  %v1072 = vperm.slane %v1063, 0
  %v1078 = vunpack.c.l.b16 %v1059
  %v1079 = vunpack.c.l.b16 %v1060
  %v1080 = vunpack.c.l.b16 %v1061
  %v1081 = vunpack.c.l.b16 %v1062
  %v1082 = vpack.c.b16 %v1079, %v1078
  %v1083 = vpack.c.b16 %v1081, %v1080
  %1086 = vmatpush.bf16.msra.mxu0 0
  %1087 = vmatpush.bf16.msra.mxu0 0
  %1088 = vmatpush.bf16.msra.mxu0 0
  %1089 = vmatpush.bf16.msra.mxu0 0
  %1090 = vmatpush.bf16.msra.mxu0 0
  %1091 = vmatpush.bf16.msra.mxu0 0
  %1092 = vmatpush.bf16.msra.mxu0 %v1083
  %1093 = vmatpush.bf16.msra.mxu0 %v1082
  %1094 = vmatmul.bf16.gmra.mxu0 %v186
  %v1095 = vpop.f32.mrf.mxu0
  %v1096 = vadd.f32 %v1072, %v1095
  %v1097 = vpop.f32.mrf.mxu0
  %v1098 = vadd.f32 %v1072, %v1097
  %1099 = vdwg.mxu0
  %v1100 = vsel %vm184, %v1096, 0.0
  %1101 = vadd.xlane.f32.xlu0 %v1100
  %v1102 = vpop.xlane.xlu0 %1101
  %v1103 = vsel %vm184, %v1098, 0.0
  %1104 = vadd.xlane.f32.xlu0 %v1103
  %v1105 = vpop.xlane.xlu0 %1104
  %v1106 = vmul.f32 %v1102, %v497
  %v1107 = vmul.f32 %v1105, %v497
  %v1108 = vsub.f32 %v1096, %v1106
  %v1109 = vsub.f32 %v1098, %v1107
  %v1110 = vmul.f32 %v1108, %v1108
  %v1111 = vmul.f32 %v1109, %v1109
  %v1112 = vsel %vm184, %v1110, 0.0
  %1113 = vadd.xlane.f32.xlu0 %v1112
  %v1114 = vpop.xlane.xlu0 %1113
  %v1115 = vsel %vm184, %v1111, 0.0
  %1116 = vadd.xlane.f32.xlu0 %v1115
  %v1117 = vpop.xlane.xlu0 %1116
  %v1118 = vmul.f32 %v1114, %v497
  %v1119 = vmul.f32 %v1117, %v497
  %v1120 = vadd.f32 %v1118, 1e-05
  %v1121 = vadd.f32 %v1119, 1e-05
  %v1122 = vrsqrt.pop %v1120
  %v1123 = vmul.f32 %v1122, %v1120
  %v1124 = vmul.f32 %v1123, %v1122
  %v1125 = vmul.f32 0.5, %v1124
  %v1126 = vsub.f32 1.5, %v1125
  %v1127 = vmul.f32 %v1122, %v1126
  %vm1128 = vweird.f32 %v1120
  %vm1129 = vweird.f32 %v1122
  %vm1130 = vmor %vm1128, %vm1129
  %v1131 = vsel %vm1130, %v1122, %v1127
  %v1132 = vrsqrt.pop %v1121
  %v1133 = vmul.f32 %v1132, %v1121
  %v1134 = vmul.f32 %v1133, %v1132
  %v1135 = vmul.f32 0.5, %v1134
  %v1136 = vsub.f32 1.5, %v1135
  %v1137 = vmul.f32 %v1132, %v1136
  %vm1138 = vweird.f32 %v1121
  %vm1139 = vweird.f32 %v1132
  %vm1140 = vmor %vm1138, %vm1139
  %v1141 = vsel %vm1140, %v1132, %v1137
  %v1142 = vmul.f32 %v1108, %v1131
  %v1143 = vmul.f32 %v1109, %v1141
  %v1145 = vperm.slane %v1064, 0
  %v1147 = vmul.f32 %v1142, %v1145
  %v1148 = vmul.f32 %v1143, %v1145
  %v1150 = vperm.slane %v1065, 0
  %v1152 = vadd.f32 %v1147, %v1150
  %v1153 = vadd.f32 %v1148, %v1150
  %v1154 = vmax.f32 %v1152, 0.0
  %v1155 = vmax.f32 %v1153, 0.0
  %v1156 = vpack.c.bf16 %v1155, %v1154
  %v1158 = vperm.slane %v1070, 0
  %v1164 = vunpack.c.l.b16 %v1066
  %v1165 = vunpack.c.l.b16 %v1067
  %v1166 = vunpack.c.l.b16 %v1068
  %v1167 = vunpack.c.l.b16 %v1069
  %v1168 = vpack.c.b16 %v1165, %v1164
  %v1169 = vpack.c.b16 %v1167, %v1166
  %v1173 = vsel %vm184, %v1156, 0
  %1175 = vmatpush.bf16.msra.mxu0 0
  %1176 = vmatpush.bf16.msra.mxu0 0
  %1177 = vmatpush.bf16.msra.mxu0 0
  %1178 = vmatpush.bf16.msra.mxu0 0
  %1179 = vmatpush.bf16.msra.mxu0 0
  %1180 = vmatpush.bf16.msra.mxu0 0
  %1181 = vmatpush.bf16.msra.mxu0 %v1169
  %1182 = vmatpush.bf16.msra.mxu0 %v1168
  %1183 = vmatmul.bf16.gmra.mxu0 %v1173
  %v1184 = vpop.f32.mrf.mxu0
  %v1185 = vadd.f32 %v1158, %v1184
  %v1186 = vpop.f32.mrf.mxu0
  %v1187 = vadd.f32 %v1158, %v1186
  %1188 = vdwg.mxu0
  %v1189 = vpack.c.bf16 %v1187, %v1185
  %1190 = vmatpush.bf16.msra.mxu0 0
  %1191 = vmatpush.bf16.msra.mxu0 0
  %1192 = vmatpush.bf16.msra.mxu0 0
  %1193 = vmatpush.bf16.msra.mxu0 0
  %1194 = vmatpush.bf16.msra.mxu0 0
  %1195 = vmatpush.bf16.msra.mxu0 0
  %1196 = vmatpush.bf16.msra.mxu0 0
  %1197 = vmatpush.bf16.msra.mxu0 %v1189
  %1198 = vmatmul.bf16.gmra.mxu0 %v359
  %v1199 = vpop.f32.mrf.mxu0
  %v1200 = vadd.f32 0.0, %v1199
  %v1201 = vpop.f32.mrf.mxu0
  %v1202 = vadd.f32 0.0, %v1201
  %1203 = vmatmul.bf16.gmra.mxu0 %v362
  %v1204 = vpop.f32.mrf.mxu0
  %v1205 = vadd.f32 0.0, %v1204
  %v1206 = vpop.f32.mrf.mxu0
  %v1207 = vadd.f32 0.0, %v1206
  %1208 = vmatmul.bf16.gmra.mxu0 %v365
  %v1209 = vpop.f32.mrf.mxu0
  %v1210 = vadd.f32 0.0, %v1209
  %v1211 = vpop.f32.mrf.mxu0
  %v1212 = vadd.f32 0.0, %v1211
  %1213 = vdwg.mxu0
  %v1214 = vmul.f32 %v1200, %v985
  %v1215 = vmul.f32 %v1202, %v987
  %v1216 = vmul.f32 %v1205, %v990
  %v1217 = vmul.f32 %v1207, %v992
  %v1218 = vmul.f32 %v1210, %v995
  %v1219 = vmul.f32 %v1212, %v997
  %v1220 = vld [vmem:[%s11] sm:$0xf]
  %v1221 = vld [vmem:[%s11 + $0x4] sm:$0xf]
  %v1222 = vld [vmem:[%s11 + $0x8] sm:$0xf]
  %v1223 = vld [vmem:[%s11 + $0xc] sm:$0xf]
  %v1224 = vpack.c.bf16 %v1215, %v1214
  %v1225 = vpack.c.bf16 %v1217, %v1216
  %v1226 = vpack.c.bf16 %v1219, %v1218
  %v1231 = vunpack.c.l.b16 %v1220
  %v1232 = vunpack.c.l.b16 %v1221
  %v1233 = vunpack.c.l.b16 %v1222
  %v1234 = vunpack.c.l.b16 %v1223
  %v1235 = vpack.c.b16 %v1232, %v1231
  %v1236 = vpack.c.b16 %v1234, %v1233
  %v1240 = vsel %vm184, %v1224, 0
  %v1243 = vsel %vm184, %v1225, 0
  %v1246 = vsel %vm184, %v1226, 0
  %1248 = vmatpush.bf16.msra.mxu0 0
  %1249 = vmatpush.bf16.msra.mxu0 0
  %1250 = vmatpush.bf16.msra.mxu0 0
  %1251 = vmatpush.bf16.msra.mxu0 0
  %1252 = vmatpush.bf16.msra.mxu0 0
  %1253 = vmatpush.bf16.msra.mxu0 0
  %1254 = vmatpush.bf16.msra.mxu0 %v1236
  %1255 = vmatpush.bf16.msra.mxu0 %v1235
  %1256 = vmatmul.bf16.gmra.mxu0 %v1240
  %v1257 = vpop.f32.mrf.mxu0
  %v1258 = vadd.f32 0.0, %v1257
  %v1259 = vpop.f32.mrf.mxu0
  %v1260 = vadd.f32 0.0, %v1259
  %1261 = vmatmul.bf16.gmra.mxu0 %v1243
  %v1262 = vpop.f32.mrf.mxu0
  %v1263 = vadd.f32 0.0, %v1262
  %v1264 = vpop.f32.mrf.mxu0
  %v1265 = vadd.f32 0.0, %v1264
  %1266 = vmatmul.bf16.gmra.mxu0 %v1246
  %v1267 = vpop.f32.mrf.mxu0
  %v1268 = vadd.f32 0.0, %v1267
  %v1269 = vpop.f32.mrf.mxu0
  %v1270 = vadd.f32 0.0, %v1269
  %1271 = vdwg.mxu0
  %v1272 = vunpack.c.l.bf16 %v133
  %v1273 = vunpack.c.l.bf16 %v134
  %v1274 = vunpack.c.l.bf16 %v135
  %v1275 = vunpack.c.l.bf16 %v136
  %v1276 = vunpack.c.l.bf16 %v137
  %v1277 = vunpack.c.l.bf16 %v138
  %v1278 = vsub.f32 %v1272, 1.0
  %v1279 = vsub.f32 %v1273, 1.0
  %v1280 = vsub.f32 %v1274, 1.0
  %v1281 = vsub.f32 %v1275, 1.0
  %v1282 = vsub.f32 %v1276, 1.0
  %v1283 = vsub.f32 %v1277, 1.0
  %v1284 = vmul.f32 %v1278, 1e+30
  %v1285 = vmul.f32 %v1279, 1e+30
  %v1286 = vmul.f32 %v1280, 1e+30
  %v1287 = vmul.f32 %v1281, 1e+30
  %v1288 = vmul.f32 %v1282, 1e+30
  %v1289 = vmul.f32 %v1283, 1e+30
  %1291 = vset.pattern.permute.xlu0 0
  %1292 = vperm.xlu0 %1291, %v1258
  %v1293 = vpop.permute.xlu0 %1292
  %1296 = vset.pattern.permute.xlu0 0
  %1297 = vperm.xlu0 %1296, %v1260
  %v1298 = vpop.permute.xlu0 %1297
  %1301 = vset.pattern.permute.xlu0 0
  %1302 = vperm.xlu0 %1301, %v1263
  %v1303 = vpop.permute.xlu0 %1302
  %1306 = vset.pattern.permute.xlu0 0
  %1307 = vperm.xlu0 %1306, %v1265
  %v1308 = vpop.permute.xlu0 %1307
  %1311 = vset.pattern.permute.xlu0 0
  %1312 = vperm.xlu0 %1311, %v1268
  %v1313 = vpop.permute.xlu0 %1312
  %1316 = vset.pattern.permute.xlu0 0
  %1317 = vperm.xlu0 %1316, %v1270
  %v1318 = vpop.permute.xlu0 %1317
  %v1320 = vadd.f32 %v1293, %v1284
  %v1321 = vadd.f32 %v1298, %v1285
  %v1322 = vadd.f32 %v1303, %v1286
  %v1323 = vadd.f32 %v1308, %v1287
  %v1324 = vadd.f32 %v1313, %v1288
  %v1325 = vadd.f32 %v1318, %v1289
  %v1326 = vsel %vm357, %v1320, -inf
  %v1327 = vsel %vm357, %v1321, -inf
  %v1328 = vsel %vm357, %v1322, -inf
  %v1329 = vsel %vm357, %v1323, -inf
  %v1330 = vsel %vm357, %v1324, -inf
  %v1331 = vmax.f32 %v1326, %v1330
  %v1332 = vsel %vm357, %v1325, -inf
  %v1333 = vmax.f32 %v1327, %v1332
  %v1334 = vmax.f32 %v1331, %v1333
  %v1335 = vmax.f32 %v1328, %v1329
  %v1336 = vmax.f32 %v1334, %v1335
  %v1337 = vrot.slane %v1336, 4
  %v1338 = vmax.f32 %v1336, %v1337
  %v1339 = vrot.slane %v1338, 2
  %v1340 = vmax.f32 %v1338, %v1339
  %v1341 = vrot.slane %v1340, 1
  %v1342 = vmax.f32 %v1340, %v1341
  %1343 = vset.pattern.permute.xlu0 1
  %1344 = vperm.xlu0 %1343, %v1258
  %v1345 = vpop.permute.xlu0 %1344
  %1347 = vset.pattern.permute.xlu0 1
  %1348 = vperm.xlu0 %1347, %v1260
  %v1349 = vpop.permute.xlu0 %1348
  %1351 = vset.pattern.permute.xlu0 1
  %1352 = vperm.xlu0 %1351, %v1263
  %v1353 = vpop.permute.xlu0 %1352
  %1355 = vset.pattern.permute.xlu0 1
  %1356 = vperm.xlu0 %1355, %v1265
  %v1357 = vpop.permute.xlu0 %1356
  %1359 = vset.pattern.permute.xlu0 1
  %1360 = vperm.xlu0 %1359, %v1268
  %v1361 = vpop.permute.xlu0 %1360
  %1363 = vset.pattern.permute.xlu0 1
  %1364 = vperm.xlu0 %1363, %v1270
  %v1365 = vpop.permute.xlu0 %1364
  %v1367 = vadd.f32 %v1345, %v1284
  %v1368 = vadd.f32 %v1349, %v1285
  %v1369 = vadd.f32 %v1353, %v1286
  %v1370 = vadd.f32 %v1357, %v1287
  %v1371 = vadd.f32 %v1361, %v1288
  %v1372 = vadd.f32 %v1365, %v1289
  %v1373 = vsel %vm357, %v1367, -inf
  %v1374 = vsel %vm357, %v1368, -inf
  %v1375 = vsel %vm357, %v1369, -inf
  %v1376 = vsel %vm357, %v1370, -inf
  %v1377 = vsel %vm357, %v1371, -inf
  %v1378 = vmax.f32 %v1373, %v1377
  %v1379 = vsel %vm357, %v1372, -inf
  %v1380 = vmax.f32 %v1374, %v1379
  %v1381 = vmax.f32 %v1378, %v1380
  %v1382 = vmax.f32 %v1375, %v1376
  %v1383 = vmax.f32 %v1381, %v1382
  %v1384 = vrot.slane %v1383, 4
  %v1385 = vmax.f32 %v1383, %v1384
  %v1386 = vrot.slane %v1385, 2
  %v1387 = vmax.f32 %v1385, %v1386
  %v1388 = vrot.slane %v1387, 1
  %v1389 = vmax.f32 %v1387, %v1388
  %1390 = vset.pattern.permute.xlu0 2
  %1391 = vperm.xlu0 %1390, %v1258
  %v1392 = vpop.permute.xlu0 %1391
  %1394 = vset.pattern.permute.xlu0 2
  %1395 = vperm.xlu0 %1394, %v1260
  %v1396 = vpop.permute.xlu0 %1395
  %1398 = vset.pattern.permute.xlu0 2
  %1399 = vperm.xlu0 %1398, %v1263
  %v1400 = vpop.permute.xlu0 %1399
  %1402 = vset.pattern.permute.xlu0 2
  %1403 = vperm.xlu0 %1402, %v1265
  %v1404 = vpop.permute.xlu0 %1403
  %1406 = vset.pattern.permute.xlu0 2
  %1407 = vperm.xlu0 %1406, %v1268
  %v1408 = vpop.permute.xlu0 %1407
  %1410 = vset.pattern.permute.xlu0 2
  %1411 = vperm.xlu0 %1410, %v1270
  %v1412 = vpop.permute.xlu0 %1411
  %v1414 = vadd.f32 %v1392, %v1284
  %v1415 = vadd.f32 %v1396, %v1285
  %v1416 = vadd.f32 %v1400, %v1286
  %v1417 = vadd.f32 %v1404, %v1287
  %v1418 = vadd.f32 %v1408, %v1288
  %v1419 = vadd.f32 %v1412, %v1289
  %v1420 = vsel %vm357, %v1414, -inf
  %v1421 = vsel %vm357, %v1415, -inf
  %v1422 = vsel %vm357, %v1416, -inf
  %v1423 = vsel %vm357, %v1417, -inf
  %v1424 = vsel %vm357, %v1418, -inf
  %v1425 = vmax.f32 %v1420, %v1424
  %v1426 = vsel %vm357, %v1419, -inf
  %v1427 = vmax.f32 %v1421, %v1426
  %v1428 = vmax.f32 %v1425, %v1427
  %v1429 = vmax.f32 %v1422, %v1423
  %v1430 = vmax.f32 %v1428, %v1429
  %v1431 = vrot.slane %v1430, 4
  %v1432 = vmax.f32 %v1430, %v1431
  %v1433 = vrot.slane %v1432, 2
  %v1434 = vmax.f32 %v1432, %v1433
  %v1435 = vrot.slane %v1434, 1
  %v1436 = vmax.f32 %v1434, %v1435
  %1437 = vset.pattern.permute.xlu0 3
  %1438 = vperm.xlu0 %1437, %v1258
  %v1439 = vpop.permute.xlu0 %1438
  %1441 = vset.pattern.permute.xlu0 3
  %1442 = vperm.xlu0 %1441, %v1260
  %v1443 = vpop.permute.xlu0 %1442
  %1445 = vset.pattern.permute.xlu0 3
  %1446 = vperm.xlu0 %1445, %v1263
  %v1447 = vpop.permute.xlu0 %1446
  %1449 = vset.pattern.permute.xlu0 3
  %1450 = vperm.xlu0 %1449, %v1265
  %v1451 = vpop.permute.xlu0 %1450
  %1453 = vset.pattern.permute.xlu0 3
  %1454 = vperm.xlu0 %1453, %v1268
  %v1455 = vpop.permute.xlu0 %1454
  %1457 = vset.pattern.permute.xlu0 3
  %1458 = vperm.xlu0 %1457, %v1270
  %v1459 = vpop.permute.xlu0 %1458
  %v1461 = vadd.f32 %v1439, %v1284
  %v1462 = vadd.f32 %v1443, %v1285
  %v1463 = vadd.f32 %v1447, %v1286
  %v1464 = vadd.f32 %v1451, %v1287
  %v1465 = vadd.f32 %v1455, %v1288
  %v1466 = vadd.f32 %v1459, %v1289
  %v1467 = vsel %vm357, %v1461, -inf
  %v1468 = vsel %vm357, %v1462, -inf
  %v1469 = vsel %vm357, %v1463, -inf
  %v1470 = vsel %vm357, %v1464, -inf
  %v1471 = vsel %vm357, %v1465, -inf
  %v1472 = vmax.f32 %v1467, %v1471
  %v1473 = vsel %vm357, %v1466, -inf
  %v1474 = vmax.f32 %v1468, %v1473
  %v1475 = vmax.f32 %v1472, %v1474
  %v1476 = vmax.f32 %v1469, %v1470
  %v1477 = vmax.f32 %v1475, %v1476
  %v1478 = vrot.slane %v1477, 4
  %v1479 = vmax.f32 %v1477, %v1478
  %v1480 = vrot.slane %v1479, 2
  %v1481 = vmax.f32 %v1479, %v1480
  %v1482 = vrot.slane %v1481, 1
  %v1483 = vmax.f32 %v1481, %v1482
  %vm1484 = vcmask 1040384
  %v1485 = vsel %vm1484, %v1342, %v1389
  %v1486 = vsel %vm253, %v1485, %v1436
  %vm1487 = vcmask 1042432
  %v1488 = vsel %vm1487, %v1486, %v1483
  %v1489 = vpack.c.bf16 %v1488, %v1488
  %v1491 = vsel %vm357, %v1489, 0
  %1493 = vmatpush.bf16.xpose.msra.mxu0 0
  %1494 = vmatpush.bf16.xpose.msra.mxu0 0
  %1495 = vmatpush.bf16.xpose.msra.mxu0 0
  %1496 = vmatpush.bf16.xpose.msra.mxu0 0
  %1497 = vmatpush.bf16.xpose.msra.mxu0 0
  %1498 = vmatpush.bf16.xpose.msra.mxu0 0
  %1499 = vmatpush.bf16.xpose.msra.mxu0 0
  %1500 = vmatpush.bf16.xpose.msra.mxu0 %v1491
  %1501 = vmatmul.bf16.gmra.mxu0 %v359
  %v1502 = vpop.f32.mrf.mxu0
  %v1503 = vadd.f32 0.0, %v1502
  %v1504 = vpop.f32.mrf.mxu0
  %v1505 = vadd.f32 0.0, %v1504
  %1506 = vmatmul.bf16.gmra.mxu0 %v362
  %v1507 = vpop.f32.mrf.mxu0
  %v1508 = vadd.f32 0.0, %v1507
  %v1509 = vpop.f32.mrf.mxu0
  %v1510 = vadd.f32 0.0, %v1509
  %1511 = vmatmul.bf16.gmra.mxu0 %v365
  %v1512 = vpop.f32.mrf.mxu0
  %v1513 = vadd.f32 0.0, %v1512
  %v1514 = vpop.f32.mrf.mxu0
  %v1515 = vadd.f32 0.0, %v1514
  %1516 = vdwg.mxu0
  %v1517 = vsub.f32 %v1258, %v1503
  %v1518 = vsub.f32 %v1260, %v1505
  %v1519 = vsub.f32 %v1263, %v1508
  %v1520 = vsub.f32 %v1265, %v1510
  %v1521 = vsub.f32 %v1268, %v1513
  %v1522 = vsub.f32 %v1270, %v1515
  %v1523 = vmul.f32 %v1517, 1.442695
  %v1524 = vpow.pop %v1523
  %v1525 = vmul.f32 %v1518, 1.442695
  %v1526 = vpow.pop %v1525
  %v1527 = vmul.f32 %v1519, 1.442695
  %v1528 = vpow.pop %v1527
  %v1529 = vmul.f32 %v1520, 1.442695
  %v1530 = vpow.pop %v1529
  %v1531 = vmul.f32 %v1521, 1.442695
  %v1532 = vpow.pop %v1531
  %v1533 = vmul.f32 %v1522, 1.442695
  %v1534 = vpow.pop %v1533
  %v1535 = vpack.c.bf16 %v1526, %v1524
  %v1536 = vpack.c.bf16 %v1530, %v1528
  %v1537 = vpack.c.bf16 %v1534, %v1532
  %1541 = vxpose.xlu0.c.b16.start [1/8] %v354, 128
  %1542 = vxpose.xlu0.c.b16.cont [2/8] %v355, 128
  %1543 = vxpose.xlu0.c.b16.cont [3/8] %v356, 128
  %1544 = vxpose.xlu0.c.b16.cont [4/8] 0, 128
  %1545 = vxpose.xlu0.c.b16.cont [5/8] 0, 128
  %1546 = vxpose.xlu0.c.b16.cont [6/8] 0, 128
  %1547 = vxpose.xlu0.c.b16.cont [7/8] 0, 128
  %1548 = vxpose.xlu0.c.b16.end [8/8] 0, 128
  %v1549 = vpop.trf.xlu0
  %v1550 = vpop.trf.xlu0
  %v1551 = vpop.trf.xlu0
  %v1552 = vpop.trf.xlu0
  %v1553 = vpop.trf.xlu0
  %v1554 = vpop.trf.xlu0
  %v1555 = vpop.trf.xlu0
  %v1556 = vpop.trf.xlu0
  %vm1557 = vcmask 392192
  %v1559 = vsel %vm1557, %v1549, 0
  %1561 = vmatpush.bf16.msra.mxu0 0
  %1562 = vmatpush.bf16.msra.mxu0 0
  %1563 = vmatpush.bf16.msra.mxu0 0
  %1564 = vmatpush.bf16.msra.mxu0 0
  %1565 = vmatpush.bf16.msra.mxu0 0
  %1566 = vmatpush.bf16.msra.mxu0 %v1537
  %1567 = vmatpush.bf16.msra.mxu0 %v1536
  %1568 = vmatpush.bf16.msra.mxu0 %v1535
  %1569 = vmatmul.bf16.gmra.mxu0 %v1559
  %v1570 = vpop.f32.mrf.mxu0
  %v1571 = vadd.f32 0.0, %v1570
  %v1572 = vpop.f32.mrf.mxu0
  %v1573 = vadd.f32 0.0, %v1572
  %1574 = vdwg.mxu0
  %v1575 = vmax.f32 %v1571, 1e-06
  %v1576 = vmax.f32 %v1573, 1e-06
  %v1577 = vrcp.pop %v1575
  %v1578 = vrcp.pop %v1576
  %v1579 = vpack.c.bf16 %v1578, %v1577
  %1580 = vmatpush.bf16.msra.mxu0 0
  %1581 = vmatpush.bf16.msra.mxu0 0
  %1582 = vmatpush.bf16.msra.mxu0 0
  %1583 = vmatpush.bf16.msra.mxu0 0
  %1584 = vmatpush.bf16.msra.mxu0 0
  %1585 = vmatpush.bf16.msra.mxu0 0
  %1586 = vmatpush.bf16.msra.mxu0 0
  %1587 = vmatpush.bf16.msra.mxu0 %v1579
  %1588 = vmatmul.bf16.gmra.mxu0 %v359
  %v1589 = vpop.f32.mrf.mxu0
  %v1590 = vadd.f32 0.0, %v1589
  %v1591 = vpop.f32.mrf.mxu0
  %v1592 = vadd.f32 0.0, %v1591
  %1593 = vmatmul.bf16.gmra.mxu0 %v362
  %v1594 = vpop.f32.mrf.mxu0
  %v1595 = vadd.f32 0.0, %v1594
  %v1596 = vpop.f32.mrf.mxu0
  %v1597 = vadd.f32 0.0, %v1596
  %1598 = vmatmul.bf16.gmra.mxu0 %v365
  %v1599 = vpop.f32.mrf.mxu0
  %v1600 = vadd.f32 0.0, %v1599
  %v1601 = vpop.f32.mrf.mxu0
  %v1602 = vadd.f32 0.0, %v1601
  %1603 = vdwg.mxu0
  %v1604 = vmul.f32 %v1524, %v1590
  %v1605 = vmul.f32 %v1526, %v1592
  %v1606 = vmul.f32 %v1528, %v1595
  %v1607 = vmul.f32 %v1530, %v1597
  %v1608 = vmul.f32 %v1532, %v1600
  %v1609 = vmul.f32 %v1534, %v1602
  %v1610 = vld [vmem:[%s13] sm:$0x3]
  %v1611 = vpack.c.bf16 %v1605, %v1604
  %v1612 = vpack.c.bf16 %v1607, %v1606
  %v1613 = vpack.c.bf16 %v1609, %v1608
  %v1615 = vsel %vm243, %v1611, 0
  %v1618 = vsel %vm243, %v1612, 0
  %v1621 = vsel %vm243, %v1613, 0
  %v1624 = vsel %vm253, %v1610, 0
  %1626 = vmatpush.bf16.msra.mxu0 0
  %1627 = vmatpush.bf16.msra.mxu0 0
  %1628 = vmatpush.bf16.msra.mxu0 0
  %1629 = vmatpush.bf16.msra.mxu0 0
  %1630 = vmatpush.bf16.msra.mxu0 0
  %1631 = vmatpush.bf16.msra.mxu0 0
  %1632 = vmatpush.bf16.msra.mxu0 0
  %1633 = vmatpush.bf16.msra.mxu0 %v1624
  %1634 = vmatmul.bf16.gmra.mxu0 %v1615
  %v1635 = vpop.f32.mrf.mxu0
  %v1636 = vadd.f32 0.0, %v1635
  %v1637 = vpop.f32.mrf.mxu0
  %v1638 = vadd.f32 0.0, %v1637
  %1639 = vmatmul.bf16.gmra.mxu0 %v1618
  %v1640 = vpop.f32.mrf.mxu0
  %v1641 = vadd.f32 0.0, %v1640
  %v1642 = vpop.f32.mrf.mxu0
  %v1643 = vadd.f32 0.0, %v1642
  %1644 = vmatmul.bf16.gmra.mxu0 %v1621
  %v1645 = vpop.f32.mrf.mxu0
  %v1646 = vadd.f32 0.0, %v1645
  %v1647 = vpop.f32.mrf.mxu0
  %v1648 = vadd.f32 0.0, %v1647
  %1649 = vdwg.mxu0
  %v1650 = vmul.f32 %v1636, %v1045
  %v1651 = vmul.f32 %v1638, %v1047
  %v1652 = vmul.f32 %v1641, %v1050
  %v1653 = vmul.f32 %v1643, %v1052
  %v1654 = vmul.f32 %v1646, %v1055
  %v1655 = vmul.f32 %v1648, %v1057
  %1657 = vset.pattern.permute.xlu0 64
  %1658 = vperm.xlu0 %1657, %v872
  %v1659 = vpop.permute.xlu0 %1658
  %1662 = vset.pattern.permute.xlu0 64
  %1663 = vperm.xlu0 %1662, %v887
  %v1664 = vpop.permute.xlu0 %1663
  %1667 = vset.pattern.permute.xlu0 64
  %1668 = vperm.xlu0 %1667, %v902
  %v1669 = vpop.permute.xlu0 %1668
  %1672 = vset.pattern.permute.xlu0 64
  %1673 = vperm.xlu0 %1672, %v917
  %v1674 = vpop.permute.xlu0 %1673
  %1677 = vset.pattern.permute.xlu0 64
  %1678 = vperm.xlu0 %1677, %v932
  %v1679 = vpop.permute.xlu0 %1678
  %1682 = vset.pattern.permute.xlu0 64
  %1683 = vperm.xlu0 %1682, %v947
  %v1684 = vpop.permute.xlu0 %1683
  %v1686 = vmul.f32 %v1650, %v1659
  %v1687 = vmul.f32 %v1651, %v1664
  %v1688 = vmul.f32 %v1652, %v1669
  %v1689 = vmul.f32 %v1653, %v1674
  %v1690 = vmul.f32 %v1654, %v1679
  %v1691 = vmul.f32 %v1655, %v1684
  %v1692 = vpack.c.bf16 %v1687, %v1686
  %v1693 = vpack.c.bf16 %v1689, %v1688
  %v1694 = vpack.c.bf16 %v1691, %v1690
  %1695 = vmatpush.bf16.msra.mxu0 0
  %1696 = vmatpush.bf16.msra.mxu0 0
  %1697 = vmatpush.bf16.msra.mxu0 0
  %1698 = vmatpush.bf16.msra.mxu0 0
  %1699 = vmatpush.bf16.msra.mxu0 0
  %1700 = vmatpush.bf16.msra.mxu0 %v1694
  %1701 = vmatpush.bf16.msra.mxu0 %v1693
  %1702 = vmatpush.bf16.msra.mxu0 %v1692
  %1703 = vmatmul.bf16.gmra.mxu0 %v1559
  %v1704 = vpop.f32.mrf.mxu0
  %v1705 = vadd.f32 0.0, %v1704
  %v1706 = vpop.f32.mrf.mxu0
  %v1707 = vadd.f32 0.0, %v1706
  %1708 = vdwg.mxu0
  %v1709 = vld [vmem:[%s49] sm:$0xf]
  %v1710 = vld [vmem:[%s49 + $0x4] sm:$0xf]
  %v1711 = vld [vmem:[%s49 + $0x8] sm:$0xf]
  %v1712 = vld [vmem:[%s49 + $0xc] sm:$0xf]
  %v1713 = vpack.c.bf16 %v1707, %v1705
  %v1714 = vld [vmem:[%s51] sm:$0xf]
  %v1715 = vld [vmem:[%s51 + $0x4] sm:$0xf]
  %v1716 = vld [vmem:[%s51 + $0x8] sm:$0xf]
  %v1717 = vld [vmem:[%s51 + $0xc] sm:$0xf]
  %v1722 = vunpack.c.l.b16 %v1714
  %v1723 = vunpack.c.l.b16 %v1715
  %v1724 = vunpack.c.l.b16 %v1716
  %v1725 = vunpack.c.l.b16 %v1717
  %v1726 = vpack.c.b16 %v1723, %v1722
  %v1727 = vpack.c.b16 %v1725, %v1724
  %1730 = vmatpush.bf16.msra.mxu0 0
  %1731 = vmatpush.bf16.msra.mxu0 0
  %1732 = vmatpush.bf16.msra.mxu0 0
  %1733 = vmatpush.bf16.msra.mxu0 0
  %1734 = vmatpush.bf16.msra.mxu0 0
  %1735 = vmatpush.bf16.msra.mxu0 0
  %1736 = vmatpush.bf16.msra.mxu0 %v1727
  %1737 = vmatpush.bf16.msra.mxu0 %v1726
  %1738 = vmatmul.bf16.gmra.mxu0 %v186
  %v1739 = vpop.f32.mrf.mxu0
  %v1740 = vadd.f32 0.0, %v1739
  %v1741 = vpop.f32.mrf.mxu0
  %v1742 = vadd.f32 0.0, %v1741
  %1743 = vdwg.mxu0
  %v1748 = vunpack.c.l.b16 %v1709
  %v1749 = vunpack.c.l.b16 %v1710
  %v1750 = vunpack.c.l.b16 %v1711
  %v1751 = vunpack.c.l.b16 %v1712
  %v1752 = vpack.c.b16 %v1749, %v1748
  %v1753 = vpack.c.b16 %v1751, %v1750
  %v1757 = vsel %vm184, %v1713, 0
  %1759 = vmatpush.bf16.msra.mxu0 0
  %1760 = vmatpush.bf16.msra.mxu0 0
  %1761 = vmatpush.bf16.msra.mxu0 0
  %1762 = vmatpush.bf16.msra.mxu0 0
  %1763 = vmatpush.bf16.msra.mxu0 0
  %1764 = vmatpush.bf16.msra.mxu0 0
  %1765 = vmatpush.bf16.msra.mxu0 %v1753
  %1766 = vmatpush.bf16.msra.mxu0 %v1752
  %1767 = vmatmul.bf16.gmra.mxu0 %v1757
  %v1768 = vpop.f32.mrf.mxu0
  %v1769 = vadd.f32 %v1740, %v1768
  %v1770 = vpop.f32.mrf.mxu0
  %v1771 = vadd.f32 %v1742, %v1770
  %1772 = vdwg.mxu0
  %v1773 = vld [vmem:[%s53] sm:$0x1]
  %v1775 = vperm.slane %v1773, 0
  %v1777 = vadd.f32 %v1769, %v1775
  %v1778 = vadd.f32 %v1771, %v1775
  %v1779 = vld [vmem:[%s55] sm:$0x1]
  %v1780 = vld [vmem:[%s57] sm:$0x1]
  %v1781 = vsel %vm184, %v1777, 0.0
  %1782 = vadd.xlane.f32.xlu0 %v1781
  %v1783 = vpop.xlane.xlu0 %1782
  %v1784 = vsel %vm184, %v1778, 0.0
  %1785 = vadd.xlane.f32.xlu0 %v1784
  %v1786 = vpop.xlane.xlu0 %1785
  %v1787 = vmul.f32 %v1783, %v497
  %v1788 = vmul.f32 %v1786, %v497
  %v1789 = vsub.f32 %v1777, %v1787
  %v1790 = vsub.f32 %v1778, %v1788
  %v1791 = vmul.f32 %v1789, %v1789
  %v1792 = vmul.f32 %v1790, %v1790
  %v1793 = vsel %vm184, %v1791, 0.0
  %1794 = vadd.xlane.f32.xlu0 %v1793
  %v1795 = vpop.xlane.xlu0 %1794
  %v1796 = vsel %vm184, %v1792, 0.0
  %1797 = vadd.xlane.f32.xlu0 %v1796
  %v1798 = vpop.xlane.xlu0 %1797
  %v1799 = vmul.f32 %v1795, %v497
  %v1800 = vmul.f32 %v1798, %v497
  %v1801 = vadd.f32 %v1799, 1e-05
  %v1802 = vadd.f32 %v1800, 1e-05
  %v1803 = vrsqrt.pop %v1801
  %v1804 = vmul.f32 %v1803, %v1801
  %v1805 = vmul.f32 %v1804, %v1803
  %v1806 = vmul.f32 0.5, %v1805
  %v1807 = vsub.f32 1.5, %v1806
  %v1808 = vmul.f32 %v1803, %v1807
  %vm1809 = vweird.f32 %v1801
  %vm1810 = vweird.f32 %v1803
  %vm1811 = vmor %vm1809, %vm1810
  %v1812 = vsel %vm1811, %v1803, %v1808
  %v1813 = vrsqrt.pop %v1802
  %v1814 = vmul.f32 %v1813, %v1802
  %v1815 = vmul.f32 %v1814, %v1813
  %v1816 = vmul.f32 0.5, %v1815
  %v1817 = vsub.f32 1.5, %v1816
  %v1818 = vmul.f32 %v1813, %v1817
  %vm1819 = vweird.f32 %v1802
  %vm1820 = vweird.f32 %v1813
  %vm1821 = vmor %vm1819, %vm1820
  %v1822 = vsel %vm1821, %v1813, %v1818
  %v1823 = vmul.f32 %v1789, %v1812
  %v1824 = vmul.f32 %v1790, %v1822
  %v1826 = vperm.slane %v1779, 0
  %v1828 = vmul.f32 %v1823, %v1826
  %v1829 = vmul.f32 %v1824, %v1826
  %v1831 = vperm.slane %v1780, 0
  %v1833 = vadd.f32 %v1828, %v1831
  %v1834 = vadd.f32 %v1829, %v1831
  %v1835 = vmax.f32 %v1833, 0.0
  %v1836 = vmax.f32 %v1834, 0.0
  %v1837 = vld [vmem:[%s59] sm:$0xf]
  %v1838 = vld [vmem:[%s59 + $0x4] sm:$0xf]
  %v1839 = vld [vmem:[%s59 + $0x8] sm:$0xf]
  %v1840 = vld [vmem:[%s59 + $0xc] sm:$0xf]
  %v1841 = vpack.c.bf16 %v1836, %v1835
  %v1842 = vld [vmem:[%s61] sm:$0x1]
  %v1844 = vperm.slane %v1842, 0
  %v1850 = vunpack.c.l.b16 %v1837
  %v1851 = vunpack.c.l.b16 %v1838
  %v1852 = vunpack.c.l.b16 %v1839
  %v1853 = vunpack.c.l.b16 %v1840
  %v1854 = vpack.c.b16 %v1851, %v1850
  %v1855 = vpack.c.b16 %v1853, %v1852
  %v1859 = vsel %vm184, %v1841, 0
  %1861 = vmatpush.bf16.msra.mxu0 0
  %1862 = vmatpush.bf16.msra.mxu0 0
  %1863 = vmatpush.bf16.msra.mxu0 0
  %1864 = vmatpush.bf16.msra.mxu0 0
  %1865 = vmatpush.bf16.msra.mxu0 0
  %1866 = vmatpush.bf16.msra.mxu0 0
  %1867 = vmatpush.bf16.msra.mxu0 %v1855
  %1868 = vmatpush.bf16.msra.mxu0 %v1854
  %1869 = vmatmul.bf16.gmra.mxu0 %v1859
  %v1870 = vpop.f32.mrf.mxu0
  %v1871 = vadd.f32 %v1844, %v1870
  %v1872 = vpop.f32.mrf.mxu0
  %v1873 = vadd.f32 %v1844, %v1872
  %1874 = vdwg.mxu0
  %v1875 = vadd.f32 %v1871, %v131
  %v1876 = vadd.f32 %v1873, %v132
  %1877 = vst.msk [vmem:[%s63] sm:$0xff] %vm184, %v1875
  %1878 = vst.msk [vmem:[%s63 + $0x8] sm:$0xff] %vm184, %v1876
  // Predicated region
  $region126: #{_lambda_.2} parent=0 // pred_check
    _
  $region127: #{_lambda_.2} parent=0 // pred_check_branch
    %1880 = sbr.rel (0) target = $region129
  $region128: #{_lambda_.2} parent=0 // pred_region
    _
  $region129: #{_lambda_.2} parent=0 // pred_fallthru
    _
  // Predicated region
  $region130: #{_lambda_.2} parent=0 // pred_check
    _
  $region131: #{_lambda_.2} parent=0 // pred_check_branch
    %1882 = sbr.rel (0) target = $region133
  $region132: #{_lambda_.2} parent=0 // pred_region
    _
  $region133: #{_lambda_.2} parent=0 // pred_fallthru
    _

</llo_original>
